<compile_context>
chip_gen: v5e
topology: v5e:2x2
jax: 0.10.0
libtpu: 0.0.40
codegen_flags: <defaults>
</compile_context>

<pallas_src>
import jax
import jax.numpy as jnp
from jax.experimental import pallas as pl
from jax.experimental.pallas import tpu as pltpu

KSIZE = 3
STRIDE = 1
PAD = 1
BN_EPS = 1e-5


def conv_stats_kernel(xp_ref, w_ref, conv_ref, psum_ref, psq_ref):
    """One batch image per grid step.

    xp_ref   : (H+2, W+2, Cin)   zero-padded input, bf16 (N dim squeezed)
    w_ref    : (3, 3, Cin, Cout) conv weight, bf16 (HWIO)
    conv_ref : (H, W, Cout)      conv output, f32
    psum_ref : (8, Cout)         per-image channel sums (row-replicated)
    psq_ref  : (8, Cout)         per-image channel sum-of-squares (row-replicated)
    """
    h, w, cout = conv_ref.shape

    # 3x3 conv: 9 shifted windows read straight from the Ref, bf16 operands,
    # f32 accumulation carried in registers, single store (no conv bias: cancels in BN).
    acc = None
    for kh in range(KSIZE):
        for kw in range(KSIZE):
            xs = xp_ref[kh:kh + h, kw:kw + w, :]                 # (H, W, Cin) bf16
            tap = jnp.einsum("hwc,cd->hwd", xs, w_ref[kh, kw],
                             preferred_element_type=jnp.float32)
            acc = tap if acc is None else acc + tap

    conv_ref[...] = acc

    # Single-pass BatchNorm partial statistics (per-channel sum and sum-of-squares),
    # computed from the register-resident accumulator (no re-read of the output block).
    col_sum = jnp.sum(acc, axis=0)                               # (W, Cout)
    col_sq = jnp.sum(acc * acc, axis=0)                          # (W, Cout)
    psum_ref[...] = jnp.broadcast_to(
        jnp.sum(col_sum, axis=0, keepdims=True), (8, cout))
    psq_ref[...] = jnp.broadcast_to(
        jnp.sum(col_sq, axis=0, keepdims=True), (8, cout))


def bn_skip_kernel(conv_ref, skip_ref, scale_ref, shift_ref, out_ref):
    """Lane-dense elementwise: y = conv * scale + shift + skip on (rows, W*Cout) tiles."""
    out_ref[...] = (conv_ref[...] * scale_ref[...] + shift_ref[...]
                    + skip_ref[...]).astype(out_ref.dtype)


def middle_block_forward(x_nchw, skip_nchw, weight_oihw, bias, gamma, beta):
    """Wrapper: NCHW (PyTorch) -> NHWC kernels -> NCHW output."""
    del bias  # Conv bias shifts the per-channel mean and cancels exactly in training-mode BN.

    x = jnp.transpose(x_nchw, (0, 2, 3, 1))                            # (N, H, W, Cin)
    skip = jnp.transpose(skip_nchw, (0, 2, 3, 1)).astype(jnp.float32)  # (N, H, W, Cout)
    n, h, w, cin = x.shape
    cout = weight_oihw.shape[0]

    xp = jnp.pad(x, ((0, 0), (PAD, PAD), (PAD, PAD), (0, 0))).astype(jnp.bfloat16)
    wk = jnp.transpose(weight_oihw, (2, 3, 1, 0)).astype(jnp.bfloat16)  # (3,3,Cin,Cout)
    hp, wp = h + 2 * PAD, w + 2 * PAD

    conv_flops = 2 * n * h * w * cout * KSIZE * KSIZE * cin
    conv_bytes = (xp.size * 2 + wk.size * 2
                  + n * h * w * cout * 4 + 2 * n * 8 * cout * 4)

    # -------- pass 1: conv (bf16 MXU, f32 acc) + fused BN partial statistics --------
    conv_out, psum, psq = pl.pallas_call(
        conv_stats_kernel,
        out_shape=(
            jax.ShapeDtypeStruct((n, h, w, cout), jnp.float32),
            jax.ShapeDtypeStruct((n, 8, cout), jnp.float32),
            jax.ShapeDtypeStruct((n, 8, cout), jnp.float32),
        ),
        grid_spec=pltpu.PrefetchScalarGridSpec(
            num_scalar_prefetch=0,
            grid=(n,),
            in_specs=[
                pl.BlockSpec((None, hp, wp, cin), lambda i: (i, 0, 0, 0)),
                pl.BlockSpec((KSIZE, KSIZE, cin, cout), lambda i: (0, 0, 0, 0)),
            ],
            out_specs=[
                pl.BlockSpec((None, h, w, cout), lambda i: (i, 0, 0, 0)),
                pl.BlockSpec((None, 8, cout), lambda i: (i, 0, 0)),
                pl.BlockSpec((None, 8, cout), lambda i: (i, 0, 0)),
            ],
        ),
        compiler_params=pltpu.CompilerParams(
            dimension_semantics=("parallel",),          # batch images independent (v7x: 2 TCs)
            vmem_limit_bytes=48 * 1024 * 1024,          # explicit, headroom under v7x 64 MiB
        ),
        cost_estimate=pl.CostEstimate(
            flops=conv_flops, transcendentals=0, bytes_accessed=conv_bytes),
    )(xp, wk)

    # -------- finalize BN batch statistics (tiny per-channel math in plain XLA) --------
    count = n * h * w
    ch_sum = jnp.sum(psum[:, 0, :], axis=0)                 # (Cout,)
    ch_sq = jnp.sum(psq[:, 0, :], axis=0)                   # (Cout,)
    mean = ch_sum / count
    var = jnp.maximum(ch_sq / count - mean * mean, 0.0)     # biased var (torch BN normalization)
    inv_std = jax.lax.rsqrt(var + BN_EPS)
    scale = gamma.astype(jnp.float32) * inv_std
    shift = beta.astype(jnp.float32) - mean * scale

    # -------- pass 2: lane-dense normalize + affine + skip-add --------
    rows, lane = n * h, w * cout
    conv2 = conv_out.reshape(rows, lane)                    # contiguous, free reshape
    skip2 = skip.reshape(rows, lane)
    scale2 = jnp.tile(scale, w).reshape(1, lane)            # index w*Cout + c -> scale[c]
    shift2 = jnp.tile(shift, w).reshape(1, lane)

    # Biggest row tile (~2 MiB per block) that respects the (8, full-dim) constraints.
    tr = max(1, (2 * 1024 * 1024) // (lane * 4))
    if tr >= rows:
        tr = rows
    else:
        tr = max(8, (tr // 8) * 8)
        tr = min(tr, rows)
    grid_rows = pl.cdiv(rows, tr)

    out2 = pl.pallas_call(
        bn_skip_kernel,
        out_shape=jax.ShapeDtypeStruct((rows, lane), jnp.float32),
        grid_spec=pltpu.PrefetchScalarGridSpec(
            num_scalar_prefetch=0,
            grid=(grid_rows,),
            in_specs=[
                pl.BlockSpec((tr, lane), lambda i: (i, 0)),
                pl.BlockSpec((tr, lane), lambda i: (i, 0)),
                pl.BlockSpec((1, lane), lambda i: (0, 0)),
                pl.BlockSpec((1, lane), lambda i: (0, 0)),
            ],
            out_specs=pl.BlockSpec((tr, lane), lambda i: (i, 0)),
        ),
        compiler_params=pltpu.CompilerParams(
            dimension_semantics=("parallel",),
            vmem_limit_bytes=48 * 1024 * 1024,
        ),
        cost_estimate=pl.CostEstimate(
            flops=3 * rows * lane, transcendentals=0,
            bytes_accessed=(3 * rows * lane + 2 * lane) * 4),
    )(conv2, skip2, scale2, shift2)

    out_nhwc = out2.reshape(n, h, w, cout)
    return jnp.transpose(out_nhwc, (0, 3, 1, 2))            # back to NCHW


def reference_forward(x, skip, w, b, gamma, beta):
    """Pure-JAX f32 reference: Conv2d(+bias) -> BatchNorm2d (batch stats) -> + skip."""
    conv = jax.lax.conv_general_dilated(
        x, w, window_strides=(STRIDE, STRIDE), padding=((PAD, PAD), (PAD, PAD)),
        dimension_numbers=("NCHW", "OIHW", "NCHW"))
    conv = conv + b[None, :, None, None]
    mean = jnp.mean(conv, axis=(0, 2, 3), keepdims=True)
    var = jnp.var(conv, axis=(0, 2, 3), keepdims=True)      # biased, as torch BN uses
    y = (conv - mean) * jax.lax.rsqrt(var + BN_EPS)
    y = y * gamma[None, :, None, None] + beta[None, :, None, None]
    return y + skip


if __name__ == "__main__":
    # Small shapes consistent with the module's forward: x is (N, Cin, H, W),
    # skip_info is (N, Cout, H, W); conv preserves spatial dims.
    N, CIN, COUT, H, W = 2, 4, 8, 16, 16

    key = jax.random.PRNGKey(0)
    kx, ks, kw, kb = jax.random.split(key, 4)

    x = jax.random.normal(kx, (N, CIN, H, W), dtype=jnp.float32)
    skip_info = jax.random.normal(ks, (N, COUT, H, W), dtype=jnp.float32)

    # Deterministic parameter init (shapes match nn.Conv2d / nn.BatchNorm2d).
    fan_in = CIN * KSIZE * KSIZE
    bound = 1.0 / (fan_in ** 0.5)
    conv_weight = jax.random.uniform(
        kw, (COUT, CIN, KSIZE, KSIZE), minval=-bound, maxval=bound, dtype=jnp.float32)
    conv_bias = jax.random.uniform(
        kb, (COUT,), minval=-bound, maxval=bound, dtype=jnp.float32)
    bn_gamma = jnp.ones((COUT,), jnp.float32)   # PyTorch BatchNorm2d defaults
    bn_beta = jnp.zeros((COUT,), jnp.float32)

    out = middle_block_forward(x, skip_info, conv_weight, conv_bias, bn_gamma, bn_beta)
    out = jax.block_until_ready(out)

    assert out.shape == (N, COUT, H, W), out.shape
    assert bool(jnp.all(jnp.isfinite(out))), "non-finite output"

    ref = reference_forward(x, skip_info, conv_weight, conv_bias, bn_gamma, bn_beta)
    max_err = float(jnp.max(jnp.abs(out - ref)))
    assert max_err < 7.5e-2, f"mismatch vs reference: max abs err {max_err}"

    print("KERNEL_OK")
</pallas_src>

<mosaic_0001>
module attributes {stable_mosaic.version = 11 : i64} {
  func.func @conv_stats_kernel(%arg0: i32, %arg1: memref<1x18x18x4xbf16, #tpu.memory_space<vmem>>, %arg2: memref<3x3x4x8xbf16, #tpu.memory_space<vmem>>, %arg3: memref<1x16x16x8xf32, #tpu.memory_space<vmem>>, %arg4: memref<1x8x8xf32, #tpu.memory_space<vmem>>, %arg5: memref<1x8x8xf32, #tpu.memory_space<vmem>>) attributes {dimension_semantics = [#tpu.dimension_semantics<parallel>], iteration_bounds = array<i64: 2>, scalar_prefetch = 0 : i64, scratch_operands = 0 : i64, tpu.core_type = #tpu.core_type<tc>, window_params = [{transform_indices = @transform_0, window_bounds = array<i64: 1, 18, 18, 4>}, {pipeline_mode = #tpu.pipeline_mode<synchronous>, transform_indices = @transform_1, window_bounds = array<i64: 3, 3, 4, 8>}, {transform_indices = @transform_2, window_bounds = array<i64: 1, 16, 16, 8>}, {transform_indices = @transform_3, window_bounds = array<i64: 1, 8, 8>}, {transform_indices = @transform_4, window_bounds = array<i64: 1, 8, 8>}]} {
    %c0 = arith.constant 0 : index
    %c0_0 = arith.constant 0 : index
    %c0_1 = arith.constant 0 : index
    %c0_2 = arith.constant 0 : index
    %0 = vector.load %arg1[%c0, %c0_0, %c0_1, %c0_2] : memref<1x18x18x4xbf16, #tpu.memory_space<vmem>>, vector<1x16x16x4xbf16>
    %1 = vector.shape_cast %0 : vector<1x16x16x4xbf16> to vector<16x16x4xbf16>
    %c0_3 = arith.constant 0 : index
    %c0_4 = arith.constant 0 : index
    %c0_5 = arith.constant 0 : index
    %c0_6 = arith.constant 0 : index
    %2 = vector.load %arg2[%c0_3, %c0_4, %c0_5, %c0_6] : memref<3x3x4x8xbf16, #tpu.memory_space<vmem>>, vector<1x1x4x8xbf16>
    %3 = vector.shape_cast %2 : vector<1x1x4x8xbf16> to vector<4x8xbf16>
    "tpu.trace_start"() <{level = 10 : i32, message = "hwc,cd->hwd"}> : () -> ()
    %cst = arith.constant dense<0.000000e+00> : vector<16x16x8xf32>
    %4 = tpu.matmul %1, %3, %cst {dimension_numbers = #tpu.dot_dimension_numbers<[2], [0], [0, 1], [1], [0, 0, 0, 1, 1, 1], [], []>} : vector<16x16x4xbf16>, vector<4x8xbf16>, vector<16x16x8xf32> -> vector<16x16x8xf32>
    "tpu.trace_stop"() : () -> ()
    %c0_7 = arith.constant 0 : index
    %c0_8 = arith.constant 0 : index
    %c1 = arith.constant 1 : index
    %c0_9 = arith.constant 0 : index
    %5 = vector.load %arg1[%c0_7, %c0_8, %c1, %c0_9] : memref<1x18x18x4xbf16, #tpu.memory_space<vmem>>, vector<1x16x16x4xbf16>
    %6 = vector.shape_cast %5 : vector<1x16x16x4xbf16> to vector<16x16x4xbf16>
    %c0_10 = arith.constant 0 : index
    %c1_11 = arith.constant 1 : index
    %c0_12 = arith.constant 0 : index
    %c0_13 = arith.constant 0 : index
    %7 = vector.load %arg2[%c0_10, %c1_11, %c0_12, %c0_13] : memref<3x3x4x8xbf16, #tpu.memory_space<vmem>>, vector<1x1x4x8xbf16>
    %8 = vector.shape_cast %7 : vector<1x1x4x8xbf16> to vector<4x8xbf16>
    "tpu.trace_start"() <{level = 10 : i32, message = "hwc,cd->hwd"}> : () -> ()
    %cst_14 = arith.constant dense<0.000000e+00> : vector<16x16x8xf32>
    %9 = tpu.matmul %6, %8, %cst_14 {dimension_numbers = #tpu.dot_dimension_numbers<[2], [0], [0, 1], [1], [0, 0, 0, 1, 1, 1], [], []>} : vector<16x16x4xbf16>, vector<4x8xbf16>, vector<16x16x8xf32> -> vector<16x16x8xf32>
    "tpu.trace_stop"() : () -> ()
    %10 = arith.addf %4, %9 : vector<16x16x8xf32>
    %c0_15 = arith.constant 0 : index
    %c0_16 = arith.constant 0 : index
    %c2 = arith.constant 2 : index
    %c0_17 = arith.constant 0 : index
    %11 = vector.load %arg1[%c0_15, %c0_16, %c2, %c0_17] : memref<1x18x18x4xbf16, #tpu.memory_space<vmem>>, vector<1x16x16x4xbf16>
    %12 = vector.shape_cast %11 : vector<1x16x16x4xbf16> to vector<16x16x4xbf16>
    %c0_18 = arith.constant 0 : index
    %c2_19 = arith.constant 2 : index
    %c0_20 = arith.constant 0 : index
    %c0_21 = arith.constant 0 : index
    %13 = vector.load %arg2[%c0_18, %c2_19, %c0_20, %c0_21] : memref<3x3x4x8xbf16, #tpu.memory_space<vmem>>, vector<1x1x4x8xbf16>
    %14 = vector.shape_cast %13 : vector<1x1x4x8xbf16> to vector<4x8xbf16>
    "tpu.trace_start"() <{level = 10 : i32, message = "hwc,cd->hwd"}> : () -> ()
    %cst_22 = arith.constant dense<0.000000e+00> : vector<16x16x8xf32>
    %15 = tpu.matmul %12, %14, %cst_22 {dimension_numbers = #tpu.dot_dimension_numbers<[2], [0], [0, 1], [1], [0, 0, 0, 1, 1, 1], [], []>} : vector<16x16x4xbf16>, vector<4x8xbf16>, vector<16x16x8xf32> -> vector<16x16x8xf32>
    "tpu.trace_stop"() : () -> ()
    %16 = arith.addf %10, %15 : vector<16x16x8xf32>
    %c0_23 = arith.constant 0 : index
    %c1_24 = arith.constant 1 : index
    %c0_25 = arith.constant 0 : index
    %c0_26 = arith.constant 0 : index
    %17 = vector.load %arg1[%c0_23, %c1_24, %c0_25, %c0_26] : memref<1x18x18x4xbf16, #tpu.memory_space<vmem>>, vector<1x16x16x4xbf16>
    %18 = vector.shape_cast %17 : vector<1x16x16x4xbf16> to vector<16x16x4xbf16>
    %c1_27 = arith.constant 1 : index
    %c0_28 = arith.constant 0 : index
    %c0_29 = arith.constant 0 : index
    %c0_30 = arith.constant 0 : index
    %19 = vector.load %arg2[%c1_27, %c0_28, %c0_29, %c0_30] : memref<3x3x4x8xbf16, #tpu.memory_space<vmem>>, vector<1x1x4x8xbf16>
    %20 = vector.shape_cast %19 : vector<1x1x4x8xbf16> to vector<4x8xbf16>
    "tpu.trace_start"() <{level = 10 : i32, message = "hwc,cd->hwd"}> : () -> ()
    %cst_31 = arith.constant dense<0.000000e+00> : vector<16x16x8xf32>
    %21 = tpu.matmul %18, %20, %cst_31 {dimension_numbers = #tpu.dot_dimension_numbers<[2], [0], [0, 1], [1], [0, 0, 0, 1, 1, 1], [], []>} : vector<16x16x4xbf16>, vector<4x8xbf16>, vector<16x16x8xf32> -> vector<16x16x8xf32>
    "tpu.trace_stop"() : () -> ()
    %22 = arith.addf %16, %21 : vector<16x16x8xf32>
    %c0_32 = arith.constant 0 : index
    %c1_33 = arith.constant 1 : index
    %c1_34 = arith.constant 1 : index
    %c0_35 = arith.constant 0 : index
    %23 = vector.load %arg1[%c0_32, %c1_33, %c1_34, %c0_35] : memref<1x18x18x4xbf16, #tpu.memory_space<vmem>>, vector<1x16x16x4xbf16>
    %24 = vector.shape_cast %23 : vector<1x16x16x4xbf16> to vector<16x16x4xbf16>
    %c1_36 = arith.constant 1 : index
    %c1_37 = arith.constant 1 : index
    %c0_38 = arith.constant 0 : index
    %c0_39 = arith.constant 0 : index
    %25 = vector.load %arg2[%c1_36, %c1_37, %c0_38, %c0_39] : memref<3x3x4x8xbf16, #tpu.memory_space<vmem>>, vector<1x1x4x8xbf16>
    %26 = vector.shape_cast %25 : vector<1x1x4x8xbf16> to vector<4x8xbf16>
    "tpu.trace_start"() <{level = 10 : i32, message = "hwc,cd->hwd"}> : () -> ()
    %cst_40 = arith.constant dense<0.000000e+00> : vector<16x16x8xf32>
    %27 = tpu.matmul %24, %26, %cst_40 {dimension_numbers = #tpu.dot_dimension_numbers<[2], [0], [0, 1], [1], [0, 0, 0, 1, 1, 1], [], []>} : vector<16x16x4xbf16>, vector<4x8xbf16>, vector<16x16x8xf32> -> vector<16x16x8xf32>
    "tpu.trace_stop"() : () -> ()
    %28 = arith.addf %22, %27 : vector<16x16x8xf32>
    %c0_41 = arith.constant 0 : index
    %c1_42 = arith.constant 1 : index
    %c2_43 = arith.constant 2 : index
    %c0_44 = arith.constant 0 : index
    %29 = vector.load %arg1[%c0_41, %c1_42, %c2_43, %c0_44] : memref<1x18x18x4xbf16, #tpu.memory_space<vmem>>, vector<1x16x16x4xbf16>
    %30 = vector.shape_cast %29 : vector<1x16x16x4xbf16> to vector<16x16x4xbf16>
    %c1_45 = arith.constant 1 : index
    %c2_46 = arith.constant 2 : index
    %c0_47 = arith.constant 0 : index
    %c0_48 = arith.constant 0 : index
    %31 = vector.load %arg2[%c1_45, %c2_46, %c0_47, %c0_48] : memref<3x3x4x8xbf16, #tpu.memory_space<vmem>>, vector<1x1x4x8xbf16>
    %32 = vector.shape_cast %31 : vector<1x1x4x8xbf16> to vector<4x8xbf16>
    "tpu.trace_start"() <{level = 10 : i32, message = "hwc,cd->hwd"}> : () -> ()
    %cst_49 = arith.constant dense<0.000000e+00> : vector<16x16x8xf32>
    %33 = tpu.matmul %30, %32, %cst_49 {dimension_numbers = #tpu.dot_dimension_numbers<[2], [0], [0, 1], [1], [0, 0, 0, 1, 1, 1], [], []>} : vector<16x16x4xbf16>, vector<4x8xbf16>, vector<16x16x8xf32> -> vector<16x16x8xf32>
    "tpu.trace_stop"() : () -> ()
    %34 = arith.addf %28, %33 : vector<16x16x8xf32>
    %c0_50 = arith.constant 0 : index
    %c2_51 = arith.constant 2 : index
    %c0_52 = arith.constant 0 : index
    %c0_53 = arith.constant 0 : index
    %35 = vector.load %arg1[%c0_50, %c2_51, %c0_52, %c0_53] : memref<1x18x18x4xbf16, #tpu.memory_space<vmem>>, vector<1x16x16x4xbf16>
    %36 = vector.shape_cast %35 : vector<1x16x16x4xbf16> to vector<16x16x4xbf16>
    %c2_54 = arith.constant 2 : index
    %c0_55 = arith.constant 0 : index
    %c0_56 = arith.constant 0 : index
    %c0_57 = arith.constant 0 : index
    %37 = vector.load %arg2[%c2_54, %c0_55, %c0_56, %c0_57] : memref<3x3x4x8xbf16, #tpu.memory_space<vmem>>, vector<1x1x4x8xbf16>
    %38 = vector.shape_cast %37 : vector<1x1x4x8xbf16> to vector<4x8xbf16>
    "tpu.trace_start"() <{level = 10 : i32, message = "hwc,cd->hwd"}> : () -> ()
    %cst_58 = arith.constant dense<0.000000e+00> : vector<16x16x8xf32>
    %39 = tpu.matmul %36, %38, %cst_58 {dimension_numbers = #tpu.dot_dimension_numbers<[2], [0], [0, 1], [1], [0, 0, 0, 1, 1, 1], [], []>} : vector<16x16x4xbf16>, vector<4x8xbf16>, vector<16x16x8xf32> -> vector<16x16x8xf32>
    "tpu.trace_stop"() : () -> ()
    %40 = arith.addf %34, %39 : vector<16x16x8xf32>
    %c0_59 = arith.constant 0 : index
    %c2_60 = arith.constant 2 : index
    %c1_61 = arith.constant 1 : index
    %c0_62 = arith.constant 0 : index
    %41 = vector.load %arg1[%c0_59, %c2_60, %c1_61, %c0_62] : memref<1x18x18x4xbf16, #tpu.memory_space<vmem>>, vector<1x16x16x4xbf16>
    %42 = vector.shape_cast %41 : vector<1x16x16x4xbf16> to vector<16x16x4xbf16>
    %c2_63 = arith.constant 2 : index
    %c1_64 = arith.constant 1 : index
    %c0_65 = arith.constant 0 : index
    %c0_66 = arith.constant 0 : index
    %43 = vector.load %arg2[%c2_63, %c1_64, %c0_65, %c0_66] : memref<3x3x4x8xbf16, #tpu.memory_space<vmem>>, vector<1x1x4x8xbf16>
    %44 = vector.shape_cast %43 : vector<1x1x4x8xbf16> to vector<4x8xbf16>
    "tpu.trace_start"() <{level = 10 : i32, message = "hwc,cd->hwd"}> : () -> ()
    %cst_67 = arith.constant dense<0.000000e+00> : vector<16x16x8xf32>
    %45 = tpu.matmul %42, %44, %cst_67 {dimension_numbers = #tpu.dot_dimension_numbers<[2], [0], [0, 1], [1], [0, 0, 0, 1, 1, 1], [], []>} : vector<16x16x4xbf16>, vector<4x8xbf16>, vector<16x16x8xf32> -> vector<16x16x8xf32>
    "tpu.trace_stop"() : () -> ()
    %46 = arith.addf %40, %45 : vector<16x16x8xf32>
    %c0_68 = arith.constant 0 : index
    %c2_69 = arith.constant 2 : index
    %c2_70 = arith.constant 2 : index
    %c0_71 = arith.constant 0 : index
    %47 = vector.load %arg1[%c0_68, %c2_69, %c2_70, %c0_71] : memref<1x18x18x4xbf16, #tpu.memory_space<vmem>>, vector<1x16x16x4xbf16>
    %48 = vector.shape_cast %47 : vector<1x16x16x4xbf16> to vector<16x16x4xbf16>
    %c2_72 = arith.constant 2 : index
    %c2_73 = arith.constant 2 : index
    %c0_74 = arith.constant 0 : index
    %c0_75 = arith.constant 0 : index
    %49 = vector.load %arg2[%c2_72, %c2_73, %c0_74, %c0_75] : memref<3x3x4x8xbf16, #tpu.memory_space<vmem>>, vector<1x1x4x8xbf16>
    %50 = vector.shape_cast %49 : vector<1x1x4x8xbf16> to vector<4x8xbf16>
    "tpu.trace_start"() <{level = 10 : i32, message = "hwc,cd->hwd"}> : () -> ()
    %cst_76 = arith.constant dense<0.000000e+00> : vector<16x16x8xf32>
    %51 = tpu.matmul %48, %50, %cst_76 {dimension_numbers = #tpu.dot_dimension_numbers<[2], [0], [0, 1], [1], [0, 0, 0, 1, 1, 1], [], []>} : vector<16x16x4xbf16>, vector<4x8xbf16>, vector<16x16x8xf32> -> vector<16x16x8xf32>
    "tpu.trace_stop"() : () -> ()
    %52 = arith.addf %46, %51 : vector<16x16x8xf32>
    %c0_77 = arith.constant 0 : index
    %c0_78 = arith.constant 0 : index
    %c0_79 = arith.constant 0 : index
    %c0_80 = arith.constant 0 : index
    %53 = vector.load %arg3[%c0_77, %c0_78, %c0_79, %c0_80] : memref<1x16x16x8xf32, #tpu.memory_space<vmem>>, vector<1x16x16x8xf32>
    %54 = vector.shape_cast %53 : vector<1x16x16x8xf32> to vector<16x16x8xf32>
    %55 = vector.shape_cast %52 : vector<16x16x8xf32> to vector<1x16x16x8xf32>
    tpu.vector_store %arg3[%c0_77, %c0_78, %c0_79, %c0_80], %55 {strides = array<i32>} : memref<1x16x16x8xf32, #tpu.memory_space<vmem>>, vector<1x16x16x8xf32>,
    %cst_81 = arith.constant dense<0.000000e+00> : vector<16x8xf32>
    %56 = vector.multi_reduction <add>, %52, %cst_81 [0] : vector<16x16x8xf32> to vector<16x8xf32>
    %57 = arith.mulf %52, %52 : vector<16x16x8xf32>
    %cst_82 = arith.constant dense<0.000000e+00> : vector<16x8xf32>
    %58 = vector.multi_reduction <add>, %57, %cst_82 [0] : vector<16x16x8xf32> to vector<16x8xf32>
    %cst_83 = arith.constant dense<0.000000e+00> : vector<8xf32>
    %59 = vector.multi_reduction <add>, %56, %cst_83 [0] : vector<16x8xf32> to vector<8xf32>
    %60 = vector.shape_cast %59 : vector<8xf32> to vector<1x8xf32>
    %61 = vector.shape_cast %60 : vector<1x8xf32> to vector<1x8xf32>
    %62 = vector.broadcast %61 : vector<1x8xf32> to vector<8x8xf32>
    %c0_84 = arith.constant 0 : index
    %c0_85 = arith.constant 0 : index
    %c0_86 = arith.constant 0 : index
    %63 = vector.load %arg4[%c0_84, %c0_85, %c0_86] : memref<1x8x8xf32, #tpu.memory_space<vmem>>, vector<1x8x8xf32>
    %64 = vector.shape_cast %63 : vector<1x8x8xf32> to vector<8x8xf32>
    %65 = vector.shape_cast %62 : vector<8x8xf32> to vector<1x8x8xf32>
    tpu.vector_store %arg4[%c0_84, %c0_85, %c0_86], %65 {strides = array<i32>} : memref<1x8x8xf32, #tpu.memory_space<vmem>>, vector<1x8x8xf32>,
    %cst_87 = arith.constant dense<0.000000e+00> : vector<8xf32>
    %66 = vector.multi_reduction <add>, %58, %cst_87 [0] : vector<16x8xf32> to vector<8xf32>
    %67 = vector.shape_cast %66 : vector<8xf32> to vector<1x8xf32>
    %68 = vector.shape_cast %67 : vector<1x8xf32> to vector<1x8xf32>
    %69 = vector.broadcast %68 : vector<1x8xf32> to vector<8x8xf32>
    %c0_88 = arith.constant 0 : index
    %c0_89 = arith.constant 0 : index
    %c0_90 = arith.constant 0 : index
    %70 = vector.load %arg5[%c0_88, %c0_89, %c0_90] : memref<1x8x8xf32, #tpu.memory_space<vmem>>, vector<1x8x8xf32>
    %71 = vector.shape_cast %70 : vector<1x8x8xf32> to vector<8x8xf32>
    %72 = vector.shape_cast %69 : vector<8x8xf32> to vector<1x8x8xf32>
    tpu.vector_store %arg5[%c0_88, %c0_89, %c0_90], %72 {strides = array<i32>} : memref<1x8x8xf32, #tpu.memory_space<vmem>>, vector<1x8x8xf32>,
    return
  }
  func.func @transform_0(%arg0: i32) -> (i32, i32, i32, i32) {
    %c0_i32 = arith.constant 0 : i32
    %c0_i32_0 = arith.constant 0 : i32
    %c0_i32_1 = arith.constant 0 : i32
    %c0_i32_2 = arith.constant 0 : i32
    return %arg0, %c0_i32, %c0_i32_0, %c0_i32_1 : i32, i32, i32, i32
  }
  func.func @transform_1(%arg0: i32) -> (i32, i32, i32, i32) {
    %c0_i32 = arith.constant 0 : i32
    %c0_i32_0 = arith.constant 0 : i32
    %c0_i32_1 = arith.constant 0 : i32
    %c0_i32_2 = arith.constant 0 : i32
    %c0_i32_3 = arith.constant 0 : i32
    return %c0_i32, %c0_i32_0, %c0_i32_1, %c0_i32_2 : i32, i32, i32, i32
  }
  func.func @transform_2(%arg0: i32) -> (i32, i32, i32, i32) {
    %c0_i32 = arith.constant 0 : i32
    %c0_i32_0 = arith.constant 0 : i32
    %c0_i32_1 = arith.constant 0 : i32
    %c0_i32_2 = arith.constant 0 : i32
    return %arg0, %c0_i32, %c0_i32_0, %c0_i32_1 : i32, i32, i32, i32
  }
  func.func @transform_3(%arg0: i32) -> (i32, i32, i32) {
    %c0_i32 = arith.constant 0 : i32
    %c0_i32_0 = arith.constant 0 : i32
    %c0_i32_1 = arith.constant 0 : i32
    return %arg0, %c0_i32, %c0_i32_0 : i32, i32, i32
  }
  func.func @transform_4(%arg0: i32) -> (i32, i32, i32) {
    %c0_i32 = arith.constant 0 : i32
    %c0_i32_0 = arith.constant 0 : i32
    %c0_i32_1 = arith.constant 0 : i32
    return %arg0, %c0_i32, %c0_i32_0 : i32, i32, i32
  }
}

</mosaic_0001>

<llo_original>
// kernel: tpu_custom_call.1
$region0: #{tpu_custom_call.1}
  #allocation0 [shape = 'u32[]', space=smem, size = 0x4, offset = 0x4, fixed_abs, tag = 'smem constant byte address 0x4 - core index']
  #allocation1 [shape = 'u32[72,128]{1,0:T(1,128)}', space=vmem, size = 0x9000, scoped, tag = 'internal scratch']
  %s0 = inlined_call_operand.vmem [shape: bf16[2,18,18,4], index: 0, kind: input, shape index: {}]
  %s1 = inlined_call_operand.vmem [shape: bf16[3,3,4,8], index: 1, kind: input, shape index: {}]
  %s2 = inlined_call_operand.vmem [shape: f32[2,16,16,8], index: 2, kind: output, shape index: {0}]
  %s3 = inlined_call_operand.hbm [shape: f32[2,8,8], index: 3, kind: output, shape index: {1}]
  %s4 = inlined_call_operand.hbm [shape: f32[2,8,8], index: 4, kind: output, shape index: {2}]
  %5 = xla_tuple %s2, %s3, %s4
  %s6 = sld [smem:[#allocation0]]
  $region57: #{tpu_custom_call.1} parent=0
    _
  %s8 = ssub.s32 1, %s6
  %s9 = scalar_select 0, %s8, %s6
  $region1: #{tpu_custom_call.1} parent=0
    #allocation2 [shape = 'u8[8192]{0}', space=vmem, size = 0x2000, scoped, tag = 'output window, operand 1']
    #allocation3 [shape = 's32[2]{0}', space=sflag, size = 0x8, scoped, tag = 'scoped memory for tpu_custom_call.1']
    #allocation4 [shape = 'u8[8192]{0}', space=vmem, size = 0x2000, scoped, tag = 'output window, operand 2']
    #allocation5 [shape = 's32[2]{0}', space=sflag, size = 0x8, scoped, tag = 'scoped memory for tpu_custom_call.1']
    %10 = vsyncpa [#allocation3], 0
    %s11 = scalar_lea.sflag [#allocation3], 1
    %12 = vsyncpa %s11, 0
    %13 = vsyncpa [#allocation5], 0
    %s14 = scalar_lea.sflag [#allocation5], 1
    %15 = vsyncpa %s14, 0
    loop: start=0, step=1, limit=4
    $region2: #{tpu_custom_call.1} parent=1 // loop_pre_header
      _
    $region3: #{tpu_custom_call.1} parent=1 // loop_header
      %s17 = sphi 0, %s21
      %p18 = scmp.ge.s32.totalorder %s17, 4
      %s27 = sphi 0, %s29
      %s30 = sphi 0, %s27
      %s31 = sphi 0, %s30
      %s47 = sphi 0, %s31
      %s51 = sphi 0, %s51
      %s53 = sphi 0, %s51
      %s54 = sphi 0, %s53
      %s68 = sphi 0, %s54
      %s74 = sphi 0, %s76
      %s77 = sphi 0, %s74
      %s78 = sphi 0, %s77
      %s94 = sphi 0, %s78
      %s100 = sphi 0, %s102
      %s103 = sphi 0, %s100
      %s104 = sphi 0, %s103
      %s120 = sphi 0, %s104
      %s126 = sphi 0, %s128
      %s129 = sphi 0, %s126
      %s130 = sphi 0, %s129
      %s146 = sphi 0, %s130
    $region4: #{tpu_custom_call.1} parent=1 // loop_header_branch
      %20 = sbr.rel (%p18) target = $region8
    $region5: #{tpu_custom_call.1} parent=1 // loop_body
      %s22 = ssub.s32 %s17, 1
      %s23 = ssub.s32 %s17, 2
      %s24 = sadd.s32 %s17, 1
      %s25 = ssub.s32 %s17, %s24
      %p26 = scmp.eq.s32.totalorder %s25, 0
      %s28 = sadd.s32 %s27, 1
      %s29 = scalar_select %p26, %s27, %s28
      %p32 = pneg %p26
      %p33 = scmp.eq.s32.totalorder %s17, 1
      %p34 = por %p32, %p33
      %p35 = scmp.ne.s32.totalorder %s27, %s30
      %p36 = scmp.eq.s32.totalorder %s17, 0
      %p37 = por %p35, %p36
      %p38 = scmp.ne.s32.totalorder %s27, %s30
      %p39 = scmp.eq.s32.totalorder %s22, 1
      %p40 = por %p38, %p39
      %p41 = scmp.ne.s32.totalorder %s30, %s31
      %p42 = scmp.eq.s32.totalorder %s22, 0
      %p43 = por %p41, %p42
      %p44 = scmp.ne.s32.totalorder %s30, %s31
      %p45 = scmp.eq.s32.totalorder %s23, 1
      %p46 = por %p44, %p45
      %p48 = scmp.ne.s32.totalorder %s31, %s47
      %p49 = scmp.eq.s32.totalorder %s23, 0
      %p50 = por %p48, %p49
      %s52 = sadd.s32 %s51, 1
      %p55 = scmp.eq.s32.totalorder %s17, 1
      %p56 = scmp.ne.s32.totalorder %s51, %s53
      %p57 = scmp.eq.s32.totalorder %s17, 0
      %p58 = por %p56, %p57
      %p59 = scmp.ne.s32.totalorder %s51, %s53
      %p60 = scmp.eq.s32.totalorder %s22, 1
      %p61 = por %p59, %p60
      %p62 = scmp.ne.s32.totalorder %s53, %s54
      %p63 = scmp.eq.s32.totalorder %s22, 0
      %p64 = por %p62, %p63
      %p65 = scmp.ne.s32.totalorder %s53, %s54
      %p66 = scmp.eq.s32.totalorder %s23, 1
      %p67 = por %p65, %p66
      %p69 = scmp.ne.s32.totalorder %s54, %s68
      %p70 = scmp.eq.s32.totalorder %s23, 0
      %p71 = por %p69, %p70
      %s72 = ssub.s32 %s17, %s24
      %p73 = scmp.eq.s32.totalorder %s72, 0
      %s75 = sadd.s32 %s74, 1
      %s76 = scalar_select %p73, %s74, %s75
      %p79 = pneg %p73
      %p80 = scmp.eq.s32.totalorder %s17, 1
      %p81 = por %p79, %p80
      %p82 = scmp.ne.s32.totalorder %s74, %s77
      %p83 = scmp.eq.s32.totalorder %s17, 0
      %p84 = por %p82, %p83
      %p85 = scmp.ne.s32.totalorder %s74, %s77
      %p86 = scmp.eq.s32.totalorder %s22, 1
      %p87 = por %p85, %p86
      %p88 = scmp.ne.s32.totalorder %s77, %s78
      %p89 = scmp.eq.s32.totalorder %s22, 0
      %p90 = por %p88, %p89
      %p91 = scmp.ne.s32.totalorder %s77, %s78
      %p92 = scmp.eq.s32.totalorder %s23, 1
      %p93 = por %p91, %p92
      %p95 = scmp.ne.s32.totalorder %s78, %s94
      %p96 = scmp.eq.s32.totalorder %s23, 0
      %p97 = por %p95, %p96
      %s98 = ssub.s32 %s17, %s24
      %p99 = scmp.eq.s32.totalorder %s98, 0
      %s101 = sadd.s32 %s100, 1
      %s102 = scalar_select %p99, %s100, %s101
      %p105 = pneg %p99
      %p106 = scmp.eq.s32.totalorder %s17, 1
      %p107 = por %p105, %p106
      %p108 = scmp.ne.s32.totalorder %s100, %s103
      %p109 = scmp.eq.s32.totalorder %s17, 0
      %p110 = por %p108, %p109
      %p111 = scmp.ne.s32.totalorder %s100, %s103
      %p112 = scmp.eq.s32.totalorder %s22, 1
      %p113 = por %p111, %p112
      %p114 = scmp.ne.s32.totalorder %s103, %s104
      %p115 = scmp.eq.s32.totalorder %s22, 0
      %p116 = por %p114, %p115
      %p117 = scmp.ne.s32.totalorder %s103, %s104
      %p118 = scmp.eq.s32.totalorder %s23, 1
      %p119 = por %p117, %p118
      %p121 = scmp.ne.s32.totalorder %s104, %s120
      %p122 = scmp.eq.s32.totalorder %s23, 0
      %p123 = por %p121, %p122
      %s124 = ssub.s32 %s17, %s24
      %p125 = scmp.eq.s32.totalorder %s124, 0
      %s127 = sadd.s32 %s126, 1
      %s128 = scalar_select %p125, %s126, %s127
      %p131 = pneg %p125
      %p132 = scmp.eq.s32.totalorder %s17, 1
      %p133 = por %p131, %p132
      %p134 = scmp.ne.s32.totalorder %s126, %s129
      %p135 = scmp.eq.s32.totalorder %s17, 0
      %p136 = por %p134, %p135
      %p137 = scmp.ne.s32.totalorder %s126, %s129
      %p138 = scmp.eq.s32.totalorder %s22, 1
      %p139 = por %p137, %p138
      %p140 = scmp.ne.s32.totalorder %s129, %s130
      %p141 = scmp.eq.s32.totalorder %s22, 0
      %p142 = por %p140, %p141
      %p143 = scmp.ne.s32.totalorder %s129, %s130
      %p144 = scmp.eq.s32.totalorder %s23, 1
      %p145 = por %p143, %p144
      %p147 = scmp.ne.s32.totalorder %s130, %s146
      %p148 = scmp.eq.s32.totalorder %s23, 0
      %p149 = por %p147, %p148
      %p150 = scmp.le.s32.totalorder 1, %s17
      %p151 = scmp.lt.s32.totalorder %s17, 3
      %p152 = pnand %p150, %p151
      %p153 = pneg %p152
      // Predicated region
      $region9: #{tpu_custom_call.1} parent=5 // pred_check
        _
      $region10: #{tpu_custom_call.1} parent=5 // pred_check_branch
        %155 = sbr.rel (%p152) target = $region12
      $region11: #{tpu_custom_call.1} parent=5 // pred_region
        %s156 = ssub.s32 %s17, 1
        // Predicated region
        $region13: #{tpu_custom_call.1} parent=11 // pred_check
          %p157 = pneg %p64
        $region14: #{tpu_custom_call.1} parent=11 // pred_check_branch
          %159 = sbr.rel (%p157) target = $region16
        $region15: #{tpu_custom_call.1} parent=11 // pred_region
          _
        $region16: #{tpu_custom_call.1} parent=11 // pred_fallthru
          _
      $region12: #{tpu_custom_call.1} parent=5 // pred_fallthru
        _
      %p160 = scmp.lt.s32.totalorder %s17, 2
      // Predicated region
      $region17: #{tpu_custom_call.1} parent=5 // pred_check
        %p161 = pneg %p160
      $region18: #{tpu_custom_call.1} parent=5 // pred_check_branch
        %163 = sbr.rel (%p161) target = $region20
      $region19: #{tpu_custom_call.1} parent=5 // pred_region
        // Predicated region
        $region21: #{tpu_custom_call.1} parent=19 // pred_check
          %p164 = pneg %p37
        $region22: #{tpu_custom_call.1} parent=19 // pred_check_branch
          %166 = sbr.rel (%p164) target = $region24
        $region23: #{tpu_custom_call.1} parent=19 // pred_region
          %p167 = scmp.lt.s32.totalorder %s17, 1
          %s168 = scalar_select %p167, %s17, 1
          %s169 = smul.addr %s168, 54
          %s170 = smul.addr %s169, 4
          %s171 = scalar_lea.vmem %s0, %s170
        $region24: #{tpu_custom_call.1} parent=19 // pred_fallthru
          _
      $region20: #{tpu_custom_call.1} parent=5 // pred_fallthru
        _
      %p172 = scmp.le.s32.totalorder 1, %s17
      %p173 = scmp.lt.s32.totalorder %s17, 3
      %p174 = pnand %p172, %p173
      %p175 = pneg %p174
      // Predicated region
      $region25: #{tpu_custom_call.1} parent=5 // pred_check
        _
      $region26: #{tpu_custom_call.1} parent=5 // pred_check_branch
        %177 = sbr.rel (%p174) target = $region28
      $region27: #{tpu_custom_call.1} parent=5 // pred_region
        %s178 = ssub.s32 %s17, 1
        %p179 = scmp.lt.s32.totalorder %s22, 1
        %s180 = scalar_select %p179, %s22, 1
        %s181 = smul.addr %s180, 54
        %s182 = smul.addr %s181, 4
        %s183 = scalar_lea.vmem %s0, %s182
        %p184 = pneg %p43
        %p185 = pneg %p40
        %p186 = pneg %p64
        %p187 = pneg %p61
        %p188 = pneg %p90
        %p189 = pneg %p87
        %p190 = scmp.lt.s32.totalorder %s22, 1
        %s191 = scalar_select %p190, %s22, 1
        %s192 = smul.addr %s191, 32
        %s193 = smul.addr %s192, 8
        %s194 = scalar_lea.vmem %s2, %s193
        %p195 = pneg %p116
        %p196 = pneg %p113
        %s197 = sand.u32 %s103, 1
        %s198 = scalar_lea.sflag [#allocation3], %s197
        %s199 = sand.u32 %s103, 1
        %s200 = smul.addr %s199, 8
        %s201 = scalar_lea.vmem [#allocation2], %s200
        %p202 = pneg %p142
        %p203 = pneg %p139
        %s204 = sand.u32 %s129, 1
        %s205 = scalar_lea.sflag [#allocation5], %s204
        %s206 = sand.u32 %s129, 1
        %s207 = smul.addr %s206, 8
        %s208 = scalar_lea.vmem [#allocation4], %s207
        %p209 = scmp.lt.s32.totalorder %s22, 1
        %s210 = scalar_select %p209, %s22, 1
        %s211 = smul.addr %s210, 54
        %s212 = smul.addr %s211, 4
        %s213 = scalar_lea.vmem %s0, %s212
        %p214 = scmp.lt.s32.totalorder %s22, 1
        %s215 = scalar_select %p214, %s22, 1
        %s216 = smul.addr %s215, 32
        %s217 = smul.addr %s216, 8
        %s218 = scalar_lea.vmem %s2, %s217
        %v220 = vld [vmem:[%s213] sm:$0xf]
        %v221 = vld [vmem:[%s213 + $0x4] sm:$0xf]
        %v222 = vld [vmem:[%s213 + $0xc] sm:$0xf]
        %v223 = vld [vmem:[%s213 + $0x10] sm:$0xf]
        %v224 = vld [vmem:[%s213 + $0x18] sm:$0xf]
        %v225 = vld [vmem:[%s213 + $0x1c] sm:$0xf]
        %v226 = vld [vmem:[%s213 + $0x24] sm:$0xf]
        %v227 = vld [vmem:[%s213 + $0x28] sm:$0xf]
        %v228 = vld [vmem:[%s213 + $0x30] sm:$0xf]
        %v229 = vld [vmem:[%s213 + $0x34] sm:$0xf]
        %v230 = vld [vmem:[%s213 + $0x3c] sm:$0xf]
        %v231 = vld [vmem:[%s213 + $0x40] sm:$0xf]
        %v232 = vld [vmem:[%s213 + $0x48] sm:$0xf]
        %v233 = vld [vmem:[%s213 + $0x4c] sm:$0xf]
        %v234 = vld [vmem:[%s213 + $0x54] sm:$0xf]
        %v235 = vld [vmem:[%s213 + $0x58] sm:$0xf]
        %v236 = vld [vmem:[%s213 + $0x60] sm:$0xf]
        %v237 = vld [vmem:[%s213 + $0x64] sm:$0xf]
        %v238 = vld [vmem:[%s213 + $0x6c] sm:$0xf]
        %v239 = vld [vmem:[%s213 + $0x70] sm:$0xf]
        %v240 = vld [vmem:[%s213 + $0x78] sm:$0xf]
        %v241 = vld [vmem:[%s213 + $0x7c] sm:$0xf]
        %v242 = vld [vmem:[%s213 + $0x84] sm:$0xf]
        %v243 = vld [vmem:[%s213 + $0x88] sm:$0xf]
        %v244 = vld [vmem:[%s213 + $0x90] sm:$0xf]
        %v245 = vld [vmem:[%s213 + $0x94] sm:$0xf]
        %v246 = vld [vmem:[%s213 + $0x9c] sm:$0xf]
        %v247 = vld [vmem:[%s213 + $0xa0] sm:$0xf]
        %v248 = vld [vmem:[%s213 + $0xa8] sm:$0xf]
        %v249 = vld [vmem:[%s213 + $0xac] sm:$0xf]
        %v250 = vld [vmem:[%s213 + $0xb4] sm:$0xf]
        %v251 = vld [vmem:[%s213 + $0xb8] sm:$0xf]
        %v252 = vld [vmem:[%s1] sm:$0x3]
        %v253 = vld [vmem:[%s213] sm:$0xf]
        %v254 = vld [vmem:[%s213 + $0x4] sm:$0xf]
        %v255 = vld [vmem:[%s213 + $0x8] sm:$0x1]
        %v256 = vld [vmem:[%s213 + $0xc] sm:$0xf]
        %v257 = vld [vmem:[%s213 + $0x10] sm:$0xf]
        %v258 = vld [vmem:[%s213 + $0x14] sm:$0x1]
        %v259 = vld [vmem:[%s213 + $0x18] sm:$0xf]
        %v260 = vld [vmem:[%s213 + $0x1c] sm:$0xf]
        %v261 = vld [vmem:[%s213 + $0x20] sm:$0x1]
        %v262 = vld [vmem:[%s213 + $0x24] sm:$0xf]
        %v263 = vld [vmem:[%s213 + $0x28] sm:$0xf]
        %v264 = vld [vmem:[%s213 + $0x2c] sm:$0x1]
        %v265 = vld [vmem:[%s213 + $0x30] sm:$0xf]
        %v266 = vld [vmem:[%s213 + $0x34] sm:$0xf]
        %v267 = vld [vmem:[%s213 + $0x38] sm:$0x1]
        %v268 = vld [vmem:[%s213 + $0x3c] sm:$0xf]
        %v269 = vld [vmem:[%s213 + $0x40] sm:$0xf]
        %v270 = vld [vmem:[%s213 + $0x44] sm:$0x1]
        %v271 = vld [vmem:[%s213 + $0x48] sm:$0xf]
        %v272 = vld [vmem:[%s213 + $0x4c] sm:$0xf]
        %v273 = vld [vmem:[%s213 + $0x50] sm:$0x1]
        %v274 = vld [vmem:[%s213 + $0x54] sm:$0xf]
        %v275 = vld [vmem:[%s213 + $0x58] sm:$0xf]
        %v276 = vld [vmem:[%s213 + $0x5c] sm:$0x1]
        %v277 = vld [vmem:[%s213 + $0x60] sm:$0xf]
        %v278 = vld [vmem:[%s213 + $0x64] sm:$0xf]
        %v279 = vld [vmem:[%s213 + $0x68] sm:$0x1]
        %v280 = vld [vmem:[%s213 + $0x6c] sm:$0xf]
        %v281 = vld [vmem:[%s213 + $0x70] sm:$0xf]
        %v282 = vld [vmem:[%s213 + $0x74] sm:$0x1]
        %v283 = vld [vmem:[%s213 + $0x78] sm:$0xf]
        %v284 = vld [vmem:[%s213 + $0x7c] sm:$0xf]
        %v285 = vld [vmem:[%s213 + $0x80] sm:$0x1]
        %v286 = vld [vmem:[%s213 + $0x84] sm:$0xf]
        %v287 = vld [vmem:[%s213 + $0x88] sm:$0xf]
        %v288 = vld [vmem:[%s213 + $0x8c] sm:$0x1]
        %v289 = vld [vmem:[%s213 + $0x90] sm:$0xf]
        %v290 = vld [vmem:[%s213 + $0x94] sm:$0xf]
        %v291 = vld [vmem:[%s213 + $0x98] sm:$0x1]
        %v292 = vld [vmem:[%s213 + $0x9c] sm:$0xf]
        %v293 = vld [vmem:[%s213 + $0xa0] sm:$0xf]
        %v294 = vld [vmem:[%s213 + $0xa4] sm:$0x1]
        %v295 = vld [vmem:[%s213 + $0xa8] sm:$0xf]
        %v296 = vld [vmem:[%s213 + $0xac] sm:$0xf]
        %v297 = vld [vmem:[%s213 + $0xb0] sm:$0x1]
        %v298 = vld [vmem:[%s213 + $0xb4] sm:$0xf]
        %v299 = vld [vmem:[%s213 + $0xb8] sm:$0xf]
        %v300 = vld [vmem:[%s213 + $0xbc] sm:$0x1]
        %s301 = scalar_lea.vmem %s1, 2
        %v302 = vld [vmem:[%s301] sm:$0x3]
        %vm303 = vsmask.f32 3328
        %vm304 = vsmask.f32 7440
        %vm305 = vmor %vm303, %vm304
        %v307 = vshrl.u32 %v253, 16
        %v309 = vrot.slane %v307, 4
        %v310 = vshll.u32 %v253, 16
        %v312 = vrot.slane %v310, 5
        %v313 = vor.u32 %v309, %v312
        %v314 = vrot.slane %v313, 4
        %v316 = vshll.u32 %v254, 16
        %v318 = vrot.slane %v316, 5
        %v319 = vsel %vm305, %v314, %v318
        %v320 = vshrl.u32 %v254, 16
        %v322 = vrot.slane %v320, 4
        %v323 = vor.u32 %v322, %v318
        %v324 = vrot.slane %v323, 4
        %v326 = vshll.u32 %v255, 16
        %v328 = vrot.slane %v326, 5
        %v329 = vsel %vm305, %v324, %v328
        %v331 = vshrl.u32 %v256, 16
        %v333 = vrot.slane %v331, 4
        %v334 = vshll.u32 %v256, 16
        %v336 = vrot.slane %v334, 5
        %v337 = vor.u32 %v333, %v336
        %v338 = vrot.slane %v337, 4
        %v340 = vshll.u32 %v257, 16
        %v342 = vrot.slane %v340, 5
        %v343 = vsel %vm305, %v338, %v342
        %v344 = vshrl.u32 %v257, 16
        %v346 = vrot.slane %v344, 4
        %v347 = vor.u32 %v346, %v342
        %v348 = vrot.slane %v347, 4
        %v350 = vshll.u32 %v258, 16
        %v352 = vrot.slane %v350, 5
        %v353 = vsel %vm305, %v348, %v352
        %v355 = vshrl.u32 %v259, 16
        %v357 = vrot.slane %v355, 4
        %v358 = vshll.u32 %v259, 16
        %v360 = vrot.slane %v358, 5
        %v361 = vor.u32 %v357, %v360
        %v362 = vrot.slane %v361, 4
        %v364 = vshll.u32 %v260, 16
        %v366 = vrot.slane %v364, 5
        %v367 = vsel %vm305, %v362, %v366
        %v368 = vshrl.u32 %v260, 16
        %v370 = vrot.slane %v368, 4
        %v371 = vor.u32 %v370, %v366
        %v372 = vrot.slane %v371, 4
        %v374 = vshll.u32 %v261, 16
        %v376 = vrot.slane %v374, 5
        %v377 = vsel %vm305, %v372, %v376
        %v379 = vshrl.u32 %v262, 16
        %v381 = vrot.slane %v379, 4
        %v382 = vshll.u32 %v262, 16
        %v384 = vrot.slane %v382, 5
        %v385 = vor.u32 %v381, %v384
        %v386 = vrot.slane %v385, 4
        %v388 = vshll.u32 %v263, 16
        %v390 = vrot.slane %v388, 5
        %v391 = vsel %vm305, %v386, %v390
        %v392 = vshrl.u32 %v263, 16
        %v394 = vrot.slane %v392, 4
        %v395 = vor.u32 %v394, %v390
        %v396 = vrot.slane %v395, 4
        %v398 = vshll.u32 %v264, 16
        %v400 = vrot.slane %v398, 5
        %v401 = vsel %vm305, %v396, %v400
        %v403 = vshrl.u32 %v265, 16
        %v405 = vrot.slane %v403, 4
        %v406 = vshll.u32 %v265, 16
        %v408 = vrot.slane %v406, 5
        %v409 = vor.u32 %v405, %v408
        %v410 = vrot.slane %v409, 4
        %v412 = vshll.u32 %v266, 16
        %v414 = vrot.slane %v412, 5
        %v415 = vsel %vm305, %v410, %v414
        %v416 = vshrl.u32 %v266, 16
        %v418 = vrot.slane %v416, 4
        %v419 = vor.u32 %v418, %v414
        %v420 = vrot.slane %v419, 4
        %v422 = vshll.u32 %v267, 16
        %v424 = vrot.slane %v422, 5
        %v425 = vsel %vm305, %v420, %v424
        %v427 = vshrl.u32 %v268, 16
        %v429 = vrot.slane %v427, 4
        %v430 = vshll.u32 %v268, 16
        %v432 = vrot.slane %v430, 5
        %v433 = vor.u32 %v429, %v432
        %v434 = vrot.slane %v433, 4
        %v436 = vshll.u32 %v269, 16
        %v438 = vrot.slane %v436, 5
        %v439 = vsel %vm305, %v434, %v438
        %v440 = vshrl.u32 %v269, 16
        %v442 = vrot.slane %v440, 4
        %v443 = vor.u32 %v442, %v438
        %v444 = vrot.slane %v443, 4
        %v446 = vshll.u32 %v270, 16
        %v448 = vrot.slane %v446, 5
        %v449 = vsel %vm305, %v444, %v448
        %v451 = vshrl.u32 %v271, 16
        %v453 = vrot.slane %v451, 4
        %v454 = vshll.u32 %v271, 16
        %v456 = vrot.slane %v454, 5
        %v457 = vor.u32 %v453, %v456
        %v458 = vrot.slane %v457, 4
        %v460 = vshll.u32 %v272, 16
        %v462 = vrot.slane %v460, 5
        %v463 = vsel %vm305, %v458, %v462
        %v464 = vshrl.u32 %v272, 16
        %v466 = vrot.slane %v464, 4
        %v467 = vor.u32 %v466, %v462
        %v468 = vrot.slane %v467, 4
        %v470 = vshll.u32 %v273, 16
        %v472 = vrot.slane %v470, 5
        %v473 = vsel %vm305, %v468, %v472
        %v475 = vshrl.u32 %v274, 16
        %v477 = vrot.slane %v475, 4
        %v478 = vshll.u32 %v274, 16
        %v480 = vrot.slane %v478, 5
        %v481 = vor.u32 %v477, %v480
        %v482 = vrot.slane %v481, 4
        %v484 = vshll.u32 %v275, 16
        %v486 = vrot.slane %v484, 5
        %v487 = vsel %vm305, %v482, %v486
        %v488 = vshrl.u32 %v275, 16
        %v490 = vrot.slane %v488, 4
        %v491 = vor.u32 %v490, %v486
        %v492 = vrot.slane %v491, 4
        %v494 = vshll.u32 %v276, 16
        %v496 = vrot.slane %v494, 5
        %v497 = vsel %vm305, %v492, %v496
        %v499 = vshrl.u32 %v277, 16
        %v501 = vrot.slane %v499, 4
        %v502 = vshll.u32 %v277, 16
        %v504 = vrot.slane %v502, 5
        %v505 = vor.u32 %v501, %v504
        %v506 = vrot.slane %v505, 4
        %v508 = vshll.u32 %v278, 16
        %v510 = vrot.slane %v508, 5
        %v511 = vsel %vm305, %v506, %v510
        %v512 = vshrl.u32 %v278, 16
        %v514 = vrot.slane %v512, 4
        %v515 = vor.u32 %v514, %v510
        %v516 = vrot.slane %v515, 4
        %v518 = vshll.u32 %v279, 16
        %v520 = vrot.slane %v518, 5
        %v521 = vsel %vm305, %v516, %v520
        %v523 = vshrl.u32 %v280, 16
        %v525 = vrot.slane %v523, 4
        %v526 = vshll.u32 %v280, 16
        %v528 = vrot.slane %v526, 5
        %v529 = vor.u32 %v525, %v528
        %v530 = vrot.slane %v529, 4
        %v532 = vshll.u32 %v281, 16
        %v534 = vrot.slane %v532, 5
        %v535 = vsel %vm305, %v530, %v534
        %v536 = vshrl.u32 %v281, 16
        %v538 = vrot.slane %v536, 4
        %v539 = vor.u32 %v538, %v534
        %v540 = vrot.slane %v539, 4
        %v542 = vshll.u32 %v282, 16
        %v544 = vrot.slane %v542, 5
        %v545 = vsel %vm305, %v540, %v544
        %v547 = vshrl.u32 %v283, 16
        %v549 = vrot.slane %v547, 4
        %v550 = vshll.u32 %v283, 16
        %v552 = vrot.slane %v550, 5
        %v553 = vor.u32 %v549, %v552
        %v554 = vrot.slane %v553, 4
        %v556 = vshll.u32 %v284, 16
        %v558 = vrot.slane %v556, 5
        %v559 = vsel %vm305, %v554, %v558
        %v560 = vshrl.u32 %v284, 16
        %v562 = vrot.slane %v560, 4
        %v563 = vor.u32 %v562, %v558
        %v564 = vrot.slane %v563, 4
        %v566 = vshll.u32 %v285, 16
        %v568 = vrot.slane %v566, 5
        %v569 = vsel %vm305, %v564, %v568
        %v571 = vshrl.u32 %v286, 16
        %v573 = vrot.slane %v571, 4
        %v574 = vshll.u32 %v286, 16
        %v576 = vrot.slane %v574, 5
        %v577 = vor.u32 %v573, %v576
        %v578 = vrot.slane %v577, 4
        %v580 = vshll.u32 %v287, 16
        %v582 = vrot.slane %v580, 5
        %v583 = vsel %vm305, %v578, %v582
        %v584 = vshrl.u32 %v287, 16
        %v586 = vrot.slane %v584, 4
        %v587 = vor.u32 %v586, %v582
        %v588 = vrot.slane %v587, 4
        %v590 = vshll.u32 %v288, 16
        %v592 = vrot.slane %v590, 5
        %v593 = vsel %vm305, %v588, %v592
        %v595 = vshrl.u32 %v289, 16
        %v597 = vrot.slane %v595, 4
        %v598 = vshll.u32 %v289, 16
        %v600 = vrot.slane %v598, 5
        %v601 = vor.u32 %v597, %v600
        %v602 = vrot.slane %v601, 4
        %v604 = vshll.u32 %v290, 16
        %v606 = vrot.slane %v604, 5
        %v607 = vsel %vm305, %v602, %v606
        %v608 = vshrl.u32 %v290, 16
        %v610 = vrot.slane %v608, 4
        %v611 = vor.u32 %v610, %v606
        %v612 = vrot.slane %v611, 4
        %v614 = vshll.u32 %v291, 16
        %v616 = vrot.slane %v614, 5
        %v617 = vsel %vm305, %v612, %v616
        %v619 = vshrl.u32 %v292, 16
        %v621 = vrot.slane %v619, 4
        %v622 = vshll.u32 %v292, 16
        %v624 = vrot.slane %v622, 5
        %v625 = vor.u32 %v621, %v624
        %v626 = vrot.slane %v625, 4
        %v628 = vshll.u32 %v293, 16
        %v630 = vrot.slane %v628, 5
        %v631 = vsel %vm305, %v626, %v630
        %v632 = vshrl.u32 %v293, 16
        %v634 = vrot.slane %v632, 4
        %v635 = vor.u32 %v634, %v630
        %v636 = vrot.slane %v635, 4
        %v638 = vshll.u32 %v294, 16
        %v640 = vrot.slane %v638, 5
        %v641 = vsel %vm305, %v636, %v640
        %v643 = vshrl.u32 %v295, 16
        %v645 = vrot.slane %v643, 4
        %v646 = vshll.u32 %v295, 16
        %v648 = vrot.slane %v646, 5
        %v649 = vor.u32 %v645, %v648
        %v650 = vrot.slane %v649, 4
        %v652 = vshll.u32 %v296, 16
        %v654 = vrot.slane %v652, 5
        %v655 = vsel %vm305, %v650, %v654
        %v656 = vshrl.u32 %v296, 16
        %v658 = vrot.slane %v656, 4
        %v659 = vor.u32 %v658, %v654
        %v660 = vrot.slane %v659, 4
        %v662 = vshll.u32 %v297, 16
        %v664 = vrot.slane %v662, 5
        %v665 = vsel %vm305, %v660, %v664
        %v667 = vshrl.u32 %v298, 16
        %v669 = vrot.slane %v667, 4
        %v670 = vshll.u32 %v298, 16
        %v672 = vrot.slane %v670, 5
        %v673 = vor.u32 %v669, %v672
        %v674 = vrot.slane %v673, 4
        %v676 = vshll.u32 %v299, 16
        %v678 = vrot.slane %v676, 5
        %v679 = vsel %vm305, %v674, %v678
        %v680 = vshrl.u32 %v299, 16
        %v682 = vrot.slane %v680, 4
        %v683 = vor.u32 %v682, %v678
        %v684 = vrot.slane %v683, 4
        %v686 = vshll.u32 %v300, 16
        %v688 = vrot.slane %v686, 5
        %v689 = vsel %vm305, %v684, %v688
        %v690 = vunpack.c.l.b16 %v319
        %v691 = vunpack.c.l.b16 %v329
        %v692 = vunpack.c.l.b16 %v343
        %v693 = vunpack.c.l.b16 %v353
        %v694 = vunpack.c.l.b16 %v367
        %v695 = vunpack.c.l.b16 %v377
        %v696 = vunpack.c.l.b16 %v391
        %v697 = vunpack.c.l.b16 %v401
        %v698 = vunpack.c.l.b16 %v415
        %v699 = vunpack.c.l.b16 %v425
        %v700 = vunpack.c.l.b16 %v439
        %v701 = vunpack.c.l.b16 %v449
        %v702 = vunpack.c.l.b16 %v463
        %v703 = vunpack.c.l.b16 %v473
        %v704 = vunpack.c.l.b16 %v487
        %v705 = vunpack.c.l.b16 %v497
        %v706 = vunpack.c.l.b16 %v511
        %v707 = vunpack.c.l.b16 %v521
        %v708 = vunpack.c.l.b16 %v535
        %v709 = vunpack.c.l.b16 %v545
        %v710 = vunpack.c.l.b16 %v559
        %v711 = vunpack.c.l.b16 %v569
        %v712 = vunpack.c.l.b16 %v583
        %v713 = vunpack.c.l.b16 %v593
        %v714 = vunpack.c.l.b16 %v607
        %v715 = vunpack.c.l.b16 %v617
        %v716 = vunpack.c.l.b16 %v631
        %v717 = vunpack.c.l.b16 %v641
        %v718 = vunpack.c.l.b16 %v655
        %v719 = vunpack.c.l.b16 %v665
        %v720 = vunpack.c.l.b16 %v679
        %v721 = vunpack.c.l.b16 %v689
        %v722 = vpack.c.b16 %v691, %v690
        %v723 = vpack.c.b16 %v693, %v692
        %v724 = vpack.c.b16 %v695, %v694
        %v725 = vpack.c.b16 %v697, %v696
        %v726 = vpack.c.b16 %v699, %v698
        %v727 = vpack.c.b16 %v701, %v700
        %v728 = vpack.c.b16 %v703, %v702
        %v729 = vpack.c.b16 %v705, %v704
        %v730 = vpack.c.b16 %v707, %v706
        %v731 = vpack.c.b16 %v709, %v708
        %v732 = vpack.c.b16 %v711, %v710
        %v733 = vpack.c.b16 %v713, %v712
        %v734 = vpack.c.b16 %v715, %v714
        %v735 = vpack.c.b16 %v717, %v716
        %v736 = vpack.c.b16 %v719, %v718
        %v737 = vpack.c.b16 %v721, %v720
        %vm738 = vcmask 31744
        %v740 = vsel %vm738, %v722, 0
        %v743 = vsel %vm738, %v723, 0
        %v746 = vsel %vm738, %v724, 0
        %v749 = vsel %vm738, %v725, 0
        %v752 = vsel %vm738, %v726, 0
        %v755 = vsel %vm738, %v727, 0
        %v758 = vsel %vm738, %v728, 0
        %v761 = vsel %vm738, %v729, 0
        %v764 = vsel %vm738, %v730, 0
        %v767 = vsel %vm738, %v731, 0
        %v770 = vsel %vm738, %v732, 0
        %v773 = vsel %vm738, %v733, 0
        %v776 = vsel %vm738, %v734, 0
        %v779 = vsel %vm738, %v735, 0
        %v782 = vsel %vm738, %v736, 0
        %v785 = vsel %vm738, %v737, 0
        %vm787 = vcmask 1041408
        %v789 = vsel %vm787, %v302, 0
        %791 = vmatpush.bf16.msra.mxu0 0
        %792 = vmatpush.bf16.msra.mxu0 0
        %793 = vmatpush.bf16.msra.mxu0 0
        %794 = vmatpush.bf16.msra.mxu0 0
        %795 = vmatpush.bf16.msra.mxu0 0
        %796 = vmatpush.bf16.msra.mxu0 0
        %797 = vmatpush.bf16.msra.mxu0 0
        %798 = vmatpush.bf16.msra.mxu0 %v789
        %799 = vmatmul.bf16.gmra.mxu0 %v740
        %v800 = vpop.f32.mrf.mxu0
        %v801 = vadd.f32 0.0, %v800
        %v802 = vpop.f32.mrf.mxu0
        %v803 = vadd.f32 0.0, %v802
        %804 = vmatmul.bf16.gmra.mxu0 %v743
        %v805 = vpop.f32.mrf.mxu0
        %v806 = vadd.f32 0.0, %v805
        %v807 = vpop.f32.mrf.mxu0
        %v808 = vadd.f32 0.0, %v807
        %809 = vmatmul.bf16.gmra.mxu0 %v746
        %v810 = vpop.f32.mrf.mxu0
        %v811 = vadd.f32 0.0, %v810
        %v812 = vpop.f32.mrf.mxu0
        %v813 = vadd.f32 0.0, %v812
        %814 = vmatmul.bf16.gmra.mxu0 %v749
        %v815 = vpop.f32.mrf.mxu0
        %v816 = vadd.f32 0.0, %v815
        %v817 = vpop.f32.mrf.mxu0
        %v818 = vadd.f32 0.0, %v817
        %819 = vmatmul.bf16.gmra.mxu0 %v752
        %v820 = vpop.f32.mrf.mxu0
        %v821 = vadd.f32 0.0, %v820
        %v822 = vpop.f32.mrf.mxu0
        %v823 = vadd.f32 0.0, %v822
        %824 = vmatmul.bf16.gmra.mxu0 %v755
        %v825 = vpop.f32.mrf.mxu0
        %v826 = vadd.f32 0.0, %v825
        %v827 = vpop.f32.mrf.mxu0
        %v828 = vadd.f32 0.0, %v827
        %829 = vmatmul.bf16.gmra.mxu0 %v758
        %v830 = vpop.f32.mrf.mxu0
        %v831 = vadd.f32 0.0, %v830
        %v832 = vpop.f32.mrf.mxu0
        %v833 = vadd.f32 0.0, %v832
        %834 = vmatmul.bf16.gmra.mxu0 %v761
        %v835 = vpop.f32.mrf.mxu0
        %v836 = vadd.f32 0.0, %v835
        %v837 = vpop.f32.mrf.mxu0
        %v838 = vadd.f32 0.0, %v837
        %839 = vmatmul.bf16.gmra.mxu0 %v764
        %v840 = vpop.f32.mrf.mxu0
        %v841 = vadd.f32 0.0, %v840
        %v842 = vpop.f32.mrf.mxu0
        %v843 = vadd.f32 0.0, %v842
        %844 = vmatmul.bf16.gmra.mxu0 %v767
        %v845 = vpop.f32.mrf.mxu0
        %v846 = vadd.f32 0.0, %v845
        %v847 = vpop.f32.mrf.mxu0
        %v848 = vadd.f32 0.0, %v847
        %849 = vmatmul.bf16.gmra.mxu0 %v770
        %v850 = vpop.f32.mrf.mxu0
        %v851 = vadd.f32 0.0, %v850
        %v852 = vpop.f32.mrf.mxu0
        %v853 = vadd.f32 0.0, %v852
        %854 = vmatmul.bf16.gmra.mxu0 %v773
        %v855 = vpop.f32.mrf.mxu0
        %v856 = vadd.f32 0.0, %v855
        %v857 = vpop.f32.mrf.mxu0
        %v858 = vadd.f32 0.0, %v857
        %859 = vmatmul.bf16.gmra.mxu0 %v776
        %v860 = vpop.f32.mrf.mxu0
        %v861 = vadd.f32 0.0, %v860
        %v862 = vpop.f32.mrf.mxu0
        %v863 = vadd.f32 0.0, %v862
        %864 = vmatmul.bf16.gmra.mxu0 %v779
        %v865 = vpop.f32.mrf.mxu0
        %v866 = vadd.f32 0.0, %v865
        %v867 = vpop.f32.mrf.mxu0
        %v868 = vadd.f32 0.0, %v867
        %869 = vmatmul.bf16.gmra.mxu0 %v782
        %v870 = vpop.f32.mrf.mxu0
        %v871 = vadd.f32 0.0, %v870
        %v872 = vpop.f32.mrf.mxu0
        %v873 = vadd.f32 0.0, %v872
        %874 = vmatmul.bf16.gmra.mxu0 %v785
        %v875 = vpop.f32.mrf.mxu0
        %v876 = vadd.f32 0.0, %v875
        %v877 = vpop.f32.mrf.mxu0
        %v878 = vadd.f32 0.0, %v877
        %879 = vdwg.mxu0
        %v912 = vunpack.c.l.b16 %v220
        %v913 = vunpack.c.l.b16 %v221
        %v914 = vunpack.c.l.b16 %v222
        %v915 = vunpack.c.l.b16 %v223
        %v916 = vunpack.c.l.b16 %v224
        %v917 = vunpack.c.l.b16 %v225
        %v918 = vunpack.c.l.b16 %v226
        %v919 = vunpack.c.l.b16 %v227
        %v920 = vunpack.c.l.b16 %v228
        %v921 = vunpack.c.l.b16 %v229
        %v922 = vunpack.c.l.b16 %v230
        %v923 = vunpack.c.l.b16 %v231
        %v924 = vunpack.c.l.b16 %v232
        %v925 = vunpack.c.l.b16 %v233
        %v926 = vunpack.c.l.b16 %v234
        %v927 = vunpack.c.l.b16 %v235
        %v928 = vunpack.c.l.b16 %v236
        %v929 = vunpack.c.l.b16 %v237
        %v930 = vunpack.c.l.b16 %v238
        %v931 = vunpack.c.l.b16 %v239
        %v932 = vunpack.c.l.b16 %v240
        %v933 = vunpack.c.l.b16 %v241
        %v934 = vunpack.c.l.b16 %v242
        %v935 = vunpack.c.l.b16 %v243
        %v936 = vunpack.c.l.b16 %v244
        %v937 = vunpack.c.l.b16 %v245
        %v938 = vunpack.c.l.b16 %v246
        %v939 = vunpack.c.l.b16 %v247
        %v940 = vunpack.c.l.b16 %v248
        %v941 = vunpack.c.l.b16 %v249
        %v942 = vunpack.c.l.b16 %v250
        %v943 = vunpack.c.l.b16 %v251
        %v944 = vpack.c.b16 %v913, %v912
        %v945 = vpack.c.b16 %v915, %v914
        %v946 = vpack.c.b16 %v917, %v916
        %v947 = vpack.c.b16 %v919, %v918
        %v948 = vpack.c.b16 %v921, %v920
        %v949 = vpack.c.b16 %v923, %v922
        %v950 = vpack.c.b16 %v925, %v924
        %v951 = vpack.c.b16 %v927, %v926
        %v952 = vpack.c.b16 %v929, %v928
        %v953 = vpack.c.b16 %v931, %v930
        %v954 = vpack.c.b16 %v933, %v932
        %v955 = vpack.c.b16 %v935, %v934
        %v956 = vpack.c.b16 %v937, %v936
        %v957 = vpack.c.b16 %v939, %v938
        %v958 = vpack.c.b16 %v941, %v940
        %v959 = vpack.c.b16 %v943, %v942
        %v961 = vsel %vm738, %v944, 0
        %v964 = vsel %vm738, %v945, 0
        %v967 = vsel %vm738, %v946, 0
        %v970 = vsel %vm738, %v947, 0
        %v973 = vsel %vm738, %v948, 0
        %v976 = vsel %vm738, %v949, 0
        %v979 = vsel %vm738, %v950, 0
        %v982 = vsel %vm738, %v951, 0
        %v985 = vsel %vm738, %v952, 0
        %v988 = vsel %vm738, %v953, 0
        %v991 = vsel %vm738, %v954, 0
        %v994 = vsel %vm738, %v955, 0
        %v997 = vsel %vm738, %v956, 0
        %v1000 = vsel %vm738, %v957, 0
        %v1003 = vsel %vm738, %v958, 0
        %v1006 = vsel %vm738, %v959, 0
        %v1009 = vsel %vm787, %v252, 0
        %1011 = vmatpush.bf16.msra.mxu0 0
        %1012 = vmatpush.bf16.msra.mxu0 0
        %1013 = vmatpush.bf16.msra.mxu0 0
        %1014 = vmatpush.bf16.msra.mxu0 0
        %1015 = vmatpush.bf16.msra.mxu0 0
        %1016 = vmatpush.bf16.msra.mxu0 0
        %1017 = vmatpush.bf16.msra.mxu0 0
        %1018 = vmatpush.bf16.msra.mxu0 %v1009
        %1019 = vmatmul.bf16.gmra.mxu0 %v961
        %v1020 = vpop.f32.mrf.mxu0
        %v1021 = vadd.f32 %v801, %v1020
        %v1022 = vpop.f32.mrf.mxu0
        %v1023 = vadd.f32 %v803, %v1022
        %1024 = vmatmul.bf16.gmra.mxu0 %v964
        %v1025 = vpop.f32.mrf.mxu0
        %v1026 = vadd.f32 %v806, %v1025
        %v1027 = vpop.f32.mrf.mxu0
        %v1028 = vadd.f32 %v808, %v1027
        %1029 = vmatmul.bf16.gmra.mxu0 %v967
        %v1030 = vpop.f32.mrf.mxu0
        %v1031 = vadd.f32 %v811, %v1030
        %v1032 = vpop.f32.mrf.mxu0
        %v1033 = vadd.f32 %v813, %v1032
        %1034 = vmatmul.bf16.gmra.mxu0 %v970
        %v1035 = vpop.f32.mrf.mxu0
        %v1036 = vadd.f32 %v816, %v1035
        %v1037 = vpop.f32.mrf.mxu0
        %v1038 = vadd.f32 %v818, %v1037
        %1039 = vmatmul.bf16.gmra.mxu0 %v973
        %v1040 = vpop.f32.mrf.mxu0
        %v1041 = vadd.f32 %v821, %v1040
        %v1042 = vpop.f32.mrf.mxu0
        %v1043 = vadd.f32 %v823, %v1042
        %1044 = vmatmul.bf16.gmra.mxu0 %v976
        %v1045 = vpop.f32.mrf.mxu0
        %v1046 = vadd.f32 %v826, %v1045
        %v1047 = vpop.f32.mrf.mxu0
        %v1048 = vadd.f32 %v828, %v1047
        %1049 = vmatmul.bf16.gmra.mxu0 %v979
        %v1050 = vpop.f32.mrf.mxu0
        %v1051 = vadd.f32 %v831, %v1050
        %v1052 = vpop.f32.mrf.mxu0
        %v1053 = vadd.f32 %v833, %v1052
        %1054 = vmatmul.bf16.gmra.mxu0 %v982
        %v1055 = vpop.f32.mrf.mxu0
        %v1056 = vadd.f32 %v836, %v1055
        %v1057 = vpop.f32.mrf.mxu0
        %v1058 = vadd.f32 %v838, %v1057
        %1059 = vmatmul.bf16.gmra.mxu0 %v985
        %v1060 = vpop.f32.mrf.mxu0
        %v1061 = vadd.f32 %v841, %v1060
        %v1062 = vpop.f32.mrf.mxu0
        %v1063 = vadd.f32 %v843, %v1062
        %1064 = vmatmul.bf16.gmra.mxu0 %v988
        %v1065 = vpop.f32.mrf.mxu0
        %v1066 = vadd.f32 %v846, %v1065
        %v1067 = vpop.f32.mrf.mxu0
        %v1068 = vadd.f32 %v848, %v1067
        %1069 = vmatmul.bf16.gmra.mxu0 %v991
        %v1070 = vpop.f32.mrf.mxu0
        %v1071 = vadd.f32 %v851, %v1070
        %v1072 = vpop.f32.mrf.mxu0
        %v1073 = vadd.f32 %v853, %v1072
        %1074 = vmatmul.bf16.gmra.mxu0 %v994
        %v1075 = vpop.f32.mrf.mxu0
        %v1076 = vadd.f32 %v856, %v1075
        %v1077 = vpop.f32.mrf.mxu0
        %v1078 = vadd.f32 %v858, %v1077
        %1079 = vmatmul.bf16.gmra.mxu0 %v997
        %v1080 = vpop.f32.mrf.mxu0
        %v1081 = vadd.f32 %v861, %v1080
        %v1082 = vpop.f32.mrf.mxu0
        %v1083 = vadd.f32 %v863, %v1082
        %1084 = vmatmul.bf16.gmra.mxu0 %v1000
        %v1085 = vpop.f32.mrf.mxu0
        %v1086 = vadd.f32 %v866, %v1085
        %v1087 = vpop.f32.mrf.mxu0
        %v1088 = vadd.f32 %v868, %v1087
        %1089 = vmatmul.bf16.gmra.mxu0 %v1003
        %v1090 = vpop.f32.mrf.mxu0
        %v1091 = vadd.f32 %v871, %v1090
        %v1092 = vpop.f32.mrf.mxu0
        %v1093 = vadd.f32 %v873, %v1092
        %1094 = vmatmul.bf16.gmra.mxu0 %v1006
        %v1095 = vpop.f32.mrf.mxu0
        %v1096 = vadd.f32 %v876, %v1095
        %v1097 = vpop.f32.mrf.mxu0
        %v1098 = vadd.f32 %v878, %v1097
        %1099 = vdwg.mxu0
        %v1100 = vld [vmem:[%s213] sm:$0xe]
        %v1101 = vld [vmem:[%s213 + $0x4] sm:$0xf]
        %v1102 = vld [vmem:[%s213 + $0x8] sm:$0x1]
        %v1103 = vld [vmem:[%s213 + $0xc] sm:$0xe]
        %v1104 = vld [vmem:[%s213 + $0x10] sm:$0xf]
        %v1105 = vld [vmem:[%s213 + $0x14] sm:$0x1]
        %v1106 = vld [vmem:[%s213 + $0x18] sm:$0xe]
        %v1107 = vld [vmem:[%s213 + $0x1c] sm:$0xf]
        %v1108 = vld [vmem:[%s213 + $0x20] sm:$0x1]
        %v1109 = vld [vmem:[%s213 + $0x24] sm:$0xe]
        %v1110 = vld [vmem:[%s213 + $0x28] sm:$0xf]
        %v1111 = vld [vmem:[%s213 + $0x2c] sm:$0x1]
        %v1112 = vld [vmem:[%s213 + $0x30] sm:$0xe]
        %v1113 = vld [vmem:[%s213 + $0x34] sm:$0xf]
        %v1114 = vld [vmem:[%s213 + $0x38] sm:$0x1]
        %v1115 = vld [vmem:[%s213 + $0x3c] sm:$0xe]
        %v1116 = vld [vmem:[%s213 + $0x40] sm:$0xf]
        %v1117 = vld [vmem:[%s213 + $0x44] sm:$0x1]
        %v1118 = vld [vmem:[%s213 + $0x48] sm:$0xe]
        %v1119 = vld [vmem:[%s213 + $0x4c] sm:$0xf]
        %v1120 = vld [vmem:[%s213 + $0x50] sm:$0x1]
        %v1121 = vld [vmem:[%s213 + $0x54] sm:$0xe]
        %v1122 = vld [vmem:[%s213 + $0x58] sm:$0xf]
        %v1123 = vld [vmem:[%s213 + $0x5c] sm:$0x1]
        %v1124 = vld [vmem:[%s213 + $0x60] sm:$0xe]
        %v1125 = vld [vmem:[%s213 + $0x64] sm:$0xf]
        %v1126 = vld [vmem:[%s213 + $0x68] sm:$0x1]
        %v1127 = vld [vmem:[%s213 + $0x6c] sm:$0xe]
        %v1128 = vld [vmem:[%s213 + $0x70] sm:$0xf]
        %v1129 = vld [vmem:[%s213 + $0x74] sm:$0x1]
        %v1130 = vld [vmem:[%s213 + $0x78] sm:$0xe]
        %v1131 = vld [vmem:[%s213 + $0x7c] sm:$0xf]
        %v1132 = vld [vmem:[%s213 + $0x80] sm:$0x1]
        %v1133 = vld [vmem:[%s213 + $0x84] sm:$0xe]
        %v1134 = vld [vmem:[%s213 + $0x88] sm:$0xf]
        %v1135 = vld [vmem:[%s213 + $0x8c] sm:$0x1]
        %v1136 = vld [vmem:[%s213 + $0x90] sm:$0xe]
        %v1137 = vld [vmem:[%s213 + $0x94] sm:$0xf]
        %v1138 = vld [vmem:[%s213 + $0x98] sm:$0x1]
        %v1139 = vld [vmem:[%s213 + $0x9c] sm:$0xe]
        %v1140 = vld [vmem:[%s213 + $0xa0] sm:$0xf]
        %v1141 = vld [vmem:[%s213 + $0xa4] sm:$0x1]
        %v1142 = vld [vmem:[%s213 + $0xa8] sm:$0xe]
        %v1143 = vld [vmem:[%s213 + $0xac] sm:$0xf]
        %v1144 = vld [vmem:[%s213 + $0xb0] sm:$0x1]
        %v1145 = vld [vmem:[%s213 + $0xb4] sm:$0xe]
        %v1146 = vld [vmem:[%s213 + $0xb8] sm:$0xf]
        %v1147 = vld [vmem:[%s213 + $0xbc] sm:$0x1]
        %s1148 = scalar_lea.vmem %s1, 4
        %v1149 = vld [vmem:[%s1148] sm:$0x3]
        %vm1198 = vcmask 1042432
        %vm1199 = vcmask 1046532
        %vm1200 = vmor %vm1198, %vm1199
        %v1201 = vrot.slane %v1100, 5
        %v1202 = vrot.slane %v1201, 4
        %v1203 = vrot.slane %v1101, 5
        %v1204 = vsel %vm1200, %v1202, %v1203
        %v1205 = vrot.slane %v1203, 4
        %v1206 = vrot.slane %v1102, 5
        %v1207 = vsel %vm1200, %v1205, %v1206
        %v1208 = vrot.slane %v1103, 5
        %v1209 = vrot.slane %v1208, 4
        %v1210 = vrot.slane %v1104, 5
        %v1211 = vsel %vm1200, %v1209, %v1210
        %v1212 = vrot.slane %v1210, 4
        %v1213 = vrot.slane %v1105, 5
        %v1214 = vsel %vm1200, %v1212, %v1213
        %v1215 = vrot.slane %v1106, 5
        %v1216 = vrot.slane %v1215, 4
        %v1217 = vrot.slane %v1107, 5
        %v1218 = vsel %vm1200, %v1216, %v1217
        %v1219 = vrot.slane %v1217, 4
        %v1220 = vrot.slane %v1108, 5
        %v1221 = vsel %vm1200, %v1219, %v1220
        %v1222 = vrot.slane %v1109, 5
        %v1223 = vrot.slane %v1222, 4
        %v1224 = vrot.slane %v1110, 5
        %v1225 = vsel %vm1200, %v1223, %v1224
        %v1226 = vrot.slane %v1224, 4
        %v1227 = vrot.slane %v1111, 5
        %v1228 = vsel %vm1200, %v1226, %v1227
        %v1229 = vrot.slane %v1112, 5
        %v1230 = vrot.slane %v1229, 4
        %v1231 = vrot.slane %v1113, 5
        %v1232 = vsel %vm1200, %v1230, %v1231
        %v1233 = vrot.slane %v1231, 4
        %v1234 = vrot.slane %v1114, 5
        %v1235 = vsel %vm1200, %v1233, %v1234
        %v1236 = vrot.slane %v1115, 5
        %v1237 = vrot.slane %v1236, 4
        %v1238 = vrot.slane %v1116, 5
        %v1239 = vsel %vm1200, %v1237, %v1238
        %v1240 = vrot.slane %v1238, 4
        %v1241 = vrot.slane %v1117, 5
        %v1242 = vsel %vm1200, %v1240, %v1241
        %v1243 = vrot.slane %v1118, 5
        %v1244 = vrot.slane %v1243, 4
        %v1245 = vrot.slane %v1119, 5
        %v1246 = vsel %vm1200, %v1244, %v1245
        %v1247 = vrot.slane %v1245, 4
        %v1248 = vrot.slane %v1120, 5
        %v1249 = vsel %vm1200, %v1247, %v1248
        %v1250 = vrot.slane %v1121, 5
        %v1251 = vrot.slane %v1250, 4
        %v1252 = vrot.slane %v1122, 5
        %v1253 = vsel %vm1200, %v1251, %v1252
        %v1254 = vrot.slane %v1252, 4
        %v1255 = vrot.slane %v1123, 5
        %v1256 = vsel %vm1200, %v1254, %v1255
        %v1257 = vrot.slane %v1124, 5
        %v1258 = vrot.slane %v1257, 4
        %v1259 = vrot.slane %v1125, 5
        %v1260 = vsel %vm1200, %v1258, %v1259
        %v1261 = vrot.slane %v1259, 4
        %v1262 = vrot.slane %v1126, 5
        %v1263 = vsel %vm1200, %v1261, %v1262
        %v1264 = vrot.slane %v1127, 5
        %v1265 = vrot.slane %v1264, 4
        %v1266 = vrot.slane %v1128, 5
        %v1267 = vsel %vm1200, %v1265, %v1266
        %v1268 = vrot.slane %v1266, 4
        %v1269 = vrot.slane %v1129, 5
        %v1270 = vsel %vm1200, %v1268, %v1269
        %v1271 = vrot.slane %v1130, 5
        %v1272 = vrot.slane %v1271, 4
        %v1273 = vrot.slane %v1131, 5
        %v1274 = vsel %vm1200, %v1272, %v1273
        %v1275 = vrot.slane %v1273, 4
        %v1276 = vrot.slane %v1132, 5
        %v1277 = vsel %vm1200, %v1275, %v1276
        %v1278 = vrot.slane %v1133, 5
        %v1279 = vrot.slane %v1278, 4
        %v1280 = vrot.slane %v1134, 5
        %v1281 = vsel %vm1200, %v1279, %v1280
        %v1282 = vrot.slane %v1280, 4
        %v1283 = vrot.slane %v1135, 5
        %v1284 = vsel %vm1200, %v1282, %v1283
        %v1285 = vrot.slane %v1136, 5
        %v1286 = vrot.slane %v1285, 4
        %v1287 = vrot.slane %v1137, 5
        %v1288 = vsel %vm1200, %v1286, %v1287
        %v1289 = vrot.slane %v1287, 4
        %v1290 = vrot.slane %v1138, 5
        %v1291 = vsel %vm1200, %v1289, %v1290
        %v1292 = vrot.slane %v1139, 5
        %v1293 = vrot.slane %v1292, 4
        %v1294 = vrot.slane %v1140, 5
        %v1295 = vsel %vm1200, %v1293, %v1294
        %v1296 = vrot.slane %v1294, 4
        %v1297 = vrot.slane %v1141, 5
        %v1298 = vsel %vm1200, %v1296, %v1297
        %v1299 = vrot.slane %v1142, 5
        %v1300 = vrot.slane %v1299, 4
        %v1301 = vrot.slane %v1143, 5
        %v1302 = vsel %vm1200, %v1300, %v1301
        %v1303 = vrot.slane %v1301, 4
        %v1304 = vrot.slane %v1144, 5
        %v1305 = vsel %vm1200, %v1303, %v1304
        %v1306 = vrot.slane %v1145, 5
        %v1307 = vrot.slane %v1306, 4
        %v1308 = vrot.slane %v1146, 5
        %v1309 = vsel %vm1200, %v1307, %v1308
        %v1310 = vrot.slane %v1308, 4
        %v1311 = vrot.slane %v1147, 5
        %v1312 = vsel %vm1200, %v1310, %v1311
        %v1313 = vunpack.c.l.b16 %v1204
        %v1314 = vunpack.c.l.b16 %v1207
        %v1315 = vunpack.c.l.b16 %v1211
        %v1316 = vunpack.c.l.b16 %v1214
        %v1317 = vunpack.c.l.b16 %v1218
        %v1318 = vunpack.c.l.b16 %v1221
        %v1319 = vunpack.c.l.b16 %v1225
        %v1320 = vunpack.c.l.b16 %v1228
        %v1321 = vunpack.c.l.b16 %v1232
        %v1322 = vunpack.c.l.b16 %v1235
        %v1323 = vunpack.c.l.b16 %v1239
        %v1324 = vunpack.c.l.b16 %v1242
        %v1325 = vunpack.c.l.b16 %v1246
        %v1326 = vunpack.c.l.b16 %v1249
        %v1327 = vunpack.c.l.b16 %v1253
        %v1328 = vunpack.c.l.b16 %v1256
        %v1329 = vunpack.c.l.b16 %v1260
        %v1330 = vunpack.c.l.b16 %v1263
        %v1331 = vunpack.c.l.b16 %v1267
        %v1332 = vunpack.c.l.b16 %v1270
        %v1333 = vunpack.c.l.b16 %v1274
        %v1334 = vunpack.c.l.b16 %v1277
        %v1335 = vunpack.c.l.b16 %v1281
        %v1336 = vunpack.c.l.b16 %v1284
        %v1337 = vunpack.c.l.b16 %v1288
        %v1338 = vunpack.c.l.b16 %v1291
        %v1339 = vunpack.c.l.b16 %v1295
        %v1340 = vunpack.c.l.b16 %v1298
        %v1341 = vunpack.c.l.b16 %v1302
        %v1342 = vunpack.c.l.b16 %v1305
        %v1343 = vunpack.c.l.b16 %v1309
        %v1344 = vunpack.c.l.b16 %v1312
        %v1345 = vpack.c.b16 %v1314, %v1313
        %v1346 = vpack.c.b16 %v1316, %v1315
        %v1347 = vpack.c.b16 %v1318, %v1317
        %v1348 = vpack.c.b16 %v1320, %v1319
        %v1349 = vpack.c.b16 %v1322, %v1321
        %v1350 = vpack.c.b16 %v1324, %v1323
        %v1351 = vpack.c.b16 %v1326, %v1325
        %v1352 = vpack.c.b16 %v1328, %v1327
        %v1353 = vpack.c.b16 %v1330, %v1329
        %v1354 = vpack.c.b16 %v1332, %v1331
        %v1355 = vpack.c.b16 %v1334, %v1333
        %v1356 = vpack.c.b16 %v1336, %v1335
        %v1357 = vpack.c.b16 %v1338, %v1337
        %v1358 = vpack.c.b16 %v1340, %v1339
        %v1359 = vpack.c.b16 %v1342, %v1341
        %v1360 = vpack.c.b16 %v1344, %v1343
        %v1362 = vsel %vm738, %v1345, 0
        %v1365 = vsel %vm738, %v1346, 0
        %v1368 = vsel %vm738, %v1347, 0
        %v1371 = vsel %vm738, %v1348, 0
        %v1374 = vsel %vm738, %v1349, 0
        %v1377 = vsel %vm738, %v1350, 0
        %v1380 = vsel %vm738, %v1351, 0
        %v1383 = vsel %vm738, %v1352, 0
        %v1386 = vsel %vm738, %v1353, 0
        %v1389 = vsel %vm738, %v1354, 0
        %v1392 = vsel %vm738, %v1355, 0
        %v1395 = vsel %vm738, %v1356, 0
        %v1398 = vsel %vm738, %v1357, 0
        %v1401 = vsel %vm738, %v1358, 0
        %v1404 = vsel %vm738, %v1359, 0
        %v1407 = vsel %vm738, %v1360, 0
        %v1410 = vsel %vm787, %v1149, 0
        %1412 = vmatpush.bf16.msra.mxu0 0
        %1413 = vmatpush.bf16.msra.mxu0 0
        %1414 = vmatpush.bf16.msra.mxu0 0
        %1415 = vmatpush.bf16.msra.mxu0 0
        %1416 = vmatpush.bf16.msra.mxu0 0
        %1417 = vmatpush.bf16.msra.mxu0 0
        %1418 = vmatpush.bf16.msra.mxu0 0
        %1419 = vmatpush.bf16.msra.mxu0 %v1410
        %1420 = vmatmul.bf16.gmra.mxu0 %v1362
        %v1421 = vpop.f32.mrf.mxu0
        %v1422 = vadd.f32 0.0, %v1421
        %v1423 = vpop.f32.mrf.mxu0
        %v1424 = vadd.f32 0.0, %v1423
        %1425 = vmatmul.bf16.gmra.mxu0 %v1365
        %v1426 = vpop.f32.mrf.mxu0
        %v1427 = vadd.f32 0.0, %v1426
        %v1428 = vpop.f32.mrf.mxu0
        %v1429 = vadd.f32 0.0, %v1428
        %1430 = vmatmul.bf16.gmra.mxu0 %v1368
        %v1431 = vpop.f32.mrf.mxu0
        %v1432 = vadd.f32 0.0, %v1431
        %v1433 = vpop.f32.mrf.mxu0
        %v1434 = vadd.f32 0.0, %v1433
        %1435 = vmatmul.bf16.gmra.mxu0 %v1371
        %v1436 = vpop.f32.mrf.mxu0
        %v1437 = vadd.f32 0.0, %v1436
        %v1438 = vpop.f32.mrf.mxu0
        %v1439 = vadd.f32 0.0, %v1438
        %1440 = vmatmul.bf16.gmra.mxu0 %v1374
        %v1441 = vpop.f32.mrf.mxu0
        %v1442 = vadd.f32 0.0, %v1441
        %v1443 = vpop.f32.mrf.mxu0
        %v1444 = vadd.f32 0.0, %v1443
        %1445 = vmatmul.bf16.gmra.mxu0 %v1377
        %v1446 = vpop.f32.mrf.mxu0
        %v1447 = vadd.f32 0.0, %v1446
        %v1448 = vpop.f32.mrf.mxu0
        %v1449 = vadd.f32 0.0, %v1448
        %1450 = vmatmul.bf16.gmra.mxu0 %v1380
        %v1451 = vpop.f32.mrf.mxu0
        %v1452 = vadd.f32 0.0, %v1451
        %v1453 = vpop.f32.mrf.mxu0
        %v1454 = vadd.f32 0.0, %v1453
        %1455 = vmatmul.bf16.gmra.mxu0 %v1383
        %v1456 = vpop.f32.mrf.mxu0
        %v1457 = vadd.f32 0.0, %v1456
        %v1458 = vpop.f32.mrf.mxu0
        %v1459 = vadd.f32 0.0, %v1458
        %1460 = vmatmul.bf16.gmra.mxu0 %v1386
        %v1461 = vpop.f32.mrf.mxu0
        %v1462 = vadd.f32 0.0, %v1461
        %v1463 = vpop.f32.mrf.mxu0
        %v1464 = vadd.f32 0.0, %v1463
        %1465 = vmatmul.bf16.gmra.mxu0 %v1389
        %v1466 = vpop.f32.mrf.mxu0
        %v1467 = vadd.f32 0.0, %v1466
        %v1468 = vpop.f32.mrf.mxu0
        %v1469 = vadd.f32 0.0, %v1468
        %1470 = vmatmul.bf16.gmra.mxu0 %v1392
        %v1471 = vpop.f32.mrf.mxu0
        %v1472 = vadd.f32 0.0, %v1471
        %v1473 = vpop.f32.mrf.mxu0
        %v1474 = vadd.f32 0.0, %v1473
        %1475 = vmatmul.bf16.gmra.mxu0 %v1395
        %v1476 = vpop.f32.mrf.mxu0
        %v1477 = vadd.f32 0.0, %v1476
        %v1478 = vpop.f32.mrf.mxu0
        %v1479 = vadd.f32 0.0, %v1478
        %1480 = vmatmul.bf16.gmra.mxu0 %v1398
        %v1481 = vpop.f32.mrf.mxu0
        %v1482 = vadd.f32 0.0, %v1481
        %v1483 = vpop.f32.mrf.mxu0
        %v1484 = vadd.f32 0.0, %v1483
        %1485 = vmatmul.bf16.gmra.mxu0 %v1401
        %v1486 = vpop.f32.mrf.mxu0
        %v1487 = vadd.f32 0.0, %v1486
        %v1488 = vpop.f32.mrf.mxu0
        %v1489 = vadd.f32 0.0, %v1488
        %1490 = vmatmul.bf16.gmra.mxu0 %v1404
        %v1491 = vpop.f32.mrf.mxu0
        %v1492 = vadd.f32 0.0, %v1491
        %v1493 = vpop.f32.mrf.mxu0
        %v1494 = vadd.f32 0.0, %v1493
        %1495 = vmatmul.bf16.gmra.mxu0 %v1407
        %v1496 = vpop.f32.mrf.mxu0
        %v1497 = vadd.f32 0.0, %v1496
        %v1498 = vpop.f32.mrf.mxu0
        %v1499 = vadd.f32 0.0, %v1498
        %1500 = vdwg.mxu0
        %v1501 = vadd.f32 %v1021, %v1422
        %v1502 = vadd.f32 %v1023, %v1424
        %v1503 = vadd.f32 %v1026, %v1427
        %v1504 = vadd.f32 %v1028, %v1429
        %v1505 = vadd.f32 %v1031, %v1432
        %v1506 = vadd.f32 %v1033, %v1434
        %v1507 = vadd.f32 %v1036, %v1437
        %v1508 = vadd.f32 %v1038, %v1439
        %v1509 = vadd.f32 %v1041, %v1442
        %v1510 = vadd.f32 %v1043, %v1444
        %v1511 = vadd.f32 %v1046, %v1447
        %v1512 = vadd.f32 %v1048, %v1449
        %v1513 = vadd.f32 %v1051, %v1452
        %v1514 = vadd.f32 %v1053, %v1454
        %v1515 = vadd.f32 %v1056, %v1457
        %v1516 = vadd.f32 %v1058, %v1459
        %v1517 = vadd.f32 %v1061, %v1462
        %v1518 = vadd.f32 %v1063, %v1464
        %v1519 = vadd.f32 %v1066, %v1467
        %v1520 = vadd.f32 %v1068, %v1469
        %v1521 = vadd.f32 %v1071, %v1472
        %v1522 = vadd.f32 %v1073, %v1474
        %v1523 = vadd.f32 %v1076, %v1477
        %v1524 = vadd.f32 %v1078, %v1479
        %v1525 = vadd.f32 %v1081, %v1482
        %v1526 = vadd.f32 %v1083, %v1484
        %v1527 = vadd.f32 %v1086, %v1487
        %v1528 = vadd.f32 %v1088, %v1489
        %v1529 = vadd.f32 %v1091, %v1492
        %v1530 = vadd.f32 %v1093, %v1494
        %v1531 = vadd.f32 %v1096, %v1497
        %v1532 = vadd.f32 %v1098, %v1499
        %s1533 = scalar_lea.vmem %s213, 12
        %v1534 = vld [vmem:[%s1533] sm:$0xf]
        %v1535 = vld [vmem:[%s1533 + $0x4] sm:$0xf]
        %v1536 = vld [vmem:[%s1533 + $0xc] sm:$0xf]
        %v1537 = vld [vmem:[%s1533 + $0x10] sm:$0xf]
        %v1538 = vld [vmem:[%s1533 + $0x18] sm:$0xf]
        %v1539 = vld [vmem:[%s1533 + $0x1c] sm:$0xf]
        %v1540 = vld [vmem:[%s1533 + $0x24] sm:$0xf]
        %v1541 = vld [vmem:[%s1533 + $0x28] sm:$0xf]
        %v1542 = vld [vmem:[%s1533 + $0x30] sm:$0xf]
        %v1543 = vld [vmem:[%s1533 + $0x34] sm:$0xf]
        %v1544 = vld [vmem:[%s1533 + $0x3c] sm:$0xf]
        %v1545 = vld [vmem:[%s1533 + $0x40] sm:$0xf]
        %v1546 = vld [vmem:[%s1533 + $0x48] sm:$0xf]
        %v1547 = vld [vmem:[%s1533 + $0x4c] sm:$0xf]
        %v1548 = vld [vmem:[%s1533 + $0x54] sm:$0xf]
        %v1549 = vld [vmem:[%s1533 + $0x58] sm:$0xf]
        %v1550 = vld [vmem:[%s1533 + $0x60] sm:$0xf]
        %v1551 = vld [vmem:[%s1533 + $0x64] sm:$0xf]
        %v1552 = vld [vmem:[%s1533 + $0x6c] sm:$0xf]
        %v1553 = vld [vmem:[%s1533 + $0x70] sm:$0xf]
        %v1554 = vld [vmem:[%s1533 + $0x78] sm:$0xf]
        %v1555 = vld [vmem:[%s1533 + $0x7c] sm:$0xf]
        %v1556 = vld [vmem:[%s1533 + $0x84] sm:$0xf]
        %v1557 = vld [vmem:[%s1533 + $0x88] sm:$0xf]
        %v1558 = vld [vmem:[%s1533 + $0x90] sm:$0xf]
        %v1559 = vld [vmem:[%s1533 + $0x94] sm:$0xf]
        %v1560 = vld [vmem:[%s1533 + $0x9c] sm:$0xf]
        %v1561 = vld [vmem:[%s1533 + $0xa0] sm:$0xf]
        %v1562 = vld [vmem:[%s1533 + $0xa8] sm:$0xf]
        %v1563 = vld [vmem:[%s1533 + $0xac] sm:$0xf]
        %v1564 = vld [vmem:[%s1533 + $0xb4] sm:$0xf]
        %v1565 = vld [vmem:[%s1533 + $0xb8] sm:$0xf]
        %s1566 = scalar_lea.vmem %s1, 6
        %v1567 = vld [vmem:[%s1566] sm:$0x3]
        %v1600 = vunpack.c.l.b16 %v1534
        %v1601 = vunpack.c.l.b16 %v1535
        %v1602 = vunpack.c.l.b16 %v1536
        %v1603 = vunpack.c.l.b16 %v1537
        %v1604 = vunpack.c.l.b16 %v1538
        %v1605 = vunpack.c.l.b16 %v1539
        %v1606 = vunpack.c.l.b16 %v1540
        %v1607 = vunpack.c.l.b16 %v1541
        %v1608 = vunpack.c.l.b16 %v1542
        %v1609 = vunpack.c.l.b16 %v1543
        %v1610 = vunpack.c.l.b16 %v1544
        %v1611 = vunpack.c.l.b16 %v1545
        %v1612 = vunpack.c.l.b16 %v1546
        %v1613 = vunpack.c.l.b16 %v1547
        %v1614 = vunpack.c.l.b16 %v1548
        %v1615 = vunpack.c.l.b16 %v1549
        %v1616 = vunpack.c.l.b16 %v1550
        %v1617 = vunpack.c.l.b16 %v1551
        %v1618 = vunpack.c.l.b16 %v1552
        %v1619 = vunpack.c.l.b16 %v1553
        %v1620 = vunpack.c.l.b16 %v1554
        %v1621 = vunpack.c.l.b16 %v1555
        %v1622 = vunpack.c.l.b16 %v1556
        %v1623 = vunpack.c.l.b16 %v1557
        %v1624 = vunpack.c.l.b16 %v1558
        %v1625 = vunpack.c.l.b16 %v1559
        %v1626 = vunpack.c.l.b16 %v1560
        %v1627 = vunpack.c.l.b16 %v1561
        %v1628 = vunpack.c.l.b16 %v1562
        %v1629 = vunpack.c.l.b16 %v1563
        %v1630 = vunpack.c.l.b16 %v1564
        %v1631 = vunpack.c.l.b16 %v1565
        %v1632 = vpack.c.b16 %v1601, %v1600
        %v1633 = vpack.c.b16 %v1603, %v1602
        %v1634 = vpack.c.b16 %v1605, %v1604
        %v1635 = vpack.c.b16 %v1607, %v1606
        %v1636 = vpack.c.b16 %v1609, %v1608
        %v1637 = vpack.c.b16 %v1611, %v1610
        %v1638 = vpack.c.b16 %v1613, %v1612
        %v1639 = vpack.c.b16 %v1615, %v1614
        %v1640 = vpack.c.b16 %v1617, %v1616
        %v1641 = vpack.c.b16 %v1619, %v1618
        %v1642 = vpack.c.b16 %v1621, %v1620
        %v1643 = vpack.c.b16 %v1623, %v1622
        %v1644 = vpack.c.b16 %v1625, %v1624
        %v1645 = vpack.c.b16 %v1627, %v1626
        %v1646 = vpack.c.b16 %v1629, %v1628
        %v1647 = vpack.c.b16 %v1631, %v1630
        %v1649 = vsel %vm738, %v1632, 0
        %v1652 = vsel %vm738, %v1633, 0
        %v1655 = vsel %vm738, %v1634, 0
        %v1658 = vsel %vm738, %v1635, 0
        %v1661 = vsel %vm738, %v1636, 0
        %v1664 = vsel %vm738, %v1637, 0
        %v1667 = vsel %vm738, %v1638, 0
        %v1670 = vsel %vm738, %v1639, 0
        %v1673 = vsel %vm738, %v1640, 0
        %v1676 = vsel %vm738, %v1641, 0
        %v1679 = vsel %vm738, %v1642, 0
        %v1682 = vsel %vm738, %v1643, 0
        %v1685 = vsel %vm738, %v1644, 0
        %v1688 = vsel %vm738, %v1645, 0
        %v1691 = vsel %vm738, %v1646, 0
        %v1694 = vsel %vm738, %v1647, 0
        %v1697 = vsel %vm787, %v1567, 0
        %1699 = vmatpush.bf16.msra.mxu0 0
        %1700 = vmatpush.bf16.msra.mxu0 0
        %1701 = vmatpush.bf16.msra.mxu0 0
        %1702 = vmatpush.bf16.msra.mxu0 0
        %1703 = vmatpush.bf16.msra.mxu0 0
        %1704 = vmatpush.bf16.msra.mxu0 0
        %1705 = vmatpush.bf16.msra.mxu0 0
        %1706 = vmatpush.bf16.msra.mxu0 %v1697
        %1707 = vmatmul.bf16.gmra.mxu0 %v1649
        %v1708 = vpop.f32.mrf.mxu0
        %v1709 = vadd.f32 0.0, %v1708
        %v1710 = vpop.f32.mrf.mxu0
        %v1711 = vadd.f32 0.0, %v1710
        %1712 = vmatmul.bf16.gmra.mxu0 %v1652
        %v1713 = vpop.f32.mrf.mxu0
        %v1714 = vadd.f32 0.0, %v1713
        %v1715 = vpop.f32.mrf.mxu0
        %v1716 = vadd.f32 0.0, %v1715
        %1717 = vmatmul.bf16.gmra.mxu0 %v1655
        %v1718 = vpop.f32.mrf.mxu0
        %v1719 = vadd.f32 0.0, %v1718
        %v1720 = vpop.f32.mrf.mxu0
        %v1721 = vadd.f32 0.0, %v1720
        %1722 = vmatmul.bf16.gmra.mxu0 %v1658
        %v1723 = vpop.f32.mrf.mxu0
        %v1724 = vadd.f32 0.0, %v1723
        %v1725 = vpop.f32.mrf.mxu0
        %v1726 = vadd.f32 0.0, %v1725
        %1727 = vmatmul.bf16.gmra.mxu0 %v1661
        %v1728 = vpop.f32.mrf.mxu0
        %v1729 = vadd.f32 0.0, %v1728
        %v1730 = vpop.f32.mrf.mxu0
        %v1731 = vadd.f32 0.0, %v1730
        %1732 = vmatmul.bf16.gmra.mxu0 %v1664
        %v1733 = vpop.f32.mrf.mxu0
        %v1734 = vadd.f32 0.0, %v1733
        %v1735 = vpop.f32.mrf.mxu0
        %v1736 = vadd.f32 0.0, %v1735
        %1737 = vmatmul.bf16.gmra.mxu0 %v1667
        %v1738 = vpop.f32.mrf.mxu0
        %v1739 = vadd.f32 0.0, %v1738
        %v1740 = vpop.f32.mrf.mxu0
        %v1741 = vadd.f32 0.0, %v1740
        %1742 = vmatmul.bf16.gmra.mxu0 %v1670
        %v1743 = vpop.f32.mrf.mxu0
        %v1744 = vadd.f32 0.0, %v1743
        %v1745 = vpop.f32.mrf.mxu0
        %v1746 = vadd.f32 0.0, %v1745
        %1747 = vmatmul.bf16.gmra.mxu0 %v1673
        %v1748 = vpop.f32.mrf.mxu0
        %v1749 = vadd.f32 0.0, %v1748
        %v1750 = vpop.f32.mrf.mxu0
        %v1751 = vadd.f32 0.0, %v1750
        %1752 = vmatmul.bf16.gmra.mxu0 %v1676
        %v1753 = vpop.f32.mrf.mxu0
        %v1754 = vadd.f32 0.0, %v1753
        %v1755 = vpop.f32.mrf.mxu0
        %v1756 = vadd.f32 0.0, %v1755
        %1757 = vmatmul.bf16.gmra.mxu0 %v1679
        %v1758 = vpop.f32.mrf.mxu0
        %v1759 = vadd.f32 0.0, %v1758
        %v1760 = vpop.f32.mrf.mxu0
        %v1761 = vadd.f32 0.0, %v1760
        %1762 = vmatmul.bf16.gmra.mxu0 %v1682
        %v1763 = vpop.f32.mrf.mxu0
        %v1764 = vadd.f32 0.0, %v1763
        %v1765 = vpop.f32.mrf.mxu0
        %v1766 = vadd.f32 0.0, %v1765
        %1767 = vmatmul.bf16.gmra.mxu0 %v1685
        %v1768 = vpop.f32.mrf.mxu0
        %v1769 = vadd.f32 0.0, %v1768
        %v1770 = vpop.f32.mrf.mxu0
        %v1771 = vadd.f32 0.0, %v1770
        %1772 = vmatmul.bf16.gmra.mxu0 %v1688
        %v1773 = vpop.f32.mrf.mxu0
        %v1774 = vadd.f32 0.0, %v1773
        %v1775 = vpop.f32.mrf.mxu0
        %v1776 = vadd.f32 0.0, %v1775
        %1777 = vmatmul.bf16.gmra.mxu0 %v1691
        %v1778 = vpop.f32.mrf.mxu0
        %v1779 = vadd.f32 0.0, %v1778
        %v1780 = vpop.f32.mrf.mxu0
        %v1781 = vadd.f32 0.0, %v1780
        %1782 = vmatmul.bf16.gmra.mxu0 %v1694
        %v1783 = vpop.f32.mrf.mxu0
        %v1784 = vadd.f32 0.0, %v1783
        %v1785 = vpop.f32.mrf.mxu0
        %v1786 = vadd.f32 0.0, %v1785
        %1787 = vdwg.mxu0
        %v1788 = vadd.f32 %v1501, %v1709
        %v1789 = vadd.f32 %v1502, %v1711
        %v1790 = vadd.f32 %v1503, %v1714
        %v1791 = vadd.f32 %v1504, %v1716
        %v1792 = vadd.f32 %v1505, %v1719
        %v1793 = vadd.f32 %v1506, %v1721
        %v1794 = vadd.f32 %v1507, %v1724
        %v1795 = vadd.f32 %v1508, %v1726
        %v1796 = vadd.f32 %v1509, %v1729
        %v1797 = vadd.f32 %v1510, %v1731
        %v1798 = vadd.f32 %v1511, %v1734
        %v1799 = vadd.f32 %v1512, %v1736
        %v1800 = vadd.f32 %v1513, %v1739
        %v1801 = vadd.f32 %v1514, %v1741
        %v1802 = vadd.f32 %v1515, %v1744
        %v1803 = vadd.f32 %v1516, %v1746
        %v1804 = vadd.f32 %v1517, %v1749
        %v1805 = vadd.f32 %v1518, %v1751
        %v1806 = vadd.f32 %v1519, %v1754
        %v1807 = vadd.f32 %v1520, %v1756
        %v1808 = vadd.f32 %v1521, %v1759
        %v1809 = vadd.f32 %v1522, %v1761
        %v1810 = vadd.f32 %v1523, %v1764
        %v1811 = vadd.f32 %v1524, %v1766
        %v1812 = vadd.f32 %v1525, %v1769
        %v1813 = vadd.f32 %v1526, %v1771
        %v1814 = vadd.f32 %v1527, %v1774
        %v1815 = vadd.f32 %v1528, %v1776
        %v1816 = vadd.f32 %v1529, %v1779
        %v1817 = vadd.f32 %v1530, %v1781
        %v1818 = vadd.f32 %v1531, %v1784
        %v1819 = vadd.f32 %v1532, %v1786
        %v1820 = vld [vmem:[%s1533] sm:$0xf]
        %v1821 = vld [vmem:[%s1533 + $0x4] sm:$0xf]
        %v1822 = vld [vmem:[%s1533 + $0x8] sm:$0x1]
        %v1823 = vld [vmem:[%s1533 + $0xc] sm:$0xf]
        %v1824 = vld [vmem:[%s1533 + $0x10] sm:$0xf]
        %v1825 = vld [vmem:[%s1533 + $0x14] sm:$0x1]
        %v1826 = vld [vmem:[%s1533 + $0x18] sm:$0xf]
        %v1827 = vld [vmem:[%s1533 + $0x1c] sm:$0xf]
        %v1828 = vld [vmem:[%s1533 + $0x20] sm:$0x1]
        %v1829 = vld [vmem:[%s1533 + $0x24] sm:$0xf]
        %v1830 = vld [vmem:[%s1533 + $0x28] sm:$0xf]
        %v1831 = vld [vmem:[%s1533 + $0x2c] sm:$0x1]
        %v1832 = vld [vmem:[%s1533 + $0x30] sm:$0xf]
        %v1833 = vld [vmem:[%s1533 + $0x34] sm:$0xf]
        %v1834 = vld [vmem:[%s1533 + $0x38] sm:$0x1]
        %v1835 = vld [vmem:[%s1533 + $0x3c] sm:$0xf]
        %v1836 = vld [vmem:[%s1533 + $0x40] sm:$0xf]
        %v1837 = vld [vmem:[%s1533 + $0x44] sm:$0x1]
        %v1838 = vld [vmem:[%s1533 + $0x48] sm:$0xf]
        %v1839 = vld [vmem:[%s1533 + $0x4c] sm:$0xf]
        %v1840 = vld [vmem:[%s1533 + $0x50] sm:$0x1]
        %v1841 = vld [vmem:[%s1533 + $0x54] sm:$0xf]
        %v1842 = vld [vmem:[%s1533 + $0x58] sm:$0xf]
        %v1843 = vld [vmem:[%s1533 + $0x5c] sm:$0x1]
        %v1844 = vld [vmem:[%s1533 + $0x60] sm:$0xf]
        %v1845 = vld [vmem:[%s1533 + $0x64] sm:$0xf]
        %v1846 = vld [vmem:[%s1533 + $0x68] sm:$0x1]
        %v1847 = vld [vmem:[%s1533 + $0x6c] sm:$0xf]
        %v1848 = vld [vmem:[%s1533 + $0x70] sm:$0xf]
        %v1849 = vld [vmem:[%s1533 + $0x74] sm:$0x1]
        %v1850 = vld [vmem:[%s1533 + $0x78] sm:$0xf]
        %v1851 = vld [vmem:[%s1533 + $0x7c] sm:$0xf]
        %v1852 = vld [vmem:[%s1533 + $0x80] sm:$0x1]
        %v1853 = vld [vmem:[%s1533 + $0x84] sm:$0xf]
        %v1854 = vld [vmem:[%s1533 + $0x88] sm:$0xf]
        %v1855 = vld [vmem:[%s1533 + $0x8c] sm:$0x1]
        %v1856 = vld [vmem:[%s1533 + $0x90] sm:$0xf]
        %v1857 = vld [vmem:[%s1533 + $0x94] sm:$0xf]
        %v1858 = vld [vmem:[%s1533 + $0x98] sm:$0x1]
        %v1859 = vld [vmem:[%s1533 + $0x9c] sm:$0xf]
        %v1860 = vld [vmem:[%s1533 + $0xa0] sm:$0xf]
        %v1861 = vld [vmem:[%s1533 + $0xa4] sm:$0x1]
        %v1862 = vld [vmem:[%s1533 + $0xa8] sm:$0xf]
        %v1863 = vld [vmem:[%s1533 + $0xac] sm:$0xf]
        %v1864 = vld [vmem:[%s1533 + $0xb0] sm:$0x1]
        %v1865 = vld [vmem:[%s1533 + $0xb4] sm:$0xf]
        %v1866 = vld [vmem:[%s1533 + $0xb8] sm:$0xf]
        %v1867 = vld [vmem:[%s1533 + $0xbc] sm:$0x1]
        %s1868 = scalar_lea.vmem %s1, 8
        %v1869 = vld [vmem:[%s1868] sm:$0x3]
        %v1871 = vshrl.u32 %v1820, 16
        %v1873 = vrot.slane %v1871, 4
        %v1874 = vshll.u32 %v1820, 16
        %v1876 = vrot.slane %v1874, 5
        %v1877 = vor.u32 %v1873, %v1876
        %v1878 = vrot.slane %v1877, 4
        %v1880 = vshll.u32 %v1821, 16
        %v1882 = vrot.slane %v1880, 5
        %v1883 = vsel %vm305, %v1878, %v1882
        %v1884 = vshrl.u32 %v1821, 16
        %v1886 = vrot.slane %v1884, 4
        %v1887 = vor.u32 %v1886, %v1882
        %v1888 = vrot.slane %v1887, 4
        %v1890 = vshll.u32 %v1822, 16
        %v1892 = vrot.slane %v1890, 5
        %v1893 = vsel %vm305, %v1888, %v1892
        %v1895 = vshrl.u32 %v1823, 16
        %v1897 = vrot.slane %v1895, 4
        %v1898 = vshll.u32 %v1823, 16
        %v1900 = vrot.slane %v1898, 5
        %v1901 = vor.u32 %v1897, %v1900
        %v1902 = vrot.slane %v1901, 4
        %v1904 = vshll.u32 %v1824, 16
        %v1906 = vrot.slane %v1904, 5
        %v1907 = vsel %vm305, %v1902, %v1906
        %v1908 = vshrl.u32 %v1824, 16
        %v1910 = vrot.slane %v1908, 4
        %v1911 = vor.u32 %v1910, %v1906
        %v1912 = vrot.slane %v1911, 4
        %v1914 = vshll.u32 %v1825, 16
        %v1916 = vrot.slane %v1914, 5
        %v1917 = vsel %vm305, %v1912, %v1916
        %v1919 = vshrl.u32 %v1826, 16
        %v1921 = vrot.slane %v1919, 4
        %v1922 = vshll.u32 %v1826, 16
        %v1924 = vrot.slane %v1922, 5
        %v1925 = vor.u32 %v1921, %v1924
        %v1926 = vrot.slane %v1925, 4
        %v1928 = vshll.u32 %v1827, 16
        %v1930 = vrot.slane %v1928, 5
        %v1931 = vsel %vm305, %v1926, %v1930
        %v1932 = vshrl.u32 %v1827, 16
        %v1934 = vrot.slane %v1932, 4
        %v1935 = vor.u32 %v1934, %v1930
        %v1936 = vrot.slane %v1935, 4
        %v1938 = vshll.u32 %v1828, 16
        %v1940 = vrot.slane %v1938, 5
        %v1941 = vsel %vm305, %v1936, %v1940
        %v1943 = vshrl.u32 %v1829, 16
        %v1945 = vrot.slane %v1943, 4
        %v1946 = vshll.u32 %v1829, 16
        %v1948 = vrot.slane %v1946, 5
        %v1949 = vor.u32 %v1945, %v1948
        %v1950 = vrot.slane %v1949, 4
        %v1952 = vshll.u32 %v1830, 16
        %v1954 = vrot.slane %v1952, 5
        %v1955 = vsel %vm305, %v1950, %v1954
        %v1956 = vshrl.u32 %v1830, 16
        %v1958 = vrot.slane %v1956, 4
        %v1959 = vor.u32 %v1958, %v1954
        %v1960 = vrot.slane %v1959, 4
        %v1962 = vshll.u32 %v1831, 16
        %v1964 = vrot.slane %v1962, 5
        %v1965 = vsel %vm305, %v1960, %v1964
        %v1967 = vshrl.u32 %v1832, 16
        %v1969 = vrot.slane %v1967, 4
        %v1970 = vshll.u32 %v1832, 16
        %v1972 = vrot.slane %v1970, 5
        %v1973 = vor.u32 %v1969, %v1972
        %v1974 = vrot.slane %v1973, 4
        %v1976 = vshll.u32 %v1833, 16
        %v1978 = vrot.slane %v1976, 5
        %v1979 = vsel %vm305, %v1974, %v1978
        %v1980 = vshrl.u32 %v1833, 16
        %v1982 = vrot.slane %v1980, 4
        %v1983 = vor.u32 %v1982, %v1978
        %v1984 = vrot.slane %v1983, 4
        %v1986 = vshll.u32 %v1834, 16
        %v1988 = vrot.slane %v1986, 5
        %v1989 = vsel %vm305, %v1984, %v1988
        %v1991 = vshrl.u32 %v1835, 16
        %v1993 = vrot.slane %v1991, 4
        %v1994 = vshll.u32 %v1835, 16
        %v1996 = vrot.slane %v1994, 5
        %v1997 = vor.u32 %v1993, %v1996
        %v1998 = vrot.slane %v1997, 4
        %v2000 = vshll.u32 %v1836, 16
        %v2002 = vrot.slane %v2000, 5
        %v2003 = vsel %vm305, %v1998, %v2002
        %v2004 = vshrl.u32 %v1836, 16
        %v2006 = vrot.slane %v2004, 4
        %v2007 = vor.u32 %v2006, %v2002
        %v2008 = vrot.slane %v2007, 4
        %v2010 = vshll.u32 %v1837, 16
        %v2012 = vrot.slane %v2010, 5
        %v2013 = vsel %vm305, %v2008, %v2012
        %v2015 = vshrl.u32 %v1838, 16
        %v2017 = vrot.slane %v2015, 4
        %v2018 = vshll.u32 %v1838, 16
        %v2020 = vrot.slane %v2018, 5
        %v2021 = vor.u32 %v2017, %v2020
        %v2022 = vrot.slane %v2021, 4
        %v2024 = vshll.u32 %v1839, 16
        %v2026 = vrot.slane %v2024, 5
        %v2027 = vsel %vm305, %v2022, %v2026
        %v2028 = vshrl.u32 %v1839, 16
        %v2030 = vrot.slane %v2028, 4
        %v2031 = vor.u32 %v2030, %v2026
        %v2032 = vrot.slane %v2031, 4
        %v2034 = vshll.u32 %v1840, 16
        %v2036 = vrot.slane %v2034, 5
        %v2037 = vsel %vm305, %v2032, %v2036
        %v2039 = vshrl.u32 %v1841, 16
        %v2041 = vrot.slane %v2039, 4
        %v2042 = vshll.u32 %v1841, 16
        %v2044 = vrot.slane %v2042, 5
        %v2045 = vor.u32 %v2041, %v2044
        %v2046 = vrot.slane %v2045, 4
        %v2048 = vshll.u32 %v1842, 16
        %v2050 = vrot.slane %v2048, 5
        %v2051 = vsel %vm305, %v2046, %v2050
        %v2052 = vshrl.u32 %v1842, 16
        %v2054 = vrot.slane %v2052, 4
        %v2055 = vor.u32 %v2054, %v2050
        %v2056 = vrot.slane %v2055, 4
        %v2058 = vshll.u32 %v1843, 16
        %v2060 = vrot.slane %v2058, 5
        %v2061 = vsel %vm305, %v2056, %v2060
        %v2063 = vshrl.u32 %v1844, 16
        %v2065 = vrot.slane %v2063, 4
        %v2066 = vshll.u32 %v1844, 16
        %v2068 = vrot.slane %v2066, 5
        %v2069 = vor.u32 %v2065, %v2068
        %v2070 = vrot.slane %v2069, 4
        %v2072 = vshll.u32 %v1845, 16
        %v2074 = vrot.slane %v2072, 5
        %v2075 = vsel %vm305, %v2070, %v2074
        %v2076 = vshrl.u32 %v1845, 16
        %v2078 = vrot.slane %v2076, 4
        %v2079 = vor.u32 %v2078, %v2074
        %v2080 = vrot.slane %v2079, 4
        %v2082 = vshll.u32 %v1846, 16
        %v2084 = vrot.slane %v2082, 5
        %v2085 = vsel %vm305, %v2080, %v2084
        %v2087 = vshrl.u32 %v1847, 16
        %v2089 = vrot.slane %v2087, 4
        %v2090 = vshll.u32 %v1847, 16
        %v2092 = vrot.slane %v2090, 5
        %v2093 = vor.u32 %v2089, %v2092
        %v2094 = vrot.slane %v2093, 4
        %v2096 = vshll.u32 %v1848, 16
        %v2098 = vrot.slane %v2096, 5
        %v2099 = vsel %vm305, %v2094, %v2098
        %v2100 = vshrl.u32 %v1848, 16
        %v2102 = vrot.slane %v2100, 4
        %v2103 = vor.u32 %v2102, %v2098
        %v2104 = vrot.slane %v2103, 4
        %v2106 = vshll.u32 %v1849, 16
        %v2108 = vrot.slane %v2106, 5
        %v2109 = vsel %vm305, %v2104, %v2108
        %v2111 = vshrl.u32 %v1850, 16
        %v2113 = vrot.slane %v2111, 4
        %v2114 = vshll.u32 %v1850, 16
        %v2116 = vrot.slane %v2114, 5
        %v2117 = vor.u32 %v2113, %v2116
        %v2118 = vrot.slane %v2117, 4
        %v2120 = vshll.u32 %v1851, 16
        %v2122 = vrot.slane %v2120, 5
        %v2123 = vsel %vm305, %v2118, %v2122
        %v2124 = vshrl.u32 %v1851, 16
        %v2126 = vrot.slane %v2124, 4
        %v2127 = vor.u32 %v2126, %v2122
        %v2128 = vrot.slane %v2127, 4
        %v2130 = vshll.u32 %v1852, 16
        %v2132 = vrot.slane %v2130, 5
        %v2133 = vsel %vm305, %v2128, %v2132
        %v2135 = vshrl.u32 %v1853, 16
        %v2137 = vrot.slane %v2135, 4
        %v2138 = vshll.u32 %v1853, 16
        %v2140 = vrot.slane %v2138, 5
        %v2141 = vor.u32 %v2137, %v2140
        %v2142 = vrot.slane %v2141, 4
        %v2144 = vshll.u32 %v1854, 16
        %v2146 = vrot.slane %v2144, 5
        %v2147 = vsel %vm305, %v2142, %v2146
        %v2148 = vshrl.u32 %v1854, 16
        %v2150 = vrot.slane %v2148, 4
        %v2151 = vor.u32 %v2150, %v2146
        %v2152 = vrot.slane %v2151, 4
        %v2154 = vshll.u32 %v1855, 16
        %v2156 = vrot.slane %v2154, 5
        %v2157 = vsel %vm305, %v2152, %v2156
        %v2159 = vshrl.u32 %v1856, 16
        %v2161 = vrot.slane %v2159, 4
        %v2162 = vshll.u32 %v1856, 16
        %v2164 = vrot.slane %v2162, 5
        %v2165 = vor.u32 %v2161, %v2164
        %v2166 = vrot.slane %v2165, 4
        %v2168 = vshll.u32 %v1857, 16
        %v2170 = vrot.slane %v2168, 5
        %v2171 = vsel %vm305, %v2166, %v2170
        %v2172 = vshrl.u32 %v1857, 16
        %v2174 = vrot.slane %v2172, 4
        %v2175 = vor.u32 %v2174, %v2170
        %v2176 = vrot.slane %v2175, 4
        %v2178 = vshll.u32 %v1858, 16
        %v2180 = vrot.slane %v2178, 5
        %v2181 = vsel %vm305, %v2176, %v2180
        %v2183 = vshrl.u32 %v1859, 16
        %v2185 = vrot.slane %v2183, 4
        %v2186 = vshll.u32 %v1859, 16
        %v2188 = vrot.slane %v2186, 5
        %v2189 = vor.u32 %v2185, %v2188
        %v2190 = vrot.slane %v2189, 4
        %v2192 = vshll.u32 %v1860, 16
        %v2194 = vrot.slane %v2192, 5
        %v2195 = vsel %vm305, %v2190, %v2194
        %v2196 = vshrl.u32 %v1860, 16
        %v2198 = vrot.slane %v2196, 4
        %v2199 = vor.u32 %v2198, %v2194
        %v2200 = vrot.slane %v2199, 4
        %v2202 = vshll.u32 %v1861, 16
        %v2204 = vrot.slane %v2202, 5
        %v2205 = vsel %vm305, %v2200, %v2204
        %v2207 = vshrl.u32 %v1862, 16
        %v2209 = vrot.slane %v2207, 4
        %v2210 = vshll.u32 %v1862, 16
        %v2212 = vrot.slane %v2210, 5
        %v2213 = vor.u32 %v2209, %v2212
        %v2214 = vrot.slane %v2213, 4
        %v2216 = vshll.u32 %v1863, 16
        %v2218 = vrot.slane %v2216, 5
        %v2219 = vsel %vm305, %v2214, %v2218
        %v2220 = vshrl.u32 %v1863, 16
        %v2222 = vrot.slane %v2220, 4
        %v2223 = vor.u32 %v2222, %v2218
        %v2224 = vrot.slane %v2223, 4
        %v2226 = vshll.u32 %v1864, 16
        %v2228 = vrot.slane %v2226, 5
        %v2229 = vsel %vm305, %v2224, %v2228
        %v2231 = vshrl.u32 %v1865, 16
        %v2233 = vrot.slane %v2231, 4
        %v2234 = vshll.u32 %v1865, 16
        %v2236 = vrot.slane %v2234, 5
        %v2237 = vor.u32 %v2233, %v2236
        %v2238 = vrot.slane %v2237, 4
        %v2240 = vshll.u32 %v1866, 16
        %v2242 = vrot.slane %v2240, 5
        %v2243 = vsel %vm305, %v2238, %v2242
        %v2244 = vshrl.u32 %v1866, 16
        %v2246 = vrot.slane %v2244, 4
        %v2247 = vor.u32 %v2246, %v2242
        %v2248 = vrot.slane %v2247, 4
        %v2250 = vshll.u32 %v1867, 16
        %v2252 = vrot.slane %v2250, 5
        %v2253 = vsel %vm305, %v2248, %v2252
        %v2254 = vunpack.c.l.b16 %v1883
        %v2255 = vunpack.c.l.b16 %v1893
        %v2256 = vunpack.c.l.b16 %v1907
        %v2257 = vunpack.c.l.b16 %v1917
        %v2258 = vunpack.c.l.b16 %v1931
        %v2259 = vunpack.c.l.b16 %v1941
        %v2260 = vunpack.c.l.b16 %v1955
        %v2261 = vunpack.c.l.b16 %v1965
        %v2262 = vunpack.c.l.b16 %v1979
        %v2263 = vunpack.c.l.b16 %v1989
        %v2264 = vunpack.c.l.b16 %v2003
        %v2265 = vunpack.c.l.b16 %v2013
        %v2266 = vunpack.c.l.b16 %v2027
        %v2267 = vunpack.c.l.b16 %v2037
        %v2268 = vunpack.c.l.b16 %v2051
        %v2269 = vunpack.c.l.b16 %v2061
        %v2270 = vunpack.c.l.b16 %v2075
        %v2271 = vunpack.c.l.b16 %v2085
        %v2272 = vunpack.c.l.b16 %v2099
        %v2273 = vunpack.c.l.b16 %v2109
        %v2274 = vunpack.c.l.b16 %v2123
        %v2275 = vunpack.c.l.b16 %v2133
        %v2276 = vunpack.c.l.b16 %v2147
        %v2277 = vunpack.c.l.b16 %v2157
        %v2278 = vunpack.c.l.b16 %v2171
        %v2279 = vunpack.c.l.b16 %v2181
        %v2280 = vunpack.c.l.b16 %v2195
        %v2281 = vunpack.c.l.b16 %v2205
        %v2282 = vunpack.c.l.b16 %v2219
        %v2283 = vunpack.c.l.b16 %v2229
        %v2284 = vunpack.c.l.b16 %v2243
        %v2285 = vunpack.c.l.b16 %v2253
        %v2286 = vpack.c.b16 %v2255, %v2254
        %v2287 = vpack.c.b16 %v2257, %v2256
        %v2288 = vpack.c.b16 %v2259, %v2258
        %v2289 = vpack.c.b16 %v2261, %v2260
        %v2290 = vpack.c.b16 %v2263, %v2262
        %v2291 = vpack.c.b16 %v2265, %v2264
        %v2292 = vpack.c.b16 %v2267, %v2266
        %v2293 = vpack.c.b16 %v2269, %v2268
        %v2294 = vpack.c.b16 %v2271, %v2270
        %v2295 = vpack.c.b16 %v2273, %v2272
        %v2296 = vpack.c.b16 %v2275, %v2274
        %v2297 = vpack.c.b16 %v2277, %v2276
        %v2298 = vpack.c.b16 %v2279, %v2278
        %v2299 = vpack.c.b16 %v2281, %v2280
        %v2300 = vpack.c.b16 %v2283, %v2282
        %v2301 = vpack.c.b16 %v2285, %v2284
        %v2303 = vsel %vm738, %v2286, 0
        %v2306 = vsel %vm738, %v2287, 0
        %v2309 = vsel %vm738, %v2288, 0
        %v2312 = vsel %vm738, %v2289, 0
        %v2315 = vsel %vm738, %v2290, 0
        %v2318 = vsel %vm738, %v2291, 0
        %v2321 = vsel %vm738, %v2292, 0
        %v2324 = vsel %vm738, %v2293, 0
        %v2327 = vsel %vm738, %v2294, 0
        %v2330 = vsel %vm738, %v2295, 0
        %v2333 = vsel %vm738, %v2296, 0
        %v2336 = vsel %vm738, %v2297, 0
        %v2339 = vsel %vm738, %v2298, 0
        %v2342 = vsel %vm738, %v2299, 0
        %v2345 = vsel %vm738, %v2300, 0
        %v2348 = vsel %vm738, %v2301, 0
        %v2351 = vsel %vm787, %v1869, 0
        %2353 = vmatpush.bf16.msra.mxu0 0
        %2354 = vmatpush.bf16.msra.mxu0 0
        %2355 = vmatpush.bf16.msra.mxu0 0
        %2356 = vmatpush.bf16.msra.mxu0 0
        %2357 = vmatpush.bf16.msra.mxu0 0
        %2358 = vmatpush.bf16.msra.mxu0 0
        %2359 = vmatpush.bf16.msra.mxu0 0
        %2360 = vmatpush.bf16.msra.mxu0 %v2351
        %2361 = vmatmul.bf16.gmra.mxu0 %v2303
        %v2362 = vpop.f32.mrf.mxu0
        %v2363 = vadd.f32 0.0, %v2362
        %v2364 = vpop.f32.mrf.mxu0
        %v2365 = vadd.f32 0.0, %v2364
        %2366 = vmatmul.bf16.gmra.mxu0 %v2306
        %v2367 = vpop.f32.mrf.mxu0
        %v2368 = vadd.f32 0.0, %v2367
        %v2369 = vpop.f32.mrf.mxu0
        %v2370 = vadd.f32 0.0, %v2369
        %2371 = vmatmul.bf16.gmra.mxu0 %v2309
        %v2372 = vpop.f32.mrf.mxu0
        %v2373 = vadd.f32 0.0, %v2372
        %v2374 = vpop.f32.mrf.mxu0
        %v2375 = vadd.f32 0.0, %v2374
        %2376 = vmatmul.bf16.gmra.mxu0 %v2312
        %v2377 = vpop.f32.mrf.mxu0
        %v2378 = vadd.f32 0.0, %v2377
        %v2379 = vpop.f32.mrf.mxu0
        %v2380 = vadd.f32 0.0, %v2379
        %2381 = vmatmul.bf16.gmra.mxu0 %v2315
        %v2382 = vpop.f32.mrf.mxu0
        %v2383 = vadd.f32 0.0, %v2382
        %v2384 = vpop.f32.mrf.mxu0
        %v2385 = vadd.f32 0.0, %v2384
        %2386 = vmatmul.bf16.gmra.mxu0 %v2318
        %v2387 = vpop.f32.mrf.mxu0
        %v2388 = vadd.f32 0.0, %v2387
        %v2389 = vpop.f32.mrf.mxu0
        %v2390 = vadd.f32 0.0, %v2389
        %2391 = vmatmul.bf16.gmra.mxu0 %v2321
        %v2392 = vpop.f32.mrf.mxu0
        %v2393 = vadd.f32 0.0, %v2392
        %v2394 = vpop.f32.mrf.mxu0
        %v2395 = vadd.f32 0.0, %v2394
        %2396 = vmatmul.bf16.gmra.mxu0 %v2324
        %v2397 = vpop.f32.mrf.mxu0
        %v2398 = vadd.f32 0.0, %v2397
        %v2399 = vpop.f32.mrf.mxu0
        %v2400 = vadd.f32 0.0, %v2399
        %2401 = vmatmul.bf16.gmra.mxu0 %v2327
        %v2402 = vpop.f32.mrf.mxu0
        %v2403 = vadd.f32 0.0, %v2402
        %v2404 = vpop.f32.mrf.mxu0
        %v2405 = vadd.f32 0.0, %v2404
        %2406 = vmatmul.bf16.gmra.mxu0 %v2330
        %v2407 = vpop.f32.mrf.mxu0
        %v2408 = vadd.f32 0.0, %v2407
        %v2409 = vpop.f32.mrf.mxu0
        %v2410 = vadd.f32 0.0, %v2409
        %2411 = vmatmul.bf16.gmra.mxu0 %v2333
        %v2412 = vpop.f32.mrf.mxu0
        %v2413 = vadd.f32 0.0, %v2412
        %v2414 = vpop.f32.mrf.mxu0
        %v2415 = vadd.f32 0.0, %v2414
        %2416 = vmatmul.bf16.gmra.mxu0 %v2336
        %v2417 = vpop.f32.mrf.mxu0
        %v2418 = vadd.f32 0.0, %v2417
        %v2419 = vpop.f32.mrf.mxu0
        %v2420 = vadd.f32 0.0, %v2419
        %2421 = vmatmul.bf16.gmra.mxu0 %v2339
        %v2422 = vpop.f32.mrf.mxu0
        %v2423 = vadd.f32 0.0, %v2422
        %v2424 = vpop.f32.mrf.mxu0
        %v2425 = vadd.f32 0.0, %v2424
        %2426 = vmatmul.bf16.gmra.mxu0 %v2342
        %v2427 = vpop.f32.mrf.mxu0
        %v2428 = vadd.f32 0.0, %v2427
        %v2429 = vpop.f32.mrf.mxu0
        %v2430 = vadd.f32 0.0, %v2429
        %2431 = vmatmul.bf16.gmra.mxu0 %v2345
        %v2432 = vpop.f32.mrf.mxu0
        %v2433 = vadd.f32 0.0, %v2432
        %v2434 = vpop.f32.mrf.mxu0
        %v2435 = vadd.f32 0.0, %v2434
        %2436 = vmatmul.bf16.gmra.mxu0 %v2348
        %v2437 = vpop.f32.mrf.mxu0
        %v2438 = vadd.f32 0.0, %v2437
        %v2439 = vpop.f32.mrf.mxu0
        %v2440 = vadd.f32 0.0, %v2439
        %2441 = vdwg.mxu0
        %v2442 = vadd.f32 %v1788, %v2363
        %v2443 = vadd.f32 %v1789, %v2365
        %v2444 = vadd.f32 %v1790, %v2368
        %v2445 = vadd.f32 %v1791, %v2370
        %v2446 = vadd.f32 %v1792, %v2373
        %v2447 = vadd.f32 %v1793, %v2375
        %v2448 = vadd.f32 %v1794, %v2378
        %v2449 = vadd.f32 %v1795, %v2380
        %v2450 = vadd.f32 %v1796, %v2383
        %v2451 = vadd.f32 %v1797, %v2385
        %v2452 = vadd.f32 %v1798, %v2388
        %v2453 = vadd.f32 %v1799, %v2390
        %v2454 = vadd.f32 %v1800, %v2393
        %v2455 = vadd.f32 %v1801, %v2395
        %v2456 = vadd.f32 %v1802, %v2398
        %v2457 = vadd.f32 %v1803, %v2400
        %v2458 = vadd.f32 %v1804, %v2403
        %v2459 = vadd.f32 %v1805, %v2405
        %v2460 = vadd.f32 %v1806, %v2408
        %v2461 = vadd.f32 %v1807, %v2410
        %v2462 = vadd.f32 %v1808, %v2413
        %v2463 = vadd.f32 %v1809, %v2415
        %v2464 = vadd.f32 %v1810, %v2418
        %v2465 = vadd.f32 %v1811, %v2420
        %v2466 = vadd.f32 %v1812, %v2423
        %v2467 = vadd.f32 %v1813, %v2425
        %v2468 = vadd.f32 %v1814, %v2428
        %v2469 = vadd.f32 %v1815, %v2430
        %v2470 = vadd.f32 %v1816, %v2433
        %v2471 = vadd.f32 %v1817, %v2435
        %v2472 = vadd.f32 %v1818, %v2438
        %v2473 = vadd.f32 %v1819, %v2440
        %v2474 = vld [vmem:[%s1533] sm:$0xe]
        %v2475 = vld [vmem:[%s1533 + $0x4] sm:$0xf]
        %v2476 = vld [vmem:[%s1533 + $0x8] sm:$0x1]
        %v2477 = vld [vmem:[%s1533 + $0xc] sm:$0xe]
        %v2478 = vld [vmem:[%s1533 + $0x10] sm:$0xf]
        %v2479 = vld [vmem:[%s1533 + $0x14] sm:$0x1]
        %v2480 = vld [vmem:[%s1533 + $0x18] sm:$0xe]
        %v2481 = vld [vmem:[%s1533 + $0x1c] sm:$0xf]
        %v2482 = vld [vmem:[%s1533 + $0x20] sm:$0x1]
        %v2483 = vld [vmem:[%s1533 + $0x24] sm:$0xe]
        %v2484 = vld [vmem:[%s1533 + $0x28] sm:$0xf]
        %v2485 = vld [vmem:[%s1533 + $0x2c] sm:$0x1]
        %v2486 = vld [vmem:[%s1533 + $0x30] sm:$0xe]
        %v2487 = vld [vmem:[%s1533 + $0x34] sm:$0xf]
        %v2488 = vld [vmem:[%s1533 + $0x38] sm:$0x1]
        %v2489 = vld [vmem:[%s1533 + $0x3c] sm:$0xe]
        %v2490 = vld [vmem:[%s1533 + $0x40] sm:$0xf]
        %v2491 = vld [vmem:[%s1533 + $0x44] sm:$0x1]
        %v2492 = vld [vmem:[%s1533 + $0x48] sm:$0xe]
        %v2493 = vld [vmem:[%s1533 + $0x4c] sm:$0xf]
        %v2494 = vld [vmem:[%s1533 + $0x50] sm:$0x1]
        %v2495 = vld [vmem:[%s1533 + $0x54] sm:$0xe]
        %v2496 = vld [vmem:[%s1533 + $0x58] sm:$0xf]
        %v2497 = vld [vmem:[%s1533 + $0x5c] sm:$0x1]
        %v2498 = vld [vmem:[%s1533 + $0x60] sm:$0xe]
        %v2499 = vld [vmem:[%s1533 + $0x64] sm:$0xf]
        %v2500 = vld [vmem:[%s1533 + $0x68] sm:$0x1]
        %v2501 = vld [vmem:[%s1533 + $0x6c] sm:$0xe]
        %v2502 = vld [vmem:[%s1533 + $0x70] sm:$0xf]
        %v2503 = vld [vmem:[%s1533 + $0x74] sm:$0x1]
        %v2504 = vld [vmem:[%s1533 + $0x78] sm:$0xe]
        %v2505 = vld [vmem:[%s1533 + $0x7c] sm:$0xf]
        %v2506 = vld [vmem:[%s1533 + $0x80] sm:$0x1]
        %v2507 = vld [vmem:[%s1533 + $0x84] sm:$0xe]
        %v2508 = vld [vmem:[%s1533 + $0x88] sm:$0xf]
        %v2509 = vld [vmem:[%s1533 + $0x8c] sm:$0x1]
        %v2510 = vld [vmem:[%s1533 + $0x90] sm:$0xe]
        %v2511 = vld [vmem:[%s1533 + $0x94] sm:$0xf]
        %v2512 = vld [vmem:[%s1533 + $0x98] sm:$0x1]
        %v2513 = vld [vmem:[%s1533 + $0x9c] sm:$0xe]
        %v2514 = vld [vmem:[%s1533 + $0xa0] sm:$0xf]
        %v2515 = vld [vmem:[%s1533 + $0xa4] sm:$0x1]
        %v2516 = vld [vmem:[%s1533 + $0xa8] sm:$0xe]
        %v2517 = vld [vmem:[%s1533 + $0xac] sm:$0xf]
        %v2518 = vld [vmem:[%s1533 + $0xb0] sm:$0x1]
        %v2519 = vld [vmem:[%s1533 + $0xb4] sm:$0xe]
        %v2520 = vld [vmem:[%s1533 + $0xb8] sm:$0xf]
        %v2521 = vld [vmem:[%s1533 + $0xbc] sm:$0x1]
        %s2522 = scalar_lea.vmem %s1, 10
        %v2523 = vld [vmem:[%s2522] sm:$0x3]
        %v2572 = vrot.slane %v2474, 5
        %v2573 = vrot.slane %v2572, 4
        %v2574 = vrot.slane %v2475, 5
        %v2575 = vsel %vm1200, %v2573, %v2574
        %v2576 = vrot.slane %v2574, 4
        %v2577 = vrot.slane %v2476, 5
        %v2578 = vsel %vm1200, %v2576, %v2577
        %v2579 = vrot.slane %v2477, 5
        %v2580 = vrot.slane %v2579, 4
        %v2581 = vrot.slane %v2478, 5
        %v2582 = vsel %vm1200, %v2580, %v2581
        %v2583 = vrot.slane %v2581, 4
        %v2584 = vrot.slane %v2479, 5
        %v2585 = vsel %vm1200, %v2583, %v2584
        %v2586 = vrot.slane %v2480, 5
        %v2587 = vrot.slane %v2586, 4
        %v2588 = vrot.slane %v2481, 5
        %v2589 = vsel %vm1200, %v2587, %v2588
        %v2590 = vrot.slane %v2588, 4
        %v2591 = vrot.slane %v2482, 5
        %v2592 = vsel %vm1200, %v2590, %v2591
        %v2593 = vrot.slane %v2483, 5
        %v2594 = vrot.slane %v2593, 4
        %v2595 = vrot.slane %v2484, 5
        %v2596 = vsel %vm1200, %v2594, %v2595
        %v2597 = vrot.slane %v2595, 4
        %v2598 = vrot.slane %v2485, 5
        %v2599 = vsel %vm1200, %v2597, %v2598
        %v2600 = vrot.slane %v2486, 5
        %v2601 = vrot.slane %v2600, 4
        %v2602 = vrot.slane %v2487, 5
        %v2603 = vsel %vm1200, %v2601, %v2602
        %v2604 = vrot.slane %v2602, 4
        %v2605 = vrot.slane %v2488, 5
        %v2606 = vsel %vm1200, %v2604, %v2605
        %v2607 = vrot.slane %v2489, 5
        %v2608 = vrot.slane %v2607, 4
        %v2609 = vrot.slane %v2490, 5
        %v2610 = vsel %vm1200, %v2608, %v2609
        %v2611 = vrot.slane %v2609, 4
        %v2612 = vrot.slane %v2491, 5
        %v2613 = vsel %vm1200, %v2611, %v2612
        %v2614 = vrot.slane %v2492, 5
        %v2615 = vrot.slane %v2614, 4
        %v2616 = vrot.slane %v2493, 5
        %v2617 = vsel %vm1200, %v2615, %v2616
        %v2618 = vrot.slane %v2616, 4
        %v2619 = vrot.slane %v2494, 5
        %v2620 = vsel %vm1200, %v2618, %v2619
        %v2621 = vrot.slane %v2495, 5
        %v2622 = vrot.slane %v2621, 4
        %v2623 = vrot.slane %v2496, 5
        %v2624 = vsel %vm1200, %v2622, %v2623
        %v2625 = vrot.slane %v2623, 4
        %v2626 = vrot.slane %v2497, 5
        %v2627 = vsel %vm1200, %v2625, %v2626
        %v2628 = vrot.slane %v2498, 5
        %v2629 = vrot.slane %v2628, 4
        %v2630 = vrot.slane %v2499, 5
        %v2631 = vsel %vm1200, %v2629, %v2630
        %v2632 = vrot.slane %v2630, 4
        %v2633 = vrot.slane %v2500, 5
        %v2634 = vsel %vm1200, %v2632, %v2633
        %v2635 = vrot.slane %v2501, 5
        %v2636 = vrot.slane %v2635, 4
        %v2637 = vrot.slane %v2502, 5
        %v2638 = vsel %vm1200, %v2636, %v2637
        %v2639 = vrot.slane %v2637, 4
        %v2640 = vrot.slane %v2503, 5
        %v2641 = vsel %vm1200, %v2639, %v2640
        %v2642 = vrot.slane %v2504, 5
        %v2643 = vrot.slane %v2642, 4
        %v2644 = vrot.slane %v2505, 5
        %v2645 = vsel %vm1200, %v2643, %v2644
        %v2646 = vrot.slane %v2644, 4
        %v2647 = vrot.slane %v2506, 5
        %v2648 = vsel %vm1200, %v2646, %v2647
        %v2649 = vrot.slane %v2507, 5
        %v2650 = vrot.slane %v2649, 4
        %v2651 = vrot.slane %v2508, 5
        %v2652 = vsel %vm1200, %v2650, %v2651
        %v2653 = vrot.slane %v2651, 4
        %v2654 = vrot.slane %v2509, 5
        %v2655 = vsel %vm1200, %v2653, %v2654
        %v2656 = vrot.slane %v2510, 5
        %v2657 = vrot.slane %v2656, 4
        %v2658 = vrot.slane %v2511, 5
        %v2659 = vsel %vm1200, %v2657, %v2658
        %v2660 = vrot.slane %v2658, 4
        %v2661 = vrot.slane %v2512, 5
        %v2662 = vsel %vm1200, %v2660, %v2661
        %v2663 = vrot.slane %v2513, 5
        %v2664 = vrot.slane %v2663, 4
        %v2665 = vrot.slane %v2514, 5
        %v2666 = vsel %vm1200, %v2664, %v2665
        %v2667 = vrot.slane %v2665, 4
        %v2668 = vrot.slane %v2515, 5
        %v2669 = vsel %vm1200, %v2667, %v2668
        %v2670 = vrot.slane %v2516, 5
        %v2671 = vrot.slane %v2670, 4
        %v2672 = vrot.slane %v2517, 5
        %v2673 = vsel %vm1200, %v2671, %v2672
        %v2674 = vrot.slane %v2672, 4
        %v2675 = vrot.slane %v2518, 5
        %v2676 = vsel %vm1200, %v2674, %v2675
        %v2677 = vrot.slane %v2519, 5
        %v2678 = vrot.slane %v2677, 4
        %v2679 = vrot.slane %v2520, 5
        %v2680 = vsel %vm1200, %v2678, %v2679
        %v2681 = vrot.slane %v2679, 4
        %v2682 = vrot.slane %v2521, 5
        %v2683 = vsel %vm1200, %v2681, %v2682
        %v2684 = vunpack.c.l.b16 %v2575
        %v2685 = vunpack.c.l.b16 %v2578
        %v2686 = vunpack.c.l.b16 %v2582
        %v2687 = vunpack.c.l.b16 %v2585
        %v2688 = vunpack.c.l.b16 %v2589
        %v2689 = vunpack.c.l.b16 %v2592
        %v2690 = vunpack.c.l.b16 %v2596
        %v2691 = vunpack.c.l.b16 %v2599
        %v2692 = vunpack.c.l.b16 %v2603
        %v2693 = vunpack.c.l.b16 %v2606
        %v2694 = vunpack.c.l.b16 %v2610
        %v2695 = vunpack.c.l.b16 %v2613
        %v2696 = vunpack.c.l.b16 %v2617
        %v2697 = vunpack.c.l.b16 %v2620
        %v2698 = vunpack.c.l.b16 %v2624
        %v2699 = vunpack.c.l.b16 %v2627
        %v2700 = vunpack.c.l.b16 %v2631
        %v2701 = vunpack.c.l.b16 %v2634
        %v2702 = vunpack.c.l.b16 %v2638
        %v2703 = vunpack.c.l.b16 %v2641
        %v2704 = vunpack.c.l.b16 %v2645
        %v2705 = vunpack.c.l.b16 %v2648
        %v2706 = vunpack.c.l.b16 %v2652
        %v2707 = vunpack.c.l.b16 %v2655
        %v2708 = vunpack.c.l.b16 %v2659
        %v2709 = vunpack.c.l.b16 %v2662
        %v2710 = vunpack.c.l.b16 %v2666
        %v2711 = vunpack.c.l.b16 %v2669
        %v2712 = vunpack.c.l.b16 %v2673
        %v2713 = vunpack.c.l.b16 %v2676
        %v2714 = vunpack.c.l.b16 %v2680
        %v2715 = vunpack.c.l.b16 %v2683
        %v2716 = vpack.c.b16 %v2685, %v2684
        %v2717 = vpack.c.b16 %v2687, %v2686
        %v2718 = vpack.c.b16 %v2689, %v2688
        %v2719 = vpack.c.b16 %v2691, %v2690
        %v2720 = vpack.c.b16 %v2693, %v2692
        %v2721 = vpack.c.b16 %v2695, %v2694
        %v2722 = vpack.c.b16 %v2697, %v2696
        %v2723 = vpack.c.b16 %v2699, %v2698
        %v2724 = vpack.c.b16 %v2701, %v2700
        %v2725 = vpack.c.b16 %v2703, %v2702
        %v2726 = vpack.c.b16 %v2705, %v2704
        %v2727 = vpack.c.b16 %v2707, %v2706
        %v2728 = vpack.c.b16 %v2709, %v2708
        %v2729 = vpack.c.b16 %v2711, %v2710
        %v2730 = vpack.c.b16 %v2713, %v2712
        %v2731 = vpack.c.b16 %v2715, %v2714
        %v2733 = vsel %vm738, %v2716, 0
        %v2736 = vsel %vm738, %v2717, 0
        %v2739 = vsel %vm738, %v2718, 0
        %v2742 = vsel %vm738, %v2719, 0
        %v2745 = vsel %vm738, %v2720, 0
        %v2748 = vsel %vm738, %v2721, 0
        %v2751 = vsel %vm738, %v2722, 0
        %v2754 = vsel %vm738, %v2723, 0
        %v2757 = vsel %vm738, %v2724, 0
        %v2760 = vsel %vm738, %v2725, 0
        %v2763 = vsel %vm738, %v2726, 0
        %v2766 = vsel %vm738, %v2727, 0
        %v2769 = vsel %vm738, %v2728, 0
        %v2772 = vsel %vm738, %v2729, 0
        %v2775 = vsel %vm738, %v2730, 0
        %v2778 = vsel %vm738, %v2731, 0
        %v2781 = vsel %vm787, %v2523, 0
        %2783 = vmatpush.bf16.msra.mxu0 0
        %2784 = vmatpush.bf16.msra.mxu0 0
        %2785 = vmatpush.bf16.msra.mxu0 0
        %2786 = vmatpush.bf16.msra.mxu0 0
        %2787 = vmatpush.bf16.msra.mxu0 0
        %2788 = vmatpush.bf16.msra.mxu0 0
        %2789 = vmatpush.bf16.msra.mxu0 0
        %2790 = vmatpush.bf16.msra.mxu0 %v2781
        %2791 = vmatmul.bf16.gmra.mxu0 %v2733
        %v2792 = vpop.f32.mrf.mxu0
        %v2793 = vadd.f32 0.0, %v2792
        %v2794 = vpop.f32.mrf.mxu0
        %v2795 = vadd.f32 0.0, %v2794
        %2796 = vmatmul.bf16.gmra.mxu0 %v2736
        %v2797 = vpop.f32.mrf.mxu0
        %v2798 = vadd.f32 0.0, %v2797
        %v2799 = vpop.f32.mrf.mxu0
        %v2800 = vadd.f32 0.0, %v2799
        %2801 = vmatmul.bf16.gmra.mxu0 %v2739
        %v2802 = vpop.f32.mrf.mxu0
        %v2803 = vadd.f32 0.0, %v2802
        %v2804 = vpop.f32.mrf.mxu0
        %v2805 = vadd.f32 0.0, %v2804
        %2806 = vmatmul.bf16.gmra.mxu0 %v2742
        %v2807 = vpop.f32.mrf.mxu0
        %v2808 = vadd.f32 0.0, %v2807
        %v2809 = vpop.f32.mrf.mxu0
        %v2810 = vadd.f32 0.0, %v2809
        %2811 = vmatmul.bf16.gmra.mxu0 %v2745
        %v2812 = vpop.f32.mrf.mxu0
        %v2813 = vadd.f32 0.0, %v2812
        %v2814 = vpop.f32.mrf.mxu0
        %v2815 = vadd.f32 0.0, %v2814
        %2816 = vmatmul.bf16.gmra.mxu0 %v2748
        %v2817 = vpop.f32.mrf.mxu0
        %v2818 = vadd.f32 0.0, %v2817
        %v2819 = vpop.f32.mrf.mxu0
        %v2820 = vadd.f32 0.0, %v2819
        %2821 = vmatmul.bf16.gmra.mxu0 %v2751
        %v2822 = vpop.f32.mrf.mxu0
        %v2823 = vadd.f32 0.0, %v2822
        %v2824 = vpop.f32.mrf.mxu0
        %v2825 = vadd.f32 0.0, %v2824
        %2826 = vmatmul.bf16.gmra.mxu0 %v2754
        %v2827 = vpop.f32.mrf.mxu0
        %v2828 = vadd.f32 0.0, %v2827
        %v2829 = vpop.f32.mrf.mxu0
        %v2830 = vadd.f32 0.0, %v2829
        %2831 = vmatmul.bf16.gmra.mxu0 %v2757
        %v2832 = vpop.f32.mrf.mxu0
        %v2833 = vadd.f32 0.0, %v2832
        %v2834 = vpop.f32.mrf.mxu0
        %v2835 = vadd.f32 0.0, %v2834
        %2836 = vmatmul.bf16.gmra.mxu0 %v2760
        %v2837 = vpop.f32.mrf.mxu0
        %v2838 = vadd.f32 0.0, %v2837
        %v2839 = vpop.f32.mrf.mxu0
        %v2840 = vadd.f32 0.0, %v2839
        %2841 = vmatmul.bf16.gmra.mxu0 %v2763
        %v2842 = vpop.f32.mrf.mxu0
        %v2843 = vadd.f32 0.0, %v2842
        %v2844 = vpop.f32.mrf.mxu0
        %v2845 = vadd.f32 0.0, %v2844
        %2846 = vmatmul.bf16.gmra.mxu0 %v2766
        %v2847 = vpop.f32.mrf.mxu0
        %v2848 = vadd.f32 0.0, %v2847
        %v2849 = vpop.f32.mrf.mxu0
        %v2850 = vadd.f32 0.0, %v2849
        %2851 = vmatmul.bf16.gmra.mxu0 %v2769
        %v2852 = vpop.f32.mrf.mxu0
        %v2853 = vadd.f32 0.0, %v2852
        %v2854 = vpop.f32.mrf.mxu0
        %v2855 = vadd.f32 0.0, %v2854
        %2856 = vmatmul.bf16.gmra.mxu0 %v2772
        %v2857 = vpop.f32.mrf.mxu0
        %v2858 = vadd.f32 0.0, %v2857
        %v2859 = vpop.f32.mrf.mxu0
        %v2860 = vadd.f32 0.0, %v2859
        %2861 = vmatmul.bf16.gmra.mxu0 %v2775
        %v2862 = vpop.f32.mrf.mxu0
        %v2863 = vadd.f32 0.0, %v2862
        %v2864 = vpop.f32.mrf.mxu0
        %v2865 = vadd.f32 0.0, %v2864
        %2866 = vmatmul.bf16.gmra.mxu0 %v2778
        %v2867 = vpop.f32.mrf.mxu0
        %v2868 = vadd.f32 0.0, %v2867
        %v2869 = vpop.f32.mrf.mxu0
        %v2870 = vadd.f32 0.0, %v2869
        %2871 = vdwg.mxu0
        %v2872 = vadd.f32 %v2442, %v2793
        %v2873 = vadd.f32 %v2443, %v2795
        %v2874 = vadd.f32 %v2444, %v2798
        %v2875 = vadd.f32 %v2445, %v2800
        %v2876 = vadd.f32 %v2446, %v2803
        %v2877 = vadd.f32 %v2447, %v2805
        %v2878 = vadd.f32 %v2448, %v2808
        %v2879 = vadd.f32 %v2449, %v2810
        %v2880 = vadd.f32 %v2450, %v2813
        %v2881 = vadd.f32 %v2451, %v2815
        %v2882 = vadd.f32 %v2452, %v2818
        %v2883 = vadd.f32 %v2453, %v2820
        %v2884 = vadd.f32 %v2454, %v2823
        %v2885 = vadd.f32 %v2455, %v2825
        %v2886 = vadd.f32 %v2456, %v2828
        %v2887 = vadd.f32 %v2457, %v2830
        %v2888 = vadd.f32 %v2458, %v2833
        %v2889 = vadd.f32 %v2459, %v2835
        %v2890 = vadd.f32 %v2460, %v2838
        %v2891 = vadd.f32 %v2461, %v2840
        %v2892 = vadd.f32 %v2462, %v2843
        %v2893 = vadd.f32 %v2463, %v2845
        %v2894 = vadd.f32 %v2464, %v2848
        %v2895 = vadd.f32 %v2465, %v2850
        %v2896 = vadd.f32 %v2466, %v2853
        %v2897 = vadd.f32 %v2467, %v2855
        %v2898 = vadd.f32 %v2468, %v2858
        %v2899 = vadd.f32 %v2469, %v2860
        %v2900 = vadd.f32 %v2470, %v2863
        %v2901 = vadd.f32 %v2471, %v2865
        %v2902 = vadd.f32 %v2472, %v2868
        %v2903 = vadd.f32 %v2473, %v2870
        %s2904 = scalar_lea.vmem %s213, 24
        %v2905 = vld [vmem:[%s2904] sm:$0xf]
        %v2906 = vld [vmem:[%s2904 + $0x4] sm:$0xf]
        %v2907 = vld [vmem:[%s2904 + $0xc] sm:$0xf]
        %v2908 = vld [vmem:[%s2904 + $0x10] sm:$0xf]
        %v2909 = vld [vmem:[%s2904 + $0x18] sm:$0xf]
        %v2910 = vld [vmem:[%s2904 + $0x1c] sm:$0xf]
        %v2911 = vld [vmem:[%s2904 + $0x24] sm:$0xf]
        %v2912 = vld [vmem:[%s2904 + $0x28] sm:$0xf]
        %v2913 = vld [vmem:[%s2904 + $0x30] sm:$0xf]
        %v2914 = vld [vmem:[%s2904 + $0x34] sm:$0xf]
        %v2915 = vld [vmem:[%s2904 + $0x3c] sm:$0xf]
        %v2916 = vld [vmem:[%s2904 + $0x40] sm:$0xf]
        %v2917 = vld [vmem:[%s2904 + $0x48] sm:$0xf]
        %v2918 = vld [vmem:[%s2904 + $0x4c] sm:$0xf]
        %v2919 = vld [vmem:[%s2904 + $0x54] sm:$0xf]
        %v2920 = vld [vmem:[%s2904 + $0x58] sm:$0xf]
        %v2921 = vld [vmem:[%s2904 + $0x60] sm:$0xf]
        %v2922 = vld [vmem:[%s2904 + $0x64] sm:$0xf]
        %v2923 = vld [vmem:[%s2904 + $0x6c] sm:$0xf]
        %v2924 = vld [vmem:[%s2904 + $0x70] sm:$0xf]
        %v2925 = vld [vmem:[%s2904 + $0x78] sm:$0xf]
        %v2926 = vld [vmem:[%s2904 + $0x7c] sm:$0xf]
        %v2927 = vld [vmem:[%s2904 + $0x84] sm:$0xf]
        %v2928 = vld [vmem:[%s2904 + $0x88] sm:$0xf]
        %v2929 = vld [vmem:[%s2904 + $0x90] sm:$0xf]
        %v2930 = vld [vmem:[%s2904 + $0x94] sm:$0xf]
        %v2931 = vld [vmem:[%s2904 + $0x9c] sm:$0xf]
        %v2932 = vld [vmem:[%s2904 + $0xa0] sm:$0xf]
        %v2933 = vld [vmem:[%s2904 + $0xa8] sm:$0xf]
        %v2934 = vld [vmem:[%s2904 + $0xac] sm:$0xf]
        %v2935 = vld [vmem:[%s2904 + $0xb4] sm:$0xf]
        %v2936 = vld [vmem:[%s2904 + $0xb8] sm:$0xf]
        %s2937 = scalar_lea.vmem %s1, 12
        %v2938 = vld [vmem:[%s2937] sm:$0x3]
        %v2971 = vunpack.c.l.b16 %v2905
        %v2972 = vunpack.c.l.b16 %v2906
        %v2973 = vunpack.c.l.b16 %v2907
        %v2974 = vunpack.c.l.b16 %v2908
        %v2975 = vunpack.c.l.b16 %v2909
        %v2976 = vunpack.c.l.b16 %v2910
        %v2977 = vunpack.c.l.b16 %v2911
        %v2978 = vunpack.c.l.b16 %v2912
        %v2979 = vunpack.c.l.b16 %v2913
        %v2980 = vunpack.c.l.b16 %v2914
        %v2981 = vunpack.c.l.b16 %v2915
        %v2982 = vunpack.c.l.b16 %v2916
        %v2983 = vunpack.c.l.b16 %v2917
        %v2984 = vunpack.c.l.b16 %v2918
        %v2985 = vunpack.c.l.b16 %v2919
        %v2986 = vunpack.c.l.b16 %v2920
        %v2987 = vunpack.c.l.b16 %v2921
        %v2988 = vunpack.c.l.b16 %v2922
        %v2989 = vunpack.c.l.b16 %v2923
        %v2990 = vunpack.c.l.b16 %v2924
        %v2991 = vunpack.c.l.b16 %v2925
        %v2992 = vunpack.c.l.b16 %v2926
        %v2993 = vunpack.c.l.b16 %v2927
        %v2994 = vunpack.c.l.b16 %v2928
        %v2995 = vunpack.c.l.b16 %v2929
        %v2996 = vunpack.c.l.b16 %v2930
        %v2997 = vunpack.c.l.b16 %v2931
        %v2998 = vunpack.c.l.b16 %v2932
        %v2999 = vunpack.c.l.b16 %v2933
        %v3000 = vunpack.c.l.b16 %v2934
        %v3001 = vunpack.c.l.b16 %v2935
        %v3002 = vunpack.c.l.b16 %v2936
        %v3003 = vpack.c.b16 %v2972, %v2971
        %v3004 = vpack.c.b16 %v2974, %v2973
        %v3005 = vpack.c.b16 %v2976, %v2975
        %v3006 = vpack.c.b16 %v2978, %v2977
        %v3007 = vpack.c.b16 %v2980, %v2979
        %v3008 = vpack.c.b16 %v2982, %v2981
        %v3009 = vpack.c.b16 %v2984, %v2983
        %v3010 = vpack.c.b16 %v2986, %v2985
        %v3011 = vpack.c.b16 %v2988, %v2987
        %v3012 = vpack.c.b16 %v2990, %v2989
        %v3013 = vpack.c.b16 %v2992, %v2991
        %v3014 = vpack.c.b16 %v2994, %v2993
        %v3015 = vpack.c.b16 %v2996, %v2995
        %v3016 = vpack.c.b16 %v2998, %v2997
        %v3017 = vpack.c.b16 %v3000, %v2999
        %v3018 = vpack.c.b16 %v3002, %v3001
        %v3020 = vsel %vm738, %v3003, 0
        %v3023 = vsel %vm738, %v3004, 0
        %v3026 = vsel %vm738, %v3005, 0
        %v3029 = vsel %vm738, %v3006, 0
        %v3032 = vsel %vm738, %v3007, 0
        %v3035 = vsel %vm738, %v3008, 0
        %v3038 = vsel %vm738, %v3009, 0
        %v3041 = vsel %vm738, %v3010, 0
        %v3044 = vsel %vm738, %v3011, 0
        %v3047 = vsel %vm738, %v3012, 0
        %v3050 = vsel %vm738, %v3013, 0
        %v3053 = vsel %vm738, %v3014, 0
        %v3056 = vsel %vm738, %v3015, 0
        %v3059 = vsel %vm738, %v3016, 0
        %v3062 = vsel %vm738, %v3017, 0
        %v3065 = vsel %vm738, %v3018, 0
        %v3068 = vsel %vm787, %v2938, 0
        %3070 = vmatpush.bf16.msra.mxu0 0
        %3071 = vmatpush.bf16.msra.mxu0 0
        %3072 = vmatpush.bf16.msra.mxu0 0
        %3073 = vmatpush.bf16.msra.mxu0 0
        %3074 = vmatpush.bf16.msra.mxu0 0
        %3075 = vmatpush.bf16.msra.mxu0 0
        %3076 = vmatpush.bf16.msra.mxu0 0
        %3077 = vmatpush.bf16.msra.mxu0 %v3068
        %3078 = vmatmul.bf16.gmra.mxu0 %v3020
        %v3079 = vpop.f32.mrf.mxu0
        %v3080 = vadd.f32 0.0, %v3079
        %v3081 = vpop.f32.mrf.mxu0
        %v3082 = vadd.f32 0.0, %v3081
        %3083 = vmatmul.bf16.gmra.mxu0 %v3023
        %v3084 = vpop.f32.mrf.mxu0
        %v3085 = vadd.f32 0.0, %v3084
        %v3086 = vpop.f32.mrf.mxu0
        %v3087 = vadd.f32 0.0, %v3086
        %3088 = vmatmul.bf16.gmra.mxu0 %v3026
        %v3089 = vpop.f32.mrf.mxu0
        %v3090 = vadd.f32 0.0, %v3089
        %v3091 = vpop.f32.mrf.mxu0
        %v3092 = vadd.f32 0.0, %v3091
        %3093 = vmatmul.bf16.gmra.mxu0 %v3029
        %v3094 = vpop.f32.mrf.mxu0
        %v3095 = vadd.f32 0.0, %v3094
        %v3096 = vpop.f32.mrf.mxu0
        %v3097 = vadd.f32 0.0, %v3096
        %3098 = vmatmul.bf16.gmra.mxu0 %v3032
        %v3099 = vpop.f32.mrf.mxu0
        %v3100 = vadd.f32 0.0, %v3099
        %v3101 = vpop.f32.mrf.mxu0
        %v3102 = vadd.f32 0.0, %v3101
        %3103 = vmatmul.bf16.gmra.mxu0 %v3035
        %v3104 = vpop.f32.mrf.mxu0
        %v3105 = vadd.f32 0.0, %v3104
        %v3106 = vpop.f32.mrf.mxu0
        %v3107 = vadd.f32 0.0, %v3106
        %3108 = vmatmul.bf16.gmra.mxu0 %v3038
        %v3109 = vpop.f32.mrf.mxu0
        %v3110 = vadd.f32 0.0, %v3109
        %v3111 = vpop.f32.mrf.mxu0
        %v3112 = vadd.f32 0.0, %v3111
        %3113 = vmatmul.bf16.gmra.mxu0 %v3041
        %v3114 = vpop.f32.mrf.mxu0
        %v3115 = vadd.f32 0.0, %v3114
        %v3116 = vpop.f32.mrf.mxu0
        %v3117 = vadd.f32 0.0, %v3116
        %3118 = vmatmul.bf16.gmra.mxu0 %v3044
        %v3119 = vpop.f32.mrf.mxu0
        %v3120 = vadd.f32 0.0, %v3119
        %v3121 = vpop.f32.mrf.mxu0
        %v3122 = vadd.f32 0.0, %v3121
        %3123 = vmatmul.bf16.gmra.mxu0 %v3047
        %v3124 = vpop.f32.mrf.mxu0
        %v3125 = vadd.f32 0.0, %v3124
        %v3126 = vpop.f32.mrf.mxu0
        %v3127 = vadd.f32 0.0, %v3126
        %3128 = vmatmul.bf16.gmra.mxu0 %v3050
        %v3129 = vpop.f32.mrf.mxu0
        %v3130 = vadd.f32 0.0, %v3129
        %v3131 = vpop.f32.mrf.mxu0
        %v3132 = vadd.f32 0.0, %v3131
        %3133 = vmatmul.bf16.gmra.mxu0 %v3053
        %v3134 = vpop.f32.mrf.mxu0
        %v3135 = vadd.f32 0.0, %v3134
        %v3136 = vpop.f32.mrf.mxu0
        %v3137 = vadd.f32 0.0, %v3136
        %3138 = vmatmul.bf16.gmra.mxu0 %v3056
        %v3139 = vpop.f32.mrf.mxu0
        %v3140 = vadd.f32 0.0, %v3139
        %v3141 = vpop.f32.mrf.mxu0
        %v3142 = vadd.f32 0.0, %v3141
        %3143 = vmatmul.bf16.gmra.mxu0 %v3059
        %v3144 = vpop.f32.mrf.mxu0
        %v3145 = vadd.f32 0.0, %v3144
        %v3146 = vpop.f32.mrf.mxu0
        %v3147 = vadd.f32 0.0, %v3146
        %3148 = vmatmul.bf16.gmra.mxu0 %v3062
        %v3149 = vpop.f32.mrf.mxu0
        %v3150 = vadd.f32 0.0, %v3149
        %v3151 = vpop.f32.mrf.mxu0
        %v3152 = vadd.f32 0.0, %v3151
        %3153 = vmatmul.bf16.gmra.mxu0 %v3065
        %v3154 = vpop.f32.mrf.mxu0
        %v3155 = vadd.f32 0.0, %v3154
        %v3156 = vpop.f32.mrf.mxu0
        %v3157 = vadd.f32 0.0, %v3156
        %3158 = vdwg.mxu0
        %v3159 = vadd.f32 %v2872, %v3080
        %v3160 = vadd.f32 %v2873, %v3082
        %v3161 = vadd.f32 %v2874, %v3085
        %v3162 = vadd.f32 %v2875, %v3087
        %v3163 = vadd.f32 %v2876, %v3090
        %v3164 = vadd.f32 %v2877, %v3092
        %v3165 = vadd.f32 %v2878, %v3095
        %v3166 = vadd.f32 %v2879, %v3097
        %v3167 = vadd.f32 %v2880, %v3100
        %v3168 = vadd.f32 %v2881, %v3102
        %v3169 = vadd.f32 %v2882, %v3105
        %v3170 = vadd.f32 %v2883, %v3107
        %v3171 = vadd.f32 %v2884, %v3110
        %v3172 = vadd.f32 %v2885, %v3112
        %v3173 = vadd.f32 %v2886, %v3115
        %v3174 = vadd.f32 %v2887, %v3117
        %v3175 = vadd.f32 %v2888, %v3120
        %v3176 = vadd.f32 %v2889, %v3122
        %v3177 = vadd.f32 %v2890, %v3125
        %v3178 = vadd.f32 %v2891, %v3127
        %v3179 = vadd.f32 %v2892, %v3130
        %v3180 = vadd.f32 %v2893, %v3132
        %v3181 = vadd.f32 %v2894, %v3135
        %v3182 = vadd.f32 %v2895, %v3137
        %v3183 = vadd.f32 %v2896, %v3140
        %v3184 = vadd.f32 %v2897, %v3142
        %v3185 = vadd.f32 %v2898, %v3145
        %v3186 = vadd.f32 %v2899, %v3147
        %v3187 = vadd.f32 %v2900, %v3150
        %v3188 = vadd.f32 %v2901, %v3152
        %v3189 = vadd.f32 %v2902, %v3155
        %v3190 = vadd.f32 %v2903, %v3157
        %v3191 = vld [vmem:[%s2904] sm:$0xf]
        %v3192 = vld [vmem:[%s2904 + $0x4] sm:$0xf]
        %v3193 = vld [vmem:[%s2904 + $0x8] sm:$0x1]
        %v3194 = vld [vmem:[%s2904 + $0xc] sm:$0xf]
        %v3195 = vld [vmem:[%s2904 + $0x10] sm:$0xf]
        %v3196 = vld [vmem:[%s2904 + $0x14] sm:$0x1]
        %v3197 = vld [vmem:[%s2904 + $0x18] sm:$0xf]
        %v3198 = vld [vmem:[%s2904 + $0x1c] sm:$0xf]
        %v3199 = vld [vmem:[%s2904 + $0x20] sm:$0x1]
        %v3200 = vld [vmem:[%s2904 + $0x24] sm:$0xf]
        %v3201 = vld [vmem:[%s2904 + $0x28] sm:$0xf]
        %v3202 = vld [vmem:[%s2904 + $0x2c] sm:$0x1]
        %v3203 = vld [vmem:[%s2904 + $0x30] sm:$0xf]
        %v3204 = vld [vmem:[%s2904 + $0x34] sm:$0xf]
        %v3205 = vld [vmem:[%s2904 + $0x38] sm:$0x1]
        %v3206 = vld [vmem:[%s2904 + $0x3c] sm:$0xf]
        %v3207 = vld [vmem:[%s2904 + $0x40] sm:$0xf]
        %v3208 = vld [vmem:[%s2904 + $0x44] sm:$0x1]
        %v3209 = vld [vmem:[%s2904 + $0x48] sm:$0xf]
        %v3210 = vld [vmem:[%s2904 + $0x4c] sm:$0xf]
        %v3211 = vld [vmem:[%s2904 + $0x50] sm:$0x1]
        %v3212 = vld [vmem:[%s2904 + $0x54] sm:$0xf]
        %v3213 = vld [vmem:[%s2904 + $0x58] sm:$0xf]
        %v3214 = vld [vmem:[%s2904 + $0x5c] sm:$0x1]
        %v3215 = vld [vmem:[%s2904 + $0x60] sm:$0xf]
        %v3216 = vld [vmem:[%s2904 + $0x64] sm:$0xf]
        %v3217 = vld [vmem:[%s2904 + $0x68] sm:$0x1]
        %v3218 = vld [vmem:[%s2904 + $0x6c] sm:$0xf]
        %v3219 = vld [vmem:[%s2904 + $0x70] sm:$0xf]
        %v3220 = vld [vmem:[%s2904 + $0x74] sm:$0x1]
        %v3221 = vld [vmem:[%s2904 + $0x78] sm:$0xf]
        %v3222 = vld [vmem:[%s2904 + $0x7c] sm:$0xf]
        %v3223 = vld [vmem:[%s2904 + $0x80] sm:$0x1]
        %v3224 = vld [vmem:[%s2904 + $0x84] sm:$0xf]
        %v3225 = vld [vmem:[%s2904 + $0x88] sm:$0xf]
        %v3226 = vld [vmem:[%s2904 + $0x8c] sm:$0x1]
        %v3227 = vld [vmem:[%s2904 + $0x90] sm:$0xf]
        %v3228 = vld [vmem:[%s2904 + $0x94] sm:$0xf]
        %v3229 = vld [vmem:[%s2904 + $0x98] sm:$0x1]
        %v3230 = vld [vmem:[%s2904 + $0x9c] sm:$0xf]
        %v3231 = vld [vmem:[%s2904 + $0xa0] sm:$0xf]
        %v3232 = vld [vmem:[%s2904 + $0xa4] sm:$0x1]
        %v3233 = vld [vmem:[%s2904 + $0xa8] sm:$0xf]
        %v3234 = vld [vmem:[%s2904 + $0xac] sm:$0xf]
        %v3235 = vld [vmem:[%s2904 + $0xb0] sm:$0x1]
        %v3236 = vld [vmem:[%s2904 + $0xb4] sm:$0xf]
        %v3237 = vld [vmem:[%s2904 + $0xb8] sm:$0xf]
        %v3238 = vld [vmem:[%s2904 + $0xbc] sm:$0x1]
        %s3239 = scalar_lea.vmem %s1, 14
        %v3240 = vld [vmem:[%s3239] sm:$0x3]
        %v3242 = vshrl.u32 %v3191, 16
        %v3244 = vrot.slane %v3242, 4
        %v3245 = vshll.u32 %v3191, 16
        %v3247 = vrot.slane %v3245, 5
        %v3248 = vor.u32 %v3244, %v3247
        %v3249 = vrot.slane %v3248, 4
        %v3251 = vshll.u32 %v3192, 16
        %v3253 = vrot.slane %v3251, 5
        %v3254 = vsel %vm305, %v3249, %v3253
        %v3255 = vshrl.u32 %v3192, 16
        %v3257 = vrot.slane %v3255, 4
        %v3258 = vor.u32 %v3257, %v3253
        %v3259 = vrot.slane %v3258, 4
        %v3261 = vshll.u32 %v3193, 16
        %v3263 = vrot.slane %v3261, 5
        %v3264 = vsel %vm305, %v3259, %v3263
        %v3266 = vshrl.u32 %v3194, 16
        %v3268 = vrot.slane %v3266, 4
        %v3269 = vshll.u32 %v3194, 16
        %v3271 = vrot.slane %v3269, 5
        %v3272 = vor.u32 %v3268, %v3271
        %v3273 = vrot.slane %v3272, 4
        %v3275 = vshll.u32 %v3195, 16
        %v3277 = vrot.slane %v3275, 5
        %v3278 = vsel %vm305, %v3273, %v3277
        %v3279 = vshrl.u32 %v3195, 16
        %v3281 = vrot.slane %v3279, 4
        %v3282 = vor.u32 %v3281, %v3277
        %v3283 = vrot.slane %v3282, 4
        %v3285 = vshll.u32 %v3196, 16
        %v3287 = vrot.slane %v3285, 5
        %v3288 = vsel %vm305, %v3283, %v3287
        %v3290 = vshrl.u32 %v3197, 16
        %v3292 = vrot.slane %v3290, 4
        %v3293 = vshll.u32 %v3197, 16
        %v3295 = vrot.slane %v3293, 5
        %v3296 = vor.u32 %v3292, %v3295
        %v3297 = vrot.slane %v3296, 4
        %v3299 = vshll.u32 %v3198, 16
        %v3301 = vrot.slane %v3299, 5
        %v3302 = vsel %vm305, %v3297, %v3301
        %v3303 = vshrl.u32 %v3198, 16
        %v3305 = vrot.slane %v3303, 4
        %v3306 = vor.u32 %v3305, %v3301
        %v3307 = vrot.slane %v3306, 4
        %v3309 = vshll.u32 %v3199, 16
        %v3311 = vrot.slane %v3309, 5
        %v3312 = vsel %vm305, %v3307, %v3311
        %v3314 = vshrl.u32 %v3200, 16
        %v3316 = vrot.slane %v3314, 4
        %v3317 = vshll.u32 %v3200, 16
        %v3319 = vrot.slane %v3317, 5
        %v3320 = vor.u32 %v3316, %v3319
        %v3321 = vrot.slane %v3320, 4
        %v3323 = vshll.u32 %v3201, 16
        %v3325 = vrot.slane %v3323, 5
        %v3326 = vsel %vm305, %v3321, %v3325
        %v3327 = vshrl.u32 %v3201, 16
        %v3329 = vrot.slane %v3327, 4
        %v3330 = vor.u32 %v3329, %v3325
        %v3331 = vrot.slane %v3330, 4
        %v3333 = vshll.u32 %v3202, 16
        %v3335 = vrot.slane %v3333, 5
        %v3336 = vsel %vm305, %v3331, %v3335
        %v3338 = vshrl.u32 %v3203, 16
        %v3340 = vrot.slane %v3338, 4
        %v3341 = vshll.u32 %v3203, 16
        %v3343 = vrot.slane %v3341, 5
        %v3344 = vor.u32 %v3340, %v3343
        %v3345 = vrot.slane %v3344, 4
        %v3347 = vshll.u32 %v3204, 16
        %v3349 = vrot.slane %v3347, 5
        %v3350 = vsel %vm305, %v3345, %v3349
        %v3351 = vshrl.u32 %v3204, 16
        %v3353 = vrot.slane %v3351, 4
        %v3354 = vor.u32 %v3353, %v3349
        %v3355 = vrot.slane %v3354, 4
        %v3357 = vshll.u32 %v3205, 16
        %v3359 = vrot.slane %v3357, 5
        %v3360 = vsel %vm305, %v3355, %v3359
        %v3362 = vshrl.u32 %v3206, 16
        %v3364 = vrot.slane %v3362, 4
        %v3365 = vshll.u32 %v3206, 16
        %v3367 = vrot.slane %v3365, 5
        %v3368 = vor.u32 %v3364, %v3367
        %v3369 = vrot.slane %v3368, 4
        %v3371 = vshll.u32 %v3207, 16
        %v3373 = vrot.slane %v3371, 5
        %v3374 = vsel %vm305, %v3369, %v3373
        %v3375 = vshrl.u32 %v3207, 16
        %v3377 = vrot.slane %v3375, 4
        %v3378 = vor.u32 %v3377, %v3373
        %v3379 = vrot.slane %v3378, 4
        %v3381 = vshll.u32 %v3208, 16
        %v3383 = vrot.slane %v3381, 5
        %v3384 = vsel %vm305, %v3379, %v3383
        %v3386 = vshrl.u32 %v3209, 16
        %v3388 = vrot.slane %v3386, 4
        %v3389 = vshll.u32 %v3209, 16
        %v3391 = vrot.slane %v3389, 5
        %v3392 = vor.u32 %v3388, %v3391
        %v3393 = vrot.slane %v3392, 4
        %v3395 = vshll.u32 %v3210, 16
        %v3397 = vrot.slane %v3395, 5
        %v3398 = vsel %vm305, %v3393, %v3397
        %v3399 = vshrl.u32 %v3210, 16
        %v3401 = vrot.slane %v3399, 4
        %v3402 = vor.u32 %v3401, %v3397
        %v3403 = vrot.slane %v3402, 4
        %v3405 = vshll.u32 %v3211, 16
        %v3407 = vrot.slane %v3405, 5
        %v3408 = vsel %vm305, %v3403, %v3407
        %v3410 = vshrl.u32 %v3212, 16
        %v3412 = vrot.slane %v3410, 4
        %v3413 = vshll.u32 %v3212, 16
        %v3415 = vrot.slane %v3413, 5
        %v3416 = vor.u32 %v3412, %v3415
        %v3417 = vrot.slane %v3416, 4
        %v3419 = vshll.u32 %v3213, 16
        %v3421 = vrot.slane %v3419, 5
        %v3422 = vsel %vm305, %v3417, %v3421
        %v3423 = vshrl.u32 %v3213, 16
        %v3425 = vrot.slane %v3423, 4
        %v3426 = vor.u32 %v3425, %v3421
        %v3427 = vrot.slane %v3426, 4
        %v3429 = vshll.u32 %v3214, 16
        %v3431 = vrot.slane %v3429, 5
        %v3432 = vsel %vm305, %v3427, %v3431
        %v3434 = vshrl.u32 %v3215, 16
        %v3436 = vrot.slane %v3434, 4
        %v3437 = vshll.u32 %v3215, 16
        %v3439 = vrot.slane %v3437, 5
        %v3440 = vor.u32 %v3436, %v3439
        %v3441 = vrot.slane %v3440, 4
        %v3443 = vshll.u32 %v3216, 16
        %v3445 = vrot.slane %v3443, 5
        %v3446 = vsel %vm305, %v3441, %v3445
        %v3447 = vshrl.u32 %v3216, 16
        %v3449 = vrot.slane %v3447, 4
        %v3450 = vor.u32 %v3449, %v3445
        %v3451 = vrot.slane %v3450, 4
        %v3453 = vshll.u32 %v3217, 16
        %v3455 = vrot.slane %v3453, 5
        %v3456 = vsel %vm305, %v3451, %v3455
        %v3458 = vshrl.u32 %v3218, 16
        %v3460 = vrot.slane %v3458, 4
        %v3461 = vshll.u32 %v3218, 16
        %v3463 = vrot.slane %v3461, 5
        %v3464 = vor.u32 %v3460, %v3463
        %v3465 = vrot.slane %v3464, 4
        %v3467 = vshll.u32 %v3219, 16
        %v3469 = vrot.slane %v3467, 5
        %v3470 = vsel %vm305, %v3465, %v3469
        %v3471 = vshrl.u32 %v3219, 16
        %v3473 = vrot.slane %v3471, 4
        %v3474 = vor.u32 %v3473, %v3469
        %v3475 = vrot.slane %v3474, 4
        %v3477 = vshll.u32 %v3220, 16
        %v3479 = vrot.slane %v3477, 5
        %v3480 = vsel %vm305, %v3475, %v3479
        %v3482 = vshrl.u32 %v3221, 16
        %v3484 = vrot.slane %v3482, 4
        %v3485 = vshll.u32 %v3221, 16
        %v3487 = vrot.slane %v3485, 5
        %v3488 = vor.u32 %v3484, %v3487
        %v3489 = vrot.slane %v3488, 4
        %v3491 = vshll.u32 %v3222, 16
        %v3493 = vrot.slane %v3491, 5
        %v3494 = vsel %vm305, %v3489, %v3493
        %v3495 = vshrl.u32 %v3222, 16
        %v3497 = vrot.slane %v3495, 4
        %v3498 = vor.u32 %v3497, %v3493
        %v3499 = vrot.slane %v3498, 4
        %v3501 = vshll.u32 %v3223, 16
        %v3503 = vrot.slane %v3501, 5
        %v3504 = vsel %vm305, %v3499, %v3503
        %v3506 = vshrl.u32 %v3224, 16
        %v3508 = vrot.slane %v3506, 4
        %v3509 = vshll.u32 %v3224, 16
        %v3511 = vrot.slane %v3509, 5
        %v3512 = vor.u32 %v3508, %v3511
        %v3513 = vrot.slane %v3512, 4
        %v3515 = vshll.u32 %v3225, 16
        %v3517 = vrot.slane %v3515, 5
        %v3518 = vsel %vm305, %v3513, %v3517
        %v3519 = vshrl.u32 %v3225, 16
        %v3521 = vrot.slane %v3519, 4
        %v3522 = vor.u32 %v3521, %v3517
        %v3523 = vrot.slane %v3522, 4
        %v3525 = vshll.u32 %v3226, 16
        %v3527 = vrot.slane %v3525, 5
        %v3528 = vsel %vm305, %v3523, %v3527
        %v3530 = vshrl.u32 %v3227, 16
        %v3532 = vrot.slane %v3530, 4
        %v3533 = vshll.u32 %v3227, 16
        %v3535 = vrot.slane %v3533, 5
        %v3536 = vor.u32 %v3532, %v3535
        %v3537 = vrot.slane %v3536, 4
        %v3539 = vshll.u32 %v3228, 16
        %v3541 = vrot.slane %v3539, 5
        %v3542 = vsel %vm305, %v3537, %v3541
        %v3543 = vshrl.u32 %v3228, 16
        %v3545 = vrot.slane %v3543, 4
        %v3546 = vor.u32 %v3545, %v3541
        %v3547 = vrot.slane %v3546, 4
        %v3549 = vshll.u32 %v3229, 16
        %v3551 = vrot.slane %v3549, 5
        %v3552 = vsel %vm305, %v3547, %v3551
        %v3554 = vshrl.u32 %v3230, 16
        %v3556 = vrot.slane %v3554, 4
        %v3557 = vshll.u32 %v3230, 16
        %v3559 = vrot.slane %v3557, 5
        %v3560 = vor.u32 %v3556, %v3559
        %v3561 = vrot.slane %v3560, 4
        %v3563 = vshll.u32 %v3231, 16
        %v3565 = vrot.slane %v3563, 5
        %v3566 = vsel %vm305, %v3561, %v3565
        %v3567 = vshrl.u32 %v3231, 16
        %v3569 = vrot.slane %v3567, 4
        %v3570 = vor.u32 %v3569, %v3565
        %v3571 = vrot.slane %v3570, 4
        %v3573 = vshll.u32 %v3232, 16
        %v3575 = vrot.slane %v3573, 5
        %v3576 = vsel %vm305, %v3571, %v3575
        %v3578 = vshrl.u32 %v3233, 16
        %v3580 = vrot.slane %v3578, 4
        %v3581 = vshll.u32 %v3233, 16
        %v3583 = vrot.slane %v3581, 5
        %v3584 = vor.u32 %v3580, %v3583
        %v3585 = vrot.slane %v3584, 4
        %v3587 = vshll.u32 %v3234, 16
        %v3589 = vrot.slane %v3587, 5
        %v3590 = vsel %vm305, %v3585, %v3589
        %v3591 = vshrl.u32 %v3234, 16
        %v3593 = vrot.slane %v3591, 4
        %v3594 = vor.u32 %v3593, %v3589
        %v3595 = vrot.slane %v3594, 4
        %v3597 = vshll.u32 %v3235, 16
        %v3599 = vrot.slane %v3597, 5
        %v3600 = vsel %vm305, %v3595, %v3599
        %v3602 = vshrl.u32 %v3236, 16
        %v3604 = vrot.slane %v3602, 4
        %v3605 = vshll.u32 %v3236, 16
        %v3607 = vrot.slane %v3605, 5
        %v3608 = vor.u32 %v3604, %v3607
        %v3609 = vrot.slane %v3608, 4
        %v3611 = vshll.u32 %v3237, 16
        %v3613 = vrot.slane %v3611, 5
        %v3614 = vsel %vm305, %v3609, %v3613
        %v3615 = vshrl.u32 %v3237, 16
        %v3617 = vrot.slane %v3615, 4
        %v3618 = vor.u32 %v3617, %v3613
        %v3619 = vrot.slane %v3618, 4
        %v3621 = vshll.u32 %v3238, 16
        %v3623 = vrot.slane %v3621, 5
        %v3624 = vsel %vm305, %v3619, %v3623
        %v3625 = vunpack.c.l.b16 %v3254
        %v3626 = vunpack.c.l.b16 %v3264
        %v3627 = vunpack.c.l.b16 %v3278
        %v3628 = vunpack.c.l.b16 %v3288
        %v3629 = vunpack.c.l.b16 %v3302
        %v3630 = vunpack.c.l.b16 %v3312
        %v3631 = vunpack.c.l.b16 %v3326
        %v3632 = vunpack.c.l.b16 %v3336
        %v3633 = vunpack.c.l.b16 %v3350
        %v3634 = vunpack.c.l.b16 %v3360
        %v3635 = vunpack.c.l.b16 %v3374
        %v3636 = vunpack.c.l.b16 %v3384
        %v3637 = vunpack.c.l.b16 %v3398
        %v3638 = vunpack.c.l.b16 %v3408
        %v3639 = vunpack.c.l.b16 %v3422
        %v3640 = vunpack.c.l.b16 %v3432
        %v3641 = vunpack.c.l.b16 %v3446
        %v3642 = vunpack.c.l.b16 %v3456
        %v3643 = vunpack.c.l.b16 %v3470
        %v3644 = vunpack.c.l.b16 %v3480
        %v3645 = vunpack.c.l.b16 %v3494
        %v3646 = vunpack.c.l.b16 %v3504
        %v3647 = vunpack.c.l.b16 %v3518
        %v3648 = vunpack.c.l.b16 %v3528
        %v3649 = vunpack.c.l.b16 %v3542
        %v3650 = vunpack.c.l.b16 %v3552
        %v3651 = vunpack.c.l.b16 %v3566
        %v3652 = vunpack.c.l.b16 %v3576
        %v3653 = vunpack.c.l.b16 %v3590
        %v3654 = vunpack.c.l.b16 %v3600
        %v3655 = vunpack.c.l.b16 %v3614
        %v3656 = vunpack.c.l.b16 %v3624
        %v3657 = vpack.c.b16 %v3626, %v3625
        %v3658 = vpack.c.b16 %v3628, %v3627
        %v3659 = vpack.c.b16 %v3630, %v3629
        %v3660 = vpack.c.b16 %v3632, %v3631
        %v3661 = vpack.c.b16 %v3634, %v3633
        %v3662 = vpack.c.b16 %v3636, %v3635
        %v3663 = vpack.c.b16 %v3638, %v3637
        %v3664 = vpack.c.b16 %v3640, %v3639
        %v3665 = vpack.c.b16 %v3642, %v3641
        %v3666 = vpack.c.b16 %v3644, %v3643
        %v3667 = vpack.c.b16 %v3646, %v3645
        %v3668 = vpack.c.b16 %v3648, %v3647
        %v3669 = vpack.c.b16 %v3650, %v3649
        %v3670 = vpack.c.b16 %v3652, %v3651
        %v3671 = vpack.c.b16 %v3654, %v3653
        %v3672 = vpack.c.b16 %v3656, %v3655
        %v3674 = vsel %vm738, %v3657, 0
        %v3677 = vsel %vm738, %v3658, 0
        %v3680 = vsel %vm738, %v3659, 0
        %v3683 = vsel %vm738, %v3660, 0
        %v3686 = vsel %vm738, %v3661, 0
        %v3689 = vsel %vm738, %v3662, 0
        %v3692 = vsel %vm738, %v3663, 0
        %v3695 = vsel %vm738, %v3664, 0
        %v3698 = vsel %vm738, %v3665, 0
        %v3701 = vsel %vm738, %v3666, 0
        %v3704 = vsel %vm738, %v3667, 0
        %v3707 = vsel %vm738, %v3668, 0
        %v3710 = vsel %vm738, %v3669, 0
        %v3713 = vsel %vm738, %v3670, 0
        %v3716 = vsel %vm738, %v3671, 0
        %v3719 = vsel %vm738, %v3672, 0
        %v3722 = vsel %vm787, %v3240, 0
        %3724 = vmatpush.bf16.msra.mxu0 0
        %3725 = vmatpush.bf16.msra.mxu0 0
        %3726 = vmatpush.bf16.msra.mxu0 0
        %3727 = vmatpush.bf16.msra.mxu0 0
        %3728 = vmatpush.bf16.msra.mxu0 0
        %3729 = vmatpush.bf16.msra.mxu0 0
        %3730 = vmatpush.bf16.msra.mxu0 0
        %3731 = vmatpush.bf16.msra.mxu0 %v3722
        %3732 = vmatmul.bf16.gmra.mxu0 %v3674
        %v3733 = vpop.f32.mrf.mxu0
        %v3734 = vadd.f32 0.0, %v3733
        %v3735 = vpop.f32.mrf.mxu0
        %v3736 = vadd.f32 0.0, %v3735
        %3737 = vmatmul.bf16.gmra.mxu0 %v3677
        %v3738 = vpop.f32.mrf.mxu0
        %v3739 = vadd.f32 0.0, %v3738
        %v3740 = vpop.f32.mrf.mxu0
        %v3741 = vadd.f32 0.0, %v3740
        %3742 = vmatmul.bf16.gmra.mxu0 %v3680
        %v3743 = vpop.f32.mrf.mxu0
        %v3744 = vadd.f32 0.0, %v3743
        %v3745 = vpop.f32.mrf.mxu0
        %v3746 = vadd.f32 0.0, %v3745
        %3747 = vmatmul.bf16.gmra.mxu0 %v3683
        %v3748 = vpop.f32.mrf.mxu0
        %v3749 = vadd.f32 0.0, %v3748
        %v3750 = vpop.f32.mrf.mxu0
        %v3751 = vadd.f32 0.0, %v3750
        %3752 = vmatmul.bf16.gmra.mxu0 %v3686
        %v3753 = vpop.f32.mrf.mxu0
        %v3754 = vadd.f32 0.0, %v3753
        %v3755 = vpop.f32.mrf.mxu0
        %v3756 = vadd.f32 0.0, %v3755
        %3757 = vmatmul.bf16.gmra.mxu0 %v3689
        %v3758 = vpop.f32.mrf.mxu0
        %v3759 = vadd.f32 0.0, %v3758
        %v3760 = vpop.f32.mrf.mxu0
        %v3761 = vadd.f32 0.0, %v3760
        %3762 = vmatmul.bf16.gmra.mxu0 %v3692
        %v3763 = vpop.f32.mrf.mxu0
        %v3764 = vadd.f32 0.0, %v3763
        %v3765 = vpop.f32.mrf.mxu0
        %v3766 = vadd.f32 0.0, %v3765
        %3767 = vmatmul.bf16.gmra.mxu0 %v3695
        %v3768 = vpop.f32.mrf.mxu0
        %v3769 = vadd.f32 0.0, %v3768
        %v3770 = vpop.f32.mrf.mxu0
        %v3771 = vadd.f32 0.0, %v3770
        %3772 = vmatmul.bf16.gmra.mxu0 %v3698
        %v3773 = vpop.f32.mrf.mxu0
        %v3774 = vadd.f32 0.0, %v3773
        %v3775 = vpop.f32.mrf.mxu0
        %v3776 = vadd.f32 0.0, %v3775
        %3777 = vmatmul.bf16.gmra.mxu0 %v3701
        %v3778 = vpop.f32.mrf.mxu0
        %v3779 = vadd.f32 0.0, %v3778
        %v3780 = vpop.f32.mrf.mxu0
        %v3781 = vadd.f32 0.0, %v3780
        %3782 = vmatmul.bf16.gmra.mxu0 %v3704
        %v3783 = vpop.f32.mrf.mxu0
        %v3784 = vadd.f32 0.0, %v3783
        %v3785 = vpop.f32.mrf.mxu0
        %v3786 = vadd.f32 0.0, %v3785
        %3787 = vmatmul.bf16.gmra.mxu0 %v3707
        %v3788 = vpop.f32.mrf.mxu0
        %v3789 = vadd.f32 0.0, %v3788
        %v3790 = vpop.f32.mrf.mxu0
        %v3791 = vadd.f32 0.0, %v3790
        %3792 = vmatmul.bf16.gmra.mxu0 %v3710
        %v3793 = vpop.f32.mrf.mxu0
        %v3794 = vadd.f32 0.0, %v3793
        %v3795 = vpop.f32.mrf.mxu0
        %v3796 = vadd.f32 0.0, %v3795
        %3797 = vmatmul.bf16.gmra.mxu0 %v3713
        %v3798 = vpop.f32.mrf.mxu0
        %v3799 = vadd.f32 0.0, %v3798
        %v3800 = vpop.f32.mrf.mxu0
        %v3801 = vadd.f32 0.0, %v3800
        %3802 = vmatmul.bf16.gmra.mxu0 %v3716
        %v3803 = vpop.f32.mrf.mxu0
        %v3804 = vadd.f32 0.0, %v3803
        %v3805 = vpop.f32.mrf.mxu0
        %v3806 = vadd.f32 0.0, %v3805
        %3807 = vmatmul.bf16.gmra.mxu0 %v3719
        %v3808 = vpop.f32.mrf.mxu0
        %v3809 = vadd.f32 0.0, %v3808
        %v3810 = vpop.f32.mrf.mxu0
        %v3811 = vadd.f32 0.0, %v3810
        %3812 = vdwg.mxu0
        %v3813 = vadd.f32 %v3159, %v3734
        %v3814 = vadd.f32 %v3160, %v3736
        %v3815 = vadd.f32 %v3161, %v3739
        %v3816 = vadd.f32 %v3162, %v3741
        %v3817 = vadd.f32 %v3163, %v3744
        %v3818 = vadd.f32 %v3164, %v3746
        %v3819 = vadd.f32 %v3165, %v3749
        %v3820 = vadd.f32 %v3166, %v3751
        %v3821 = vadd.f32 %v3167, %v3754
        %v3822 = vadd.f32 %v3168, %v3756
        %v3823 = vadd.f32 %v3169, %v3759
        %v3824 = vadd.f32 %v3170, %v3761
        %v3825 = vadd.f32 %v3171, %v3764
        %v3826 = vadd.f32 %v3172, %v3766
        %v3827 = vadd.f32 %v3173, %v3769
        %v3828 = vadd.f32 %v3174, %v3771
        %v3829 = vadd.f32 %v3175, %v3774
        %v3830 = vadd.f32 %v3176, %v3776
        %v3831 = vadd.f32 %v3177, %v3779
        %v3832 = vadd.f32 %v3178, %v3781
        %v3833 = vadd.f32 %v3179, %v3784
        %v3834 = vadd.f32 %v3180, %v3786
        %v3835 = vadd.f32 %v3181, %v3789
        %v3836 = vadd.f32 %v3182, %v3791
        %v3837 = vadd.f32 %v3183, %v3794
        %v3838 = vadd.f32 %v3184, %v3796
        %v3839 = vadd.f32 %v3185, %v3799
        %v3840 = vadd.f32 %v3186, %v3801
        %v3841 = vadd.f32 %v3187, %v3804
        %v3842 = vadd.f32 %v3188, %v3806
        %v3843 = vadd.f32 %v3189, %v3809
        %v3844 = vadd.f32 %v3190, %v3811
        %v3845 = vld [vmem:[%s2904] sm:$0xe]
        %v3846 = vld [vmem:[%s2904 + $0x4] sm:$0xf]
        %v3847 = vld [vmem:[%s2904 + $0x8] sm:$0x1]
        %v3848 = vld [vmem:[%s2904 + $0xc] sm:$0xe]
        %v3849 = vld [vmem:[%s2904 + $0x10] sm:$0xf]
        %v3850 = vld [vmem:[%s2904 + $0x14] sm:$0x1]
        %v3851 = vld [vmem:[%s2904 + $0x18] sm:$0xe]
        %v3852 = vld [vmem:[%s2904 + $0x1c] sm:$0xf]
        %v3853 = vld [vmem:[%s2904 + $0x20] sm:$0x1]
        %v3854 = vld [vmem:[%s2904 + $0x24] sm:$0xe]
        %v3855 = vld [vmem:[%s2904 + $0x28] sm:$0xf]
        %v3856 = vld [vmem:[%s2904 + $0x2c] sm:$0x1]
        %v3857 = vld [vmem:[%s2904 + $0x30] sm:$0xe]
        %v3858 = vld [vmem:[%s2904 + $0x34] sm:$0xf]
        %v3859 = vld [vmem:[%s2904 + $0x38] sm:$0x1]
        %v3860 = vld [vmem:[%s2904 + $0x3c] sm:$0xe]
        %v3861 = vld [vmem:[%s2904 + $0x40] sm:$0xf]
        %v3862 = vld [vmem:[%s2904 + $0x44] sm:$0x1]
        %v3863 = vld [vmem:[%s2904 + $0x48] sm:$0xe]
        %v3864 = vld [vmem:[%s2904 + $0x4c] sm:$0xf]
        %v3865 = vld [vmem:[%s2904 + $0x50] sm:$0x1]
        %v3866 = vld [vmem:[%s2904 + $0x54] sm:$0xe]
        %v3867 = vld [vmem:[%s2904 + $0x58] sm:$0xf]
        %v3868 = vld [vmem:[%s2904 + $0x5c] sm:$0x1]
        %v3869 = vld [vmem:[%s2904 + $0x60] sm:$0xe]
        %v3870 = vld [vmem:[%s2904 + $0x64] sm:$0xf]
        %v3871 = vld [vmem:[%s2904 + $0x68] sm:$0x1]
        %v3872 = vld [vmem:[%s2904 + $0x6c] sm:$0xe]
        %v3873 = vld [vmem:[%s2904 + $0x70] sm:$0xf]
        %v3874 = vld [vmem:[%s2904 + $0x74] sm:$0x1]
        %v3875 = vld [vmem:[%s2904 + $0x78] sm:$0xe]
        %v3876 = vld [vmem:[%s2904 + $0x7c] sm:$0xf]
        %v3877 = vld [vmem:[%s2904 + $0x80] sm:$0x1]
        %v3878 = vld [vmem:[%s2904 + $0x84] sm:$0xe]
        %v3879 = vld [vmem:[%s2904 + $0x88] sm:$0xf]
        %v3880 = vld [vmem:[%s2904 + $0x8c] sm:$0x1]
        %v3881 = vld [vmem:[%s2904 + $0x90] sm:$0xe]
        %v3882 = vld [vmem:[%s2904 + $0x94] sm:$0xf]
        %v3883 = vld [vmem:[%s2904 + $0x98] sm:$0x1]
        %v3884 = vld [vmem:[%s2904 + $0x9c] sm:$0xe]
        %v3885 = vld [vmem:[%s2904 + $0xa0] sm:$0xf]
        %v3886 = vld [vmem:[%s2904 + $0xa4] sm:$0x1]
        %v3887 = vld [vmem:[%s2904 + $0xa8] sm:$0xe]
        %v3888 = vld [vmem:[%s2904 + $0xac] sm:$0xf]
        %v3889 = vld [vmem:[%s2904 + $0xb0] sm:$0x1]
        %v3890 = vld [vmem:[%s2904 + $0xb4] sm:$0xe]
        %v3891 = vld [vmem:[%s2904 + $0xb8] sm:$0xf]
        %v3892 = vld [vmem:[%s2904 + $0xbc] sm:$0x1]
        %s3893 = scalar_lea.vmem %s1, 16
        %v3894 = vld [vmem:[%s3893] sm:$0x3]
        %v3943 = vrot.slane %v3845, 5
        %v3944 = vrot.slane %v3943, 4
        %v3945 = vrot.slane %v3846, 5
        %v3946 = vsel %vm1200, %v3944, %v3945
        %v3947 = vrot.slane %v3945, 4
        %v3948 = vrot.slane %v3847, 5
        %v3949 = vsel %vm1200, %v3947, %v3948
        %v3950 = vrot.slane %v3848, 5
        %v3951 = vrot.slane %v3950, 4
        %v3952 = vrot.slane %v3849, 5
        %v3953 = vsel %vm1200, %v3951, %v3952
        %v3954 = vrot.slane %v3952, 4
        %v3955 = vrot.slane %v3850, 5
        %v3956 = vsel %vm1200, %v3954, %v3955
        %v3957 = vrot.slane %v3851, 5
        %v3958 = vrot.slane %v3957, 4
        %v3959 = vrot.slane %v3852, 5
        %v3960 = vsel %vm1200, %v3958, %v3959
        %v3961 = vrot.slane %v3959, 4
        %v3962 = vrot.slane %v3853, 5
        %v3963 = vsel %vm1200, %v3961, %v3962
        %v3964 = vrot.slane %v3854, 5
        %v3965 = vrot.slane %v3964, 4
        %v3966 = vrot.slane %v3855, 5
        %v3967 = vsel %vm1200, %v3965, %v3966
        %v3968 = vrot.slane %v3966, 4
        %v3969 = vrot.slane %v3856, 5
        %v3970 = vsel %vm1200, %v3968, %v3969
        %v3971 = vrot.slane %v3857, 5
        %v3972 = vrot.slane %v3971, 4
        %v3973 = vrot.slane %v3858, 5
        %v3974 = vsel %vm1200, %v3972, %v3973
        %v3975 = vrot.slane %v3973, 4
        %v3976 = vrot.slane %v3859, 5
        %v3977 = vsel %vm1200, %v3975, %v3976
        %v3978 = vrot.slane %v3860, 5
        %v3979 = vrot.slane %v3978, 4
        %v3980 = vrot.slane %v3861, 5
        %v3981 = vsel %vm1200, %v3979, %v3980
        %v3982 = vrot.slane %v3980, 4
        %v3983 = vrot.slane %v3862, 5
        %v3984 = vsel %vm1200, %v3982, %v3983
        %v3985 = vrot.slane %v3863, 5
        %v3986 = vrot.slane %v3985, 4
        %v3987 = vrot.slane %v3864, 5
        %v3988 = vsel %vm1200, %v3986, %v3987
        %v3989 = vrot.slane %v3987, 4
        %v3990 = vrot.slane %v3865, 5
        %v3991 = vsel %vm1200, %v3989, %v3990
        %v3992 = vrot.slane %v3866, 5
        %v3993 = vrot.slane %v3992, 4
        %v3994 = vrot.slane %v3867, 5
        %v3995 = vsel %vm1200, %v3993, %v3994
        %v3996 = vrot.slane %v3994, 4
        %v3997 = vrot.slane %v3868, 5
        %v3998 = vsel %vm1200, %v3996, %v3997
        %v3999 = vrot.slane %v3869, 5
        %v4000 = vrot.slane %v3999, 4
        %v4001 = vrot.slane %v3870, 5
        %v4002 = vsel %vm1200, %v4000, %v4001
        %v4003 = vrot.slane %v4001, 4
        %v4004 = vrot.slane %v3871, 5
        %v4005 = vsel %vm1200, %v4003, %v4004
        %v4006 = vrot.slane %v3872, 5
        %v4007 = vrot.slane %v4006, 4
        %v4008 = vrot.slane %v3873, 5
        %v4009 = vsel %vm1200, %v4007, %v4008
        %v4010 = vrot.slane %v4008, 4
        %v4011 = vrot.slane %v3874, 5
        %v4012 = vsel %vm1200, %v4010, %v4011
        %v4013 = vrot.slane %v3875, 5
        %v4014 = vrot.slane %v4013, 4
        %v4015 = vrot.slane %v3876, 5
        %v4016 = vsel %vm1200, %v4014, %v4015
        %v4017 = vrot.slane %v4015, 4
        %v4018 = vrot.slane %v3877, 5
        %v4019 = vsel %vm1200, %v4017, %v4018
        %v4020 = vrot.slane %v3878, 5
        %v4021 = vrot.slane %v4020, 4
        %v4022 = vrot.slane %v3879, 5
        %v4023 = vsel %vm1200, %v4021, %v4022
        %v4024 = vrot.slane %v4022, 4
        %v4025 = vrot.slane %v3880, 5
        %v4026 = vsel %vm1200, %v4024, %v4025
        %v4027 = vrot.slane %v3881, 5
        %v4028 = vrot.slane %v4027, 4
        %v4029 = vrot.slane %v3882, 5
        %v4030 = vsel %vm1200, %v4028, %v4029
        %v4031 = vrot.slane %v4029, 4
        %v4032 = vrot.slane %v3883, 5
        %v4033 = vsel %vm1200, %v4031, %v4032
        %v4034 = vrot.slane %v3884, 5
        %v4035 = vrot.slane %v4034, 4
        %v4036 = vrot.slane %v3885, 5
        %v4037 = vsel %vm1200, %v4035, %v4036
        %v4038 = vrot.slane %v4036, 4
        %v4039 = vrot.slane %v3886, 5
        %v4040 = vsel %vm1200, %v4038, %v4039
        %v4041 = vrot.slane %v3887, 5
        %v4042 = vrot.slane %v4041, 4
        %v4043 = vrot.slane %v3888, 5
        %v4044 = vsel %vm1200, %v4042, %v4043
        %v4045 = vrot.slane %v4043, 4
        %v4046 = vrot.slane %v3889, 5
        %v4047 = vsel %vm1200, %v4045, %v4046
        %v4048 = vrot.slane %v3890, 5
        %v4049 = vrot.slane %v4048, 4
        %v4050 = vrot.slane %v3891, 5
        %v4051 = vsel %vm1200, %v4049, %v4050
        %v4052 = vrot.slane %v4050, 4
        %v4053 = vrot.slane %v3892, 5
        %v4054 = vsel %vm1200, %v4052, %v4053
        %v4055 = vunpack.c.l.b16 %v3946
        %v4056 = vunpack.c.l.b16 %v3949
        %v4057 = vunpack.c.l.b16 %v3953
        %v4058 = vunpack.c.l.b16 %v3956
        %v4059 = vunpack.c.l.b16 %v3960
        %v4060 = vunpack.c.l.b16 %v3963
        %v4061 = vunpack.c.l.b16 %v3967
        %v4062 = vunpack.c.l.b16 %v3970
        %v4063 = vunpack.c.l.b16 %v3974
        %v4064 = vunpack.c.l.b16 %v3977
        %v4065 = vunpack.c.l.b16 %v3981
        %v4066 = vunpack.c.l.b16 %v3984
        %v4067 = vunpack.c.l.b16 %v3988
        %v4068 = vunpack.c.l.b16 %v3991
        %v4069 = vunpack.c.l.b16 %v3995
        %v4070 = vunpack.c.l.b16 %v3998
        %v4071 = vunpack.c.l.b16 %v4002
        %v4072 = vunpack.c.l.b16 %v4005
        %v4073 = vunpack.c.l.b16 %v4009
        %v4074 = vunpack.c.l.b16 %v4012
        %v4075 = vunpack.c.l.b16 %v4016
        %v4076 = vunpack.c.l.b16 %v4019
        %v4077 = vunpack.c.l.b16 %v4023
        %v4078 = vunpack.c.l.b16 %v4026
        %v4079 = vunpack.c.l.b16 %v4030
        %v4080 = vunpack.c.l.b16 %v4033
        %v4081 = vunpack.c.l.b16 %v4037
        %v4082 = vunpack.c.l.b16 %v4040
        %v4083 = vunpack.c.l.b16 %v4044
        %v4084 = vunpack.c.l.b16 %v4047
        %v4085 = vunpack.c.l.b16 %v4051
        %v4086 = vunpack.c.l.b16 %v4054
        %v4087 = vpack.c.b16 %v4056, %v4055
        %v4088 = vpack.c.b16 %v4058, %v4057
        %v4089 = vpack.c.b16 %v4060, %v4059
        %v4090 = vpack.c.b16 %v4062, %v4061
        %v4091 = vpack.c.b16 %v4064, %v4063
        %v4092 = vpack.c.b16 %v4066, %v4065
        %v4093 = vpack.c.b16 %v4068, %v4067
        %v4094 = vpack.c.b16 %v4070, %v4069
        %v4095 = vpack.c.b16 %v4072, %v4071
        %v4096 = vpack.c.b16 %v4074, %v4073
        %v4097 = vpack.c.b16 %v4076, %v4075
        %v4098 = vpack.c.b16 %v4078, %v4077
        %v4099 = vpack.c.b16 %v4080, %v4079
        %v4100 = vpack.c.b16 %v4082, %v4081
        %v4101 = vpack.c.b16 %v4084, %v4083
        %v4102 = vpack.c.b16 %v4086, %v4085
        %v4104 = vsel %vm738, %v4087, 0
        %v4107 = vsel %vm738, %v4088, 0
        %v4110 = vsel %vm738, %v4089, 0
        %v4113 = vsel %vm738, %v4090, 0
        %v4116 = vsel %vm738, %v4091, 0
        %v4119 = vsel %vm738, %v4092, 0
        %v4122 = vsel %vm738, %v4093, 0
        %v4125 = vsel %vm738, %v4094, 0
        %v4128 = vsel %vm738, %v4095, 0
        %v4131 = vsel %vm738, %v4096, 0
        %v4134 = vsel %vm738, %v4097, 0
        %v4137 = vsel %vm738, %v4098, 0
        %v4140 = vsel %vm738, %v4099, 0
        %v4143 = vsel %vm738, %v4100, 0
        %v4146 = vsel %vm738, %v4101, 0
        %v4149 = vsel %vm738, %v4102, 0
        %v4152 = vsel %vm787, %v3894, 0
        %4154 = vmatpush.bf16.msra.mxu0 0
        %4155 = vmatpush.bf16.msra.mxu0 0
        %4156 = vmatpush.bf16.msra.mxu0 0
        %4157 = vmatpush.bf16.msra.mxu0 0
        %4158 = vmatpush.bf16.msra.mxu0 0
        %4159 = vmatpush.bf16.msra.mxu0 0
        %4160 = vmatpush.bf16.msra.mxu0 0
        %4161 = vmatpush.bf16.msra.mxu0 %v4152
        %4162 = vmatmul.bf16.gmra.mxu0 %v4104
        %v4163 = vpop.f32.mrf.mxu0
        %v4164 = vadd.f32 0.0, %v4163
        %v4165 = vpop.f32.mrf.mxu0
        %v4166 = vadd.f32 0.0, %v4165
        %4167 = vmatmul.bf16.gmra.mxu0 %v4107
        %v4168 = vpop.f32.mrf.mxu0
        %v4169 = vadd.f32 0.0, %v4168
        %v4170 = vpop.f32.mrf.mxu0
        %v4171 = vadd.f32 0.0, %v4170
        %4172 = vmatmul.bf16.gmra.mxu0 %v4110
        %v4173 = vpop.f32.mrf.mxu0
        %v4174 = vadd.f32 0.0, %v4173
        %v4175 = vpop.f32.mrf.mxu0
        %v4176 = vadd.f32 0.0, %v4175
        %4177 = vmatmul.bf16.gmra.mxu0 %v4113
        %v4178 = vpop.f32.mrf.mxu0
        %v4179 = vadd.f32 0.0, %v4178
        %v4180 = vpop.f32.mrf.mxu0
        %v4181 = vadd.f32 0.0, %v4180
        %4182 = vmatmul.bf16.gmra.mxu0 %v4116
        %v4183 = vpop.f32.mrf.mxu0
        %v4184 = vadd.f32 0.0, %v4183
        %v4185 = vpop.f32.mrf.mxu0
        %v4186 = vadd.f32 0.0, %v4185
        %4187 = vmatmul.bf16.gmra.mxu0 %v4119
        %v4188 = vpop.f32.mrf.mxu0
        %v4189 = vadd.f32 0.0, %v4188
        %v4190 = vpop.f32.mrf.mxu0
        %v4191 = vadd.f32 0.0, %v4190
        %4192 = vmatmul.bf16.gmra.mxu0 %v4122
        %v4193 = vpop.f32.mrf.mxu0
        %v4194 = vadd.f32 0.0, %v4193
        %v4195 = vpop.f32.mrf.mxu0
        %v4196 = vadd.f32 0.0, %v4195
        %4197 = vmatmul.bf16.gmra.mxu0 %v4125
        %v4198 = vpop.f32.mrf.mxu0
        %v4199 = vadd.f32 0.0, %v4198
        %v4200 = vpop.f32.mrf.mxu0
        %v4201 = vadd.f32 0.0, %v4200
        %4202 = vmatmul.bf16.gmra.mxu0 %v4128
        %v4203 = vpop.f32.mrf.mxu0
        %v4204 = vadd.f32 0.0, %v4203
        %v4205 = vpop.f32.mrf.mxu0
        %v4206 = vadd.f32 0.0, %v4205
        %4207 = vmatmul.bf16.gmra.mxu0 %v4131
        %v4208 = vpop.f32.mrf.mxu0
        %v4209 = vadd.f32 0.0, %v4208
        %v4210 = vpop.f32.mrf.mxu0
        %v4211 = vadd.f32 0.0, %v4210
        %4212 = vmatmul.bf16.gmra.mxu0 %v4134
        %v4213 = vpop.f32.mrf.mxu0
        %v4214 = vadd.f32 0.0, %v4213
        %v4215 = vpop.f32.mrf.mxu0
        %v4216 = vadd.f32 0.0, %v4215
        %4217 = vmatmul.bf16.gmra.mxu0 %v4137
        %v4218 = vpop.f32.mrf.mxu0
        %v4219 = vadd.f32 0.0, %v4218
        %v4220 = vpop.f32.mrf.mxu0
        %v4221 = vadd.f32 0.0, %v4220
        %4222 = vmatmul.bf16.gmra.mxu0 %v4140
        %v4223 = vpop.f32.mrf.mxu0
        %v4224 = vadd.f32 0.0, %v4223
        %v4225 = vpop.f32.mrf.mxu0
        %v4226 = vadd.f32 0.0, %v4225
        %4227 = vmatmul.bf16.gmra.mxu0 %v4143
        %v4228 = vpop.f32.mrf.mxu0
        %v4229 = vadd.f32 0.0, %v4228
        %v4230 = vpop.f32.mrf.mxu0
        %v4231 = vadd.f32 0.0, %v4230
        %4232 = vmatmul.bf16.gmra.mxu0 %v4146
        %v4233 = vpop.f32.mrf.mxu0
        %v4234 = vadd.f32 0.0, %v4233
        %v4235 = vpop.f32.mrf.mxu0
        %v4236 = vadd.f32 0.0, %v4235
        %4237 = vmatmul.bf16.gmra.mxu0 %v4149
        %v4238 = vpop.f32.mrf.mxu0
        %v4239 = vadd.f32 0.0, %v4238
        %v4240 = vpop.f32.mrf.mxu0
        %v4241 = vadd.f32 0.0, %v4240
        %4242 = vdwg.mxu0
        %v4243 = vadd.f32 %v3813, %v4164
        %v4244 = vadd.f32 %v3814, %v4166
        %v4245 = vadd.f32 %v3815, %v4169
        %v4246 = vadd.f32 %v3816, %v4171
        %v4247 = vadd.f32 %v3817, %v4174
        %v4248 = vadd.f32 %v3818, %v4176
        %v4249 = vadd.f32 %v3819, %v4179
        %v4250 = vadd.f32 %v3820, %v4181
        %v4251 = vadd.f32 %v3821, %v4184
        %v4252 = vadd.f32 %v3822, %v4186
        %v4253 = vadd.f32 %v3823, %v4189
        %v4254 = vadd.f32 %v3824, %v4191
        %v4255 = vadd.f32 %v3825, %v4194
        %v4256 = vadd.f32 %v3826, %v4196
        %v4257 = vadd.f32 %v3827, %v4199
        %v4258 = vadd.f32 %v3828, %v4201
        %v4259 = vadd.f32 %v3829, %v4204
        %v4260 = vadd.f32 %v3830, %v4206
        %v4261 = vadd.f32 %v3831, %v4209
        %v4262 = vadd.f32 %v3832, %v4211
        %v4263 = vadd.f32 %v3833, %v4214
        %v4264 = vadd.f32 %v3834, %v4216
        %v4265 = vadd.f32 %v3835, %v4219
        %v4266 = vadd.f32 %v3836, %v4221
        %v4267 = vadd.f32 %v3837, %v4224
        %v4268 = vadd.f32 %v3838, %v4226
        %v4269 = vadd.f32 %v3839, %v4229
        %v4270 = vadd.f32 %v3840, %v4231
        %v4271 = vadd.f32 %v3841, %v4234
        %v4272 = vadd.f32 %v3842, %v4236
        %v4273 = vadd.f32 %v3843, %v4239
        %v4274 = vadd.f32 %v3844, %v4241
        %vm4275 = vcmask 64512
        %4276 = vst.msk [vmem:[%s218] sm:$0xff] %vm4275, %v4243
        %4277 = vst.msk [vmem:[%s218 + $0x8] sm:$0xff] %vm4275, %v4244
        %4278 = vst.msk [vmem:[%s218 + $0x10] sm:$0xff] %vm4275, %v4245
        %4279 = vst.msk [vmem:[%s218 + $0x18] sm:$0xff] %vm4275, %v4246
        %4280 = vst.msk [vmem:[%s218 + $0x20] sm:$0xff] %vm4275, %v4247
        %4281 = vst.msk [vmem:[%s218 + $0x28] sm:$0xff] %vm4275, %v4248
        %4282 = vst.msk [vmem:[%s218 + $0x30] sm:$0xff] %vm4275, %v4249
        %4283 = vst.msk [vmem:[%s218 + $0x38] sm:$0xff] %vm4275, %v4250
        %4284 = vst.msk [vmem:[%s218 + $0x40] sm:$0xff] %vm4275, %v4251
        %4285 = vst.msk [vmem:[%s218 + $0x48] sm:$0xff] %vm4275, %v4252
        %4286 = vst.msk [vmem:[%s218 + $0x50] sm:$0xff] %vm4275, %v4253
        %4287 = vst.msk [vmem:[%s218 + $0x58] sm:$0xff] %vm4275, %v4254
        %4288 = vst.msk [vmem:[%s218 + $0x60] sm:$0xff] %vm4275, %v4255
        %4289 = vst.msk [vmem:[%s218 + $0x68] sm:$0xff] %vm4275, %v4256
        %4290 = vst.msk [vmem:[%s218 + $0x70] sm:$0xff] %vm4275, %v4257
        %4291 = vst.msk [vmem:[%s218 + $0x78] sm:$0xff] %vm4275, %v4258
        %4292 = vst.msk [vmem:[%s218 + $0x80] sm:$0xff] %vm4275, %v4259
        %4293 = vst.msk [vmem:[%s218 + $0x88] sm:$0xff] %vm4275, %v4260
        %4294 = vst.msk [vmem:[%s218 + $0x90] sm:$0xff] %vm4275, %v4261
        %4295 = vst.msk [vmem:[%s218 + $0x98] sm:$0xff] %vm4275, %v4262
        %4296 = vst.msk [vmem:[%s218 + $0xa0] sm:$0xff] %vm4275, %v4263
        %4297 = vst.msk [vmem:[%s218 + $0xa8] sm:$0xff] %vm4275, %v4264
        %4298 = vst.msk [vmem:[%s218 + $0xb0] sm:$0xff] %vm4275, %v4265
        %4299 = vst.msk [vmem:[%s218 + $0xb8] sm:$0xff] %vm4275, %v4266
        %4300 = vst.msk [vmem:[%s218 + $0xc0] sm:$0xff] %vm4275, %v4267
        %4301 = vst.msk [vmem:[%s218 + $0xc8] sm:$0xff] %vm4275, %v4268
        %4302 = vst.msk [vmem:[%s218 + $0xd0] sm:$0xff] %vm4275, %v4269
        %4303 = vst.msk [vmem:[%s218 + $0xd8] sm:$0xff] %vm4275, %v4270
        %4304 = vst.msk [vmem:[%s218 + $0xe0] sm:$0xff] %vm4275, %v4271
        %4305 = vst.msk [vmem:[%s218 + $0xe8] sm:$0xff] %vm4275, %v4272
        %4306 = vst.msk [vmem:[%s218 + $0xf0] sm:$0xff] %vm4275, %v4273
        %4307 = vst.msk [vmem:[%s218 + $0xf8] sm:$0xff] %vm4275, %v4274
        %v4308 = vsel %vm4275, %v4243, 0.0
        %v4309 = vsel %vm4275, %v4245, 0.0
        %v4310 = vadd.f32 %v4308, %v4309
        %v4311 = vsel %vm4275, %v4247, 0.0
        %v4312 = vadd.f32 %v4310, %v4311
        %v4313 = vsel %vm4275, %v4249, 0.0
        %v4314 = vadd.f32 %v4312, %v4313
        %v4315 = vsel %vm4275, %v4251, 0.0
        %v4316 = vadd.f32 %v4314, %v4315
        %v4317 = vsel %vm4275, %v4253, 0.0
        %v4318 = vadd.f32 %v4316, %v4317
        %v4319 = vsel %vm4275, %v4255, 0.0
        %v4320 = vadd.f32 %v4318, %v4319
        %v4321 = vsel %vm4275, %v4257, 0.0
        %v4322 = vadd.f32 %v4320, %v4321
        %v4323 = vsel %vm4275, %v4259, 0.0
        %v4324 = vadd.f32 %v4322, %v4323
        %v4325 = vsel %vm4275, %v4261, 0.0
        %v4326 = vadd.f32 %v4324, %v4325
        %v4327 = vsel %vm4275, %v4263, 0.0
        %v4328 = vadd.f32 %v4326, %v4327
        %v4329 = vsel %vm4275, %v4265, 0.0
        %v4330 = vadd.f32 %v4328, %v4329
        %v4331 = vsel %vm4275, %v4267, 0.0
        %v4332 = vadd.f32 %v4330, %v4331
        %v4333 = vsel %vm4275, %v4269, 0.0
        %v4334 = vadd.f32 %v4332, %v4333
        %v4335 = vsel %vm4275, %v4271, 0.0
        %v4336 = vadd.f32 %v4334, %v4335
        %v4337 = vsel %vm4275, %v4273, 0.0
        %v4338 = vadd.f32 %v4336, %v4337
        %v4339 = vsel %vm4275, %v4244, 0.0
        %v4340 = vsel %vm4275, %v4246, 0.0
        %v4341 = vadd.f32 %v4339, %v4340
        %v4342 = vsel %vm4275, %v4248, 0.0
        %v4343 = vadd.f32 %v4341, %v4342
        %v4344 = vsel %vm4275, %v4250, 0.0
        %v4345 = vadd.f32 %v4343, %v4344
        %v4346 = vsel %vm4275, %v4252, 0.0
        %v4347 = vadd.f32 %v4345, %v4346
        %v4348 = vsel %vm4275, %v4254, 0.0
        %v4349 = vadd.f32 %v4347, %v4348
        %v4350 = vsel %vm4275, %v4256, 0.0
        %v4351 = vadd.f32 %v4349, %v4350
        %v4352 = vsel %vm4275, %v4258, 0.0
        %v4353 = vadd.f32 %v4351, %v4352
        %v4354 = vsel %vm4275, %v4260, 0.0
        %v4355 = vadd.f32 %v4353, %v4354
        %v4356 = vsel %vm4275, %v4262, 0.0
        %v4357 = vadd.f32 %v4355, %v4356
        %v4358 = vsel %vm4275, %v4264, 0.0
        %v4359 = vadd.f32 %v4357, %v4358
        %v4360 = vsel %vm4275, %v4266, 0.0
        %v4361 = vadd.f32 %v4359, %v4360
        %v4362 = vsel %vm4275, %v4268, 0.0
        %v4363 = vadd.f32 %v4361, %v4362
        %v4364 = vsel %vm4275, %v4270, 0.0
        %v4365 = vadd.f32 %v4363, %v4364
        %v4366 = vsel %vm4275, %v4272, 0.0
        %v4367 = vadd.f32 %v4365, %v4366
        %v4368 = vsel %vm4275, %v4274, 0.0
        %v4369 = vadd.f32 %v4367, %v4368
        %v4370 = vmul.f32 %v4243, %v4243
        %v4371 = vmul.f32 %v4244, %v4244
        %v4372 = vmul.f32 %v4245, %v4245
        %v4373 = vmul.f32 %v4246, %v4246
        %v4374 = vmul.f32 %v4247, %v4247
        %v4375 = vmul.f32 %v4248, %v4248
        %v4376 = vmul.f32 %v4249, %v4249
        %v4377 = vmul.f32 %v4250, %v4250
        %v4378 = vmul.f32 %v4251, %v4251
        %v4379 = vmul.f32 %v4252, %v4252
        %v4380 = vmul.f32 %v4253, %v4253
        %v4381 = vmul.f32 %v4254, %v4254
        %v4382 = vmul.f32 %v4255, %v4255
        %v4383 = vmul.f32 %v4256, %v4256
        %v4384 = vmul.f32 %v4257, %v4257
        %v4385 = vmul.f32 %v4258, %v4258
        %v4386 = vmul.f32 %v4259, %v4259
        %v4387 = vmul.f32 %v4260, %v4260
        %v4388 = vmul.f32 %v4261, %v4261
        %v4389 = vmul.f32 %v4262, %v4262
        %v4390 = vmul.f32 %v4263, %v4263
        %v4391 = vmul.f32 %v4264, %v4264
        %v4392 = vmul.f32 %v4265, %v4265
        %v4393 = vmul.f32 %v4266, %v4266
        %v4394 = vmul.f32 %v4267, %v4267
        %v4395 = vmul.f32 %v4268, %v4268
        %v4396 = vmul.f32 %v4269, %v4269
        %v4397 = vmul.f32 %v4270, %v4270
        %v4398 = vmul.f32 %v4271, %v4271
        %v4399 = vmul.f32 %v4272, %v4272
        %v4400 = vmul.f32 %v4273, %v4273
        %v4401 = vmul.f32 %v4274, %v4274
        %v4402 = vsel %vm4275, %v4370, 0.0
        %v4403 = vsel %vm4275, %v4372, 0.0
        %v4404 = vadd.f32 %v4402, %v4403
        %v4405 = vsel %vm4275, %v4374, 0.0
        %v4406 = vadd.f32 %v4404, %v4405
        %v4407 = vsel %vm4275, %v4376, 0.0
        %v4408 = vadd.f32 %v4406, %v4407
        %v4409 = vsel %vm4275, %v4378, 0.0
        %v4410 = vadd.f32 %v4408, %v4409
        %v4411 = vsel %vm4275, %v4380, 0.0
        %v4412 = vadd.f32 %v4410, %v4411
        %v4413 = vsel %vm4275, %v4382, 0.0
        %v4414 = vadd.f32 %v4412, %v4413
        %v4415 = vsel %vm4275, %v4384, 0.0
        %v4416 = vadd.f32 %v4414, %v4415
        %v4417 = vsel %vm4275, %v4386, 0.0
        %v4418 = vadd.f32 %v4416, %v4417
        %v4419 = vsel %vm4275, %v4388, 0.0
        %v4420 = vadd.f32 %v4418, %v4419
        %v4421 = vsel %vm4275, %v4390, 0.0
        %v4422 = vadd.f32 %v4420, %v4421
        %v4423 = vsel %vm4275, %v4392, 0.0
        %v4424 = vadd.f32 %v4422, %v4423
        %v4425 = vsel %vm4275, %v4394, 0.0
        %v4426 = vadd.f32 %v4424, %v4425
        %v4427 = vsel %vm4275, %v4396, 0.0
        %v4428 = vadd.f32 %v4426, %v4427
        %v4429 = vsel %vm4275, %v4398, 0.0
        %v4430 = vadd.f32 %v4428, %v4429
        %v4431 = vsel %vm4275, %v4400, 0.0
        %v4432 = vadd.f32 %v4430, %v4431
        %v4433 = vsel %vm4275, %v4371, 0.0
        %v4434 = vsel %vm4275, %v4373, 0.0
        %v4435 = vadd.f32 %v4433, %v4434
        %v4436 = vsel %vm4275, %v4375, 0.0
        %v4437 = vadd.f32 %v4435, %v4436
        %v4438 = vsel %vm4275, %v4377, 0.0
        %v4439 = vadd.f32 %v4437, %v4438
        %v4440 = vsel %vm4275, %v4379, 0.0
        %v4441 = vadd.f32 %v4439, %v4440
        %v4442 = vsel %vm4275, %v4381, 0.0
        %v4443 = vadd.f32 %v4441, %v4442
        %v4444 = vsel %vm4275, %v4383, 0.0
        %v4445 = vadd.f32 %v4443, %v4444
        %v4446 = vsel %vm4275, %v4385, 0.0
        %v4447 = vadd.f32 %v4445, %v4446
        %v4448 = vsel %vm4275, %v4387, 0.0
        %v4449 = vadd.f32 %v4447, %v4448
        %v4450 = vsel %vm4275, %v4389, 0.0
        %v4451 = vadd.f32 %v4449, %v4450
        %v4452 = vsel %vm4275, %v4391, 0.0
        %v4453 = vadd.f32 %v4451, %v4452
        %v4454 = vsel %vm4275, %v4393, 0.0
        %v4455 = vadd.f32 %v4453, %v4454
        %v4456 = vsel %vm4275, %v4395, 0.0
        %v4457 = vadd.f32 %v4455, %v4456
        %v4458 = vsel %vm4275, %v4397, 0.0
        %v4459 = vadd.f32 %v4457, %v4458
        %v4460 = vsel %vm4275, %v4399, 0.0
        %v4461 = vadd.f32 %v4459, %v4460
        %v4462 = vsel %vm4275, %v4401, 0.0
        %v4463 = vadd.f32 %v4461, %v4462
        %v4464 = vsel %vm4275, %v4338, 0.0
        %v4465 = vsel %vm4275, %v4369, 0.0
        %v4466 = vadd.f32 %v4464, %v4465
        %v4467 = vrot.slane %v4466, 4
        %v4468 = vadd.f32 %v4466, %v4467
        %v4469 = vrot.slane %v4468, 2
        %v4470 = vadd.f32 %v4468, %v4469
        %v4471 = vrot.slane %v4470, 1
        %v4472 = vadd.f32 %v4470, %v4471
        %4473 = vst.msk [vmem:[%s201] sm:$0xff] %vm4275, %v4472
        %v4474 = vsel %vm4275, %v4432, 0.0
        %v4475 = vsel %vm4275, %v4463, 0.0
        %v4476 = vadd.f32 %v4474, %v4475
        %v4477 = vrot.slane %v4476, 4
        %v4478 = vadd.f32 %v4476, %v4477
        %v4479 = vrot.slane %v4478, 2
        %v4480 = vadd.f32 %v4478, %v4479
        %v4481 = vrot.slane %v4480, 1
        %v4482 = vadd.f32 %v4480, %v4481
        %4483 = vst.msk [vmem:[%s208] sm:$0xff] %vm4275, %v4482
        %p4484 = scmp.lt.s32.totalorder %s22, 1
        %s4485 = scalar_select %p4484, %s22, 1
        %s4486 = smul.addr %s4485, 32
        %s4487 = smul.addr %s4486, 8
        %s4488 = scalar_lea.vmem %s2, %s4487
        %s4489 = sand.u32 %s103, 1
        %s4490 = scalar_lea.sflag [#allocation3], %s4489
        %s4491 = sand.u32 %s103, 1
        %s4492 = smul.addr %s4491, 8
        %s4493 = scalar_lea.vmem [#allocation2], %s4492
        %s4494 = sand.u32 %s129, 1
        %s4495 = scalar_lea.sflag [#allocation5], %s4494
        %s4496 = sand.u32 %s129, 1
        %s4497 = smul.addr %s4496, 8
        %s4498 = scalar_lea.vmem [#allocation4], %s4497
        // Predicated region
        $region29: #{tpu_custom_call.1} parent=27 // pred_check
          %p4499 = pneg %p87
        $region30: #{tpu_custom_call.1} parent=27 // pred_check_branch
          %4501 = sbr.rel (%p4499) target = $region32
        $region31: #{tpu_custom_call.1} parent=27 // pred_region
          _
        $region32: #{tpu_custom_call.1} parent=27 // pred_fallthru
          _
        // Predicated region
        $region33: #{tpu_custom_call.1} parent=27 // pred_check
          %p4502 = pneg %p113
        $region34: #{tpu_custom_call.1} parent=27 // pred_check_branch
          %4504 = sbr.rel (%p4502) target = $region36
        $region35: #{tpu_custom_call.1} parent=27 // pred_region
          %4506 = vsyncadd %s4490, 0
          %s4507 = smul.addr %s22, 8
          %s4508 = scalar_lea.hbm %s3, %s4507
          %s4510 = sshll.u32 %s4493, 4
          %s4511 = int_to_ptr.vmem [resolvable:$true] %s4510
          %s4512 = sshll.u32 %s4508, 4
          %s4513 = int_to_ptr.hbm [resolvable:$true] %s4512
          %4515 = dma.vmem_to_hbm [thread:$0]  %s4511, 128, %s4513, %s4490
        $region36: #{tpu_custom_call.1} parent=27 // pred_fallthru
          _
        // Predicated region
        $region37: #{tpu_custom_call.1} parent=27 // pred_check
          %p4516 = pneg %p139
        $region38: #{tpu_custom_call.1} parent=27 // pred_check_branch
          %4518 = sbr.rel (%p4516) target = $region40
        $region39: #{tpu_custom_call.1} parent=27 // pred_region
          %4520 = vsyncadd %s4495, 0
          %s4521 = smul.addr %s22, 8
          %s4522 = scalar_lea.hbm %s4, %s4521
          %s4524 = sshll.u32 %s4498, 4
          %s4525 = int_to_ptr.vmem [resolvable:$true] %s4524
          %s4526 = sshll.u32 %s4522, 4
          %s4527 = int_to_ptr.hbm [resolvable:$true] %s4526
          %4529 = dma.vmem_to_hbm [thread:$0]  %s4525, 128, %s4527, %s4495
        $region40: #{tpu_custom_call.1} parent=27 // pred_fallthru
          _
      $region28: #{tpu_custom_call.1} parent=5 // pred_fallthru
        _
      %p4530 = scmp.le.s32.totalorder 2, %s17
      // Predicated region
      $region41: #{tpu_custom_call.1} parent=5 // pred_check
        %p4531 = pneg %p4530
      $region42: #{tpu_custom_call.1} parent=5 // pred_check_branch
        %4533 = sbr.rel (%p4531) target = $region44
      $region43: #{tpu_custom_call.1} parent=5 // pred_region
        %s4534 = ssub.s32 %s17, 2
        // Predicated region
        $region45: #{tpu_custom_call.1} parent=43 // pred_check
          %p4535 = pneg %p93
        $region46: #{tpu_custom_call.1} parent=43 // pred_check_branch
          %4537 = sbr.rel (%p4535) target = $region48
        $region47: #{tpu_custom_call.1} parent=43 // pred_region
          %p4538 = scmp.lt.s32.totalorder %s23, 1
          %s4539 = scalar_select %p4538, %s23, 1
          %s4540 = smul.addr %s4539, 32
          %s4541 = smul.addr %s4540, 8
          %s4542 = scalar_lea.vmem %s2, %s4541
        $region48: #{tpu_custom_call.1} parent=43 // pred_fallthru
          _
        // Predicated region
        $region49: #{tpu_custom_call.1} parent=43 // pred_check
          %p4543 = pneg %p119
        $region50: #{tpu_custom_call.1} parent=43 // pred_check_branch
          %4545 = sbr.rel (%p4543) target = $region52
        $region51: #{tpu_custom_call.1} parent=43 // pred_region
          %s4546 = sand.u32 %s104, 1
          %s4547 = scalar_lea.sflag [#allocation3], %s4546
          %s4548 = sand.u32 %s104, 1
          %s4549 = smul.addr %s4548, 8
          %s4550 = scalar_lea.vmem [#allocation2], %s4549
          %4552 = dma.done %s4547, 128
        $region52: #{tpu_custom_call.1} parent=43 // pred_fallthru
          _
        // Predicated region
        $region53: #{tpu_custom_call.1} parent=43 // pred_check
          %p4553 = pneg %p145
        $region54: #{tpu_custom_call.1} parent=43 // pred_check_branch
          %4555 = sbr.rel (%p4553) target = $region56
        $region55: #{tpu_custom_call.1} parent=43 // pred_region
          %s4556 = sand.u32 %s130, 1
          %s4557 = scalar_lea.sflag [#allocation5], %s4556
          %s4558 = sand.u32 %s130, 1
          %s4559 = smul.addr %s4558, 8
          %s4560 = scalar_lea.vmem [#allocation4], %s4559
          %4562 = dma.done %s4557, 128
        $region56: #{tpu_custom_call.1} parent=43 // pred_fallthru
          _
      $region44: #{tpu_custom_call.1} parent=5 // pred_fallthru
        _
    $region6: #{tpu_custom_call.1} parent=1 // loop_footer
      %s21 = sadd.s32 1, %s17
    $region7: #{tpu_custom_call.1} parent=1 // loop_footer_branch
      %16 = sbr.rel target = $region3
    $region8: #{tpu_custom_call.1} parent=1 // loop_exit
      _
    %4563 = vsyncpa [#allocation3], 1
    %s4564 = scalar_lea.sflag [#allocation3], 1
    %4565 = vsyncpa %s4564, 1
    %4566 = vsyncpa [#allocation5], 1
    %s4567 = scalar_lea.sflag [#allocation5], 1
    %4568 = vsyncpa %s4567, 1

</llo_original>
